<compile_context>
chip_gen: v7x
topology: tpu7x:2x2x1
jax: 0.10.0
libtpu: 0.0.40
codegen_flags: <defaults>
</compile_context>

<pallas_src>
import numpy as np

import jax
import jax.numpy as jnp
from jax.experimental import pallas as pl


# ---------------------------------------------------------------------------
# Fused kernel
# ---------------------------------------------------------------------------
def lenet_kernel(x_ref, w1e_ref, w1o_ref, w2e_ref, w2o_ref,
                 pe1_ref, po1_ref, pe2_ref, po2_ref, b1_ref, b2_ref,
                 fc1w_ref, fc1b_ref, fc2w_ref, fc2b_ref, fc3w_ref, fc3b_ref,
                 o_ref):
    f32 = jnp.float32
    bf16 = jnp.bfloat16
    batch = o_ref.shape[0]

    # ---- conv1: 5x5 valid conv, W-pooling folded into even/odd weights ----
    # x: (B*32, 32) bf16, row b*32 + r is image b, input row r.
    x = x_ref[...]
    n1 = x_ref.shape[0] - 4                       # B*32 - 4 usable output rows
    y1e = jnp.zeros((n1, 84), f32)
    y1o = jnp.zeros((n1, 84), f32)
    for kh in range(5):                           # 5 accumulated dots per parity
        xs = x[kh:kh + n1, :]                     # contiguous row (sublane) slice
        y1e = y1e + jnp.dot(xs, w1e_ref[kh], preferred_element_type=f32)
        y1o = y1o + jnp.dot(xs, w1o_ref[kh], preferred_element_type=f32)
    y1 = jnp.maximum(y1e, y1o).astype(bf16)       # max-pool along W

    # max-pool along H via 0/1 row-selection matmuls, then bias + ReLU once.
    p1 = jnp.maximum(jnp.dot(pe1_ref[...], y1, preferred_element_type=f32),
                     jnp.dot(po1_ref[...], y1, preferred_element_type=f32))
    a1 = jnp.maximum(p1 + b1_ref[...], 0.0).astype(bf16)   # (B*14, 84), [w*6+c]

    # ---- conv2: same structure (cin=6, cout=16) ----
    n2 = a1.shape[0] - 4                          # B*14 - 4 usable output rows
    y2e = jnp.zeros((n2, 80), f32)
    y2o = jnp.zeros((n2, 80), f32)
    for kh in range(5):
        a1s = a1[kh:kh + n2, :]
        y2e = y2e + jnp.dot(a1s, w2e_ref[kh], preferred_element_type=f32)
        y2o = y2o + jnp.dot(a1s, w2o_ref[kh], preferred_element_type=f32)
    y2 = jnp.maximum(y2e, y2o).astype(bf16)

    # H-pool + batch de-interleave + h-major reorder for fc1, all in one matmul.
    p2 = jnp.maximum(jnp.dot(pe2_ref[...], y2, preferred_element_type=f32),
                     jnp.dot(po2_ref[...], y2, preferred_element_type=f32))
    a2 = jnp.maximum(p2 + b2_ref[...], 0.0).astype(bf16)   # (5*B, 80), row h*B+b

    # ---- fc1: h folded into 5 accumulated dots (no flatten relayout) ----
    h1 = jnp.zeros((batch, 120), f32)
    for h in range(5):
        h1 = h1 + jnp.dot(a2[h * batch:(h + 1) * batch, :], fc1w_ref[h],
                          preferred_element_type=f32)
    h1 = jnp.maximum(h1 + fc1b_ref[...], 0.0).astype(bf16)

    # ---- fc2 -> fc3 ----
    h2 = jnp.maximum(
        jnp.dot(h1, fc2w_ref[...], preferred_element_type=f32) + fc2b_ref[...],
        0.0).astype(bf16)
    y = jnp.dot(h2, fc3w_ref[...], preferred_element_type=f32) + fc3b_ref[...]
    o_ref[...] = y.astype(o_ref.dtype)


# ---------------------------------------------------------------------------
# One-time host-side parameter preparation
# ---------------------------------------------------------------------------
def _conv_weight_kh(w, in_w, parity):
    """Per-kh conv-as-matmul weights for one pool parity along W.

    Returns (k, in_w*cin, pw_n*cout):
      W[kh, w_in*cin + ci, pw*cout + co] = w[co, ci, kh, w_in - (2*pw+parity)]
    (zero when the kw offset is out of the 5x5 window).
    """
    w = np.asarray(w, np.float32)
    cout, cin, k, _ = w.shape
    ow_n = in_w - k + 1
    pw_n = ow_n // 2
    out = np.zeros((k, in_w * cin, pw_n * cout), np.float32)
    for kh in range(k):
        for pw in range(pw_n):
            ow = 2 * pw + parity
            for kw in range(k):
                w_in = ow + kw
                out[kh, w_in * cin:(w_in + 1) * cin,
                    pw * cout:(pw + 1) * cout] = w[:, :, kh, kw].T
    return out


def _pool1_selectors(batch):
    """(B*14, B*32-4) 0/1 matrices selecting even/odd conv1 output rows."""
    n1 = batch * 32 - 4
    pe = np.zeros((batch * 14, n1), np.float32)
    po = np.zeros((batch * 14, n1), np.float32)
    for b in range(batch):
        for ph in range(14):
            pe[b * 14 + ph, b * 32 + 2 * ph] = 1.0
            po[b * 14 + ph, b * 32 + 2 * ph + 1] = 1.0
    return pe, po


def _pool2_selectors(batch):
    """(5*B, B*14-4) selectors: pool conv2 rows AND reorder output h-major."""
    n2 = batch * 14 - 4
    pe = np.zeros((5 * batch, n2), np.float32)
    po = np.zeros((5 * batch, n2), np.float32)
    for h in range(5):
        for b in range(batch):
            pe[h * batch + b, b * 14 + 2 * h] = 1.0
            po[h * batch + b, b * 14 + 2 * h + 1] = 1.0
    return pe, po


def prepare_params(params, batch):
    """Build all kernel-ready (expanded / permuted / bf16) weights once."""
    bf16 = jnp.bfloat16

    w1e = _conv_weight_kh(params["conv1_w"], in_w=32, parity=0)   # (5, 32, 84)
    w1o = _conv_weight_kh(params["conv1_w"], in_w=32, parity=1)
    w2e = _conv_weight_kh(params["conv2_w"], in_w=14, parity=0)   # (5, 84, 80)
    w2o = _conv_weight_kh(params["conv2_w"], in_w=14, parity=1)
    pe1, po1 = _pool1_selectors(batch)
    pe2, po2 = _pool2_selectors(batch)
    b1l = np.tile(np.asarray(params["conv1_b"], np.float32), 14).reshape(1, 84)
    b2l = np.tile(np.asarray(params["conv2_b"], np.float32), 5).reshape(1, 80)

    # fc1: torch flattens (c, h, w); kernel feeds h-major row blocks of (w, c).
    fc1w = np.asarray(params["fc1_w"], np.float32)                 # (120, 400)
    fc1w3 = np.zeros((5, 80, 120), np.float32)
    for h in range(5):
        for w in range(5):
            for c in range(16):
                fc1w3[h, w * 16 + c, :] = fc1w[:, c * 25 + h * 5 + w]

    return {
        "batch": batch,
        "w1e": jnp.asarray(w1e, bf16), "w1o": jnp.asarray(w1o, bf16),
        "w2e": jnp.asarray(w2e, bf16), "w2o": jnp.asarray(w2o, bf16),
        "pe1": jnp.asarray(pe1, bf16), "po1": jnp.asarray(po1, bf16),
        "pe2": jnp.asarray(pe2, bf16), "po2": jnp.asarray(po2, bf16),
        "b1l": jnp.asarray(b1l), "b2l": jnp.asarray(b2l),
        "fc1w": jnp.asarray(fc1w3, bf16),
        "fc1b": jnp.asarray(np.asarray(params["fc1_b"], np.float32).reshape(1, -1)),
        "fc2w": jnp.asarray(np.asarray(params["fc2_w"], np.float32).T, bf16),
        "fc2b": jnp.asarray(np.asarray(params["fc2_b"], np.float32).reshape(1, -1)),
        "fc3w": jnp.asarray(np.asarray(params["fc3_w"], np.float32).T, bf16),
        "fc3b": jnp.asarray(np.asarray(params["fc3_b"], np.float32).reshape(1, -1)),
    }


# ---------------------------------------------------------------------------
# Forward (single gridless pallas_call, everything resident in VMEM)
# ---------------------------------------------------------------------------
def lenet_forward(x, prep):
    b = x.shape[0]
    assert b == prep["batch"], "prepare_params() was built for a different batch"
    x2 = x.reshape(b * 32, 32).astype(jnp.bfloat16)   # batch folded into rows

    args = (x2, prep["w1e"], prep["w1o"], prep["w2e"], prep["w2o"],
            prep["pe1"], prep["po1"], prep["pe2"], prep["po2"],
            prep["b1l"], prep["b2l"],
            prep["fc1w"], prep["fc1b"], prep["fc2w"], prep["fc2b"],
            prep["fc3w"], prep["fc3b"])
    bytes_accessed = (sum(int(np.prod(a.shape)) * a.dtype.itemsize for a in args)
                      + b * 10 * 4)

    return pl.pallas_call(
        lenet_kernel,
        out_shape=jax.ShapeDtypeStruct((b, 10), jnp.float32),
        cost_estimate=pl.CostEstimate(flops=int(4_000_000 * b),
                                      transcendentals=0,
                                      bytes_accessed=int(bytes_accessed)),
    )(*args)


# ---------------------------------------------------------------------------
# Params + pure-JAX reference
# ---------------------------------------------------------------------------
def init_params(key):
    ks = jax.random.split(key, 10)
    f32 = jnp.float32
    return {
        "conv1_w": 0.1 * jax.random.normal(ks[0], (6, 1, 5, 5), f32),
        "conv1_b": 0.01 * jax.random.normal(ks[1], (6,), f32),
        "conv2_w": 0.1 * jax.random.normal(ks[2], (16, 6, 5, 5), f32),
        "conv2_b": 0.01 * jax.random.normal(ks[3], (16,), f32),
        "fc1_w": 0.05 * jax.random.normal(ks[4], (120, 400), f32),
        "fc1_b": 0.01 * jax.random.normal(ks[5], (120,), f32),
        "fc2_w": 0.05 * jax.random.normal(ks[6], (84, 120), f32),
        "fc2_b": 0.01 * jax.random.normal(ks[7], (84,), f32),
        "fc3_w": 0.05 * jax.random.normal(ks[8], (10, 84), f32),
        "fc3_b": 0.01 * jax.random.normal(ks[9], (10,), f32),
    }


def lenet_reference(x, params):
    def conv(x, w, b):
        y = jax.lax.conv_general_dilated(
            x, w, window_strides=(1, 1), padding="VALID",
            dimension_numbers=("NCHW", "OIHW", "NCHW"),
            precision=jax.lax.Precision.HIGHEST)
        return y + b.reshape(1, -1, 1, 1)

    def pool(x):
        return jax.lax.reduce_window(
            x, -jnp.inf, jax.lax.max,
            window_dimensions=(1, 1, 2, 2), window_strides=(1, 1, 2, 2),
            padding="VALID")

    x = pool(jnp.maximum(conv(x, params["conv1_w"], params["conv1_b"]), 0.0))
    x = pool(jnp.maximum(conv(x, params["conv2_w"], params["conv2_b"]), 0.0))
    x = x.reshape(x.shape[0], -1)
    x = jnp.maximum(x @ params["fc1_w"].T + params["fc1_b"], 0.0)
    x = jnp.maximum(x @ params["fc2_w"].T + params["fc2_b"], 0.0)
    return x @ params["fc3_w"].T + params["fc3_b"]


if __name__ == "__main__":
    key = jax.random.PRNGKey(0)
    k_x, k_p = jax.random.split(key)

    # LeNet expects 1x32x32 inputs; small batch of 2.
    x = jax.random.normal(k_x, (2, 1, 32, 32), jnp.float32)
    params = init_params(k_p)
    prep = prepare_params(params, batch=x.shape[0])   # one-time weight prep

    out = jax.block_until_ready(lenet_forward(x, prep))
    assert out.shape == (2, 10) and out.dtype == jnp.float32

    ref = jax.block_until_ready(lenet_reference(x, params))
    # bf16 weights/activations into the MXU (f32 accumulation) -> ~1e-2 level
    # deviation vs the f32 reference is expected; structural bugs would be O(0.1+).
    err = jnp.max(jnp.abs(out - ref))
    assert jnp.allclose(out, ref, rtol=5e-2, atol=3e-2), f"mismatch, max abs err={err}"

    print("KERNEL_OK")
</pallas_src>

<mosaic_0001>
module attributes {stable_mosaic.version = 11 : i64} {
  func.func @lenet_kernel(%arg0: memref<64x32xbf16, #tpu.memory_space<vmem>>, %arg1: memref<5x32x84xbf16, #tpu.memory_space<vmem>>, %arg2: memref<5x32x84xbf16, #tpu.memory_space<vmem>>, %arg3: memref<5x84x80xbf16, #tpu.memory_space<vmem>>, %arg4: memref<5x84x80xbf16, #tpu.memory_space<vmem>>, %arg5: memref<28x60xbf16, #tpu.memory_space<vmem>>, %arg6: memref<28x60xbf16, #tpu.memory_space<vmem>>, %arg7: memref<10x24xbf16, #tpu.memory_space<vmem>>, %arg8: memref<10x24xbf16, #tpu.memory_space<vmem>>, %arg9: memref<1x84xf32, #tpu.memory_space<vmem>>, %arg10: memref<1x80xf32, #tpu.memory_space<vmem>>, %arg11: memref<5x80x120xbf16, #tpu.memory_space<vmem>>, %arg12: memref<1x120xf32, #tpu.memory_space<vmem>>, %arg13: memref<120x84xbf16, #tpu.memory_space<vmem>>, %arg14: memref<1x84xf32, #tpu.memory_space<vmem>>, %arg15: memref<84x10xbf16, #tpu.memory_space<vmem>>, %arg16: memref<1x10xf32, #tpu.memory_space<vmem>>, %arg17: memref<2x10xf32, #tpu.memory_space<vmem>>) attributes {dimension_semantics = [], scalar_prefetch = 0 : i64, scratch_operands = 0 : i64, tpu.core_type = #tpu.core_type<tc>} {
    %c0 = arith.constant 0 : index
    %c0_0 = arith.constant 0 : index
    %0 = vector.load %arg0[%c0, %c0_0] : memref<64x32xbf16, #tpu.memory_space<vmem>>, vector<64x32xbf16>
    %cst = arith.constant 0.000000e+00 : f32
    %1 = vector.broadcast %cst : f32 to vector<60x84xf32>
    %cst_1 = arith.constant 0.000000e+00 : f32
    %2 = vector.broadcast %cst_1 : f32 to vector<60x84xf32>
    %3 = vector.extract_strided_slice %0 {offsets = [0, 0], sizes = [60, 32], strides = [1, 1]} : vector<64x32xbf16> to vector<60x32xbf16>
    %c0_2 = arith.constant 0 : index
    %c0_3 = arith.constant 0 : index
    %c0_4 = arith.constant 0 : index
    %4 = vector.load %arg1[%c0_2, %c0_3, %c0_4] : memref<5x32x84xbf16, #tpu.memory_space<vmem>>, vector<1x32x84xbf16>
    %5 = vector.shape_cast %4 : vector<1x32x84xbf16> to vector<32x84xbf16>
    %cst_5 = arith.constant dense<0.000000e+00> : vector<60x84xf32>
    %6 = tpu.matmul %3, %5, %cst_5 {dimension_numbers = #tpu.dot_dimension_numbers<[1], [0], [0], [1], [0, 0, 1, 1], [], []>} : vector<60x32xbf16>, vector<32x84xbf16>, vector<60x84xf32> -> vector<60x84xf32>
    %7 = arith.addf %1, %6 : vector<60x84xf32>
    %c0_6 = arith.constant 0 : index
    %c0_7 = arith.constant 0 : index
    %c0_8 = arith.constant 0 : index
    %8 = vector.load %arg2[%c0_6, %c0_7, %c0_8] : memref<5x32x84xbf16, #tpu.memory_space<vmem>>, vector<1x32x84xbf16>
    %9 = vector.shape_cast %8 : vector<1x32x84xbf16> to vector<32x84xbf16>
    %cst_9 = arith.constant dense<0.000000e+00> : vector<60x84xf32>
    %10 = tpu.matmul %3, %9, %cst_9 {dimension_numbers = #tpu.dot_dimension_numbers<[1], [0], [0], [1], [0, 0, 1, 1], [], []>} : vector<60x32xbf16>, vector<32x84xbf16>, vector<60x84xf32> -> vector<60x84xf32>
    %11 = arith.addf %2, %10 : vector<60x84xf32>
    %12 = vector.extract_strided_slice %0 {offsets = [1, 0], sizes = [60, 32], strides = [1, 1]} : vector<64x32xbf16> to vector<60x32xbf16>
    %c1 = arith.constant 1 : index
    %c0_10 = arith.constant 0 : index
    %c0_11 = arith.constant 0 : index
    %13 = vector.load %arg1[%c1, %c0_10, %c0_11] : memref<5x32x84xbf16, #tpu.memory_space<vmem>>, vector<1x32x84xbf16>
    %14 = vector.shape_cast %13 : vector<1x32x84xbf16> to vector<32x84xbf16>
    %cst_12 = arith.constant dense<0.000000e+00> : vector<60x84xf32>
    %15 = tpu.matmul %12, %14, %cst_12 {dimension_numbers = #tpu.dot_dimension_numbers<[1], [0], [0], [1], [0, 0, 1, 1], [], []>} : vector<60x32xbf16>, vector<32x84xbf16>, vector<60x84xf32> -> vector<60x84xf32>
    %16 = arith.addf %7, %15 : vector<60x84xf32>
    %c1_13 = arith.constant 1 : index
    %c0_14 = arith.constant 0 : index
    %c0_15 = arith.constant 0 : index
    %17 = vector.load %arg2[%c1_13, %c0_14, %c0_15] : memref<5x32x84xbf16, #tpu.memory_space<vmem>>, vector<1x32x84xbf16>
    %18 = vector.shape_cast %17 : vector<1x32x84xbf16> to vector<32x84xbf16>
    %cst_16 = arith.constant dense<0.000000e+00> : vector<60x84xf32>
    %19 = tpu.matmul %12, %18, %cst_16 {dimension_numbers = #tpu.dot_dimension_numbers<[1], [0], [0], [1], [0, 0, 1, 1], [], []>} : vector<60x32xbf16>, vector<32x84xbf16>, vector<60x84xf32> -> vector<60x84xf32>
    %20 = arith.addf %11, %19 : vector<60x84xf32>
    %21 = vector.extract_strided_slice %0 {offsets = [2, 0], sizes = [60, 32], strides = [1, 1]} : vector<64x32xbf16> to vector<60x32xbf16>
    %c2 = arith.constant 2 : index
    %c0_17 = arith.constant 0 : index
    %c0_18 = arith.constant 0 : index
    %22 = vector.load %arg1[%c2, %c0_17, %c0_18] : memref<5x32x84xbf16, #tpu.memory_space<vmem>>, vector<1x32x84xbf16>
    %23 = vector.shape_cast %22 : vector<1x32x84xbf16> to vector<32x84xbf16>
    %cst_19 = arith.constant dense<0.000000e+00> : vector<60x84xf32>
    %24 = tpu.matmul %21, %23, %cst_19 {dimension_numbers = #tpu.dot_dimension_numbers<[1], [0], [0], [1], [0, 0, 1, 1], [], []>} : vector<60x32xbf16>, vector<32x84xbf16>, vector<60x84xf32> -> vector<60x84xf32>
    %25 = arith.addf %16, %24 : vector<60x84xf32>
    %c2_20 = arith.constant 2 : index
    %c0_21 = arith.constant 0 : index
    %c0_22 = arith.constant 0 : index
    %26 = vector.load %arg2[%c2_20, %c0_21, %c0_22] : memref<5x32x84xbf16, #tpu.memory_space<vmem>>, vector<1x32x84xbf16>
    %27 = vector.shape_cast %26 : vector<1x32x84xbf16> to vector<32x84xbf16>
    %cst_23 = arith.constant dense<0.000000e+00> : vector<60x84xf32>
    %28 = tpu.matmul %21, %27, %cst_23 {dimension_numbers = #tpu.dot_dimension_numbers<[1], [0], [0], [1], [0, 0, 1, 1], [], []>} : vector<60x32xbf16>, vector<32x84xbf16>, vector<60x84xf32> -> vector<60x84xf32>
    %29 = arith.addf %20, %28 : vector<60x84xf32>
    %30 = vector.extract_strided_slice %0 {offsets = [3, 0], sizes = [60, 32], strides = [1, 1]} : vector<64x32xbf16> to vector<60x32xbf16>
    %c3 = arith.constant 3 : index
    %c0_24 = arith.constant 0 : index
    %c0_25 = arith.constant 0 : index
    %31 = vector.load %arg1[%c3, %c0_24, %c0_25] : memref<5x32x84xbf16, #tpu.memory_space<vmem>>, vector<1x32x84xbf16>
    %32 = vector.shape_cast %31 : vector<1x32x84xbf16> to vector<32x84xbf16>
    %cst_26 = arith.constant dense<0.000000e+00> : vector<60x84xf32>
    %33 = tpu.matmul %30, %32, %cst_26 {dimension_numbers = #tpu.dot_dimension_numbers<[1], [0], [0], [1], [0, 0, 1, 1], [], []>} : vector<60x32xbf16>, vector<32x84xbf16>, vector<60x84xf32> -> vector<60x84xf32>
    %34 = arith.addf %25, %33 : vector<60x84xf32>
    %c3_27 = arith.constant 3 : index
    %c0_28 = arith.constant 0 : index
    %c0_29 = arith.constant 0 : index
    %35 = vector.load %arg2[%c3_27, %c0_28, %c0_29] : memref<5x32x84xbf16, #tpu.memory_space<vmem>>, vector<1x32x84xbf16>
    %36 = vector.shape_cast %35 : vector<1x32x84xbf16> to vector<32x84xbf16>
    %cst_30 = arith.constant dense<0.000000e+00> : vector<60x84xf32>
    %37 = tpu.matmul %30, %36, %cst_30 {dimension_numbers = #tpu.dot_dimension_numbers<[1], [0], [0], [1], [0, 0, 1, 1], [], []>} : vector<60x32xbf16>, vector<32x84xbf16>, vector<60x84xf32> -> vector<60x84xf32>
    %38 = arith.addf %29, %37 : vector<60x84xf32>
    %39 = vector.extract_strided_slice %0 {offsets = [4, 0], sizes = [60, 32], strides = [1, 1]} : vector<64x32xbf16> to vector<60x32xbf16>
    %c4 = arith.constant 4 : index
    %c0_31 = arith.constant 0 : index
    %c0_32 = arith.constant 0 : index
    %40 = vector.load %arg1[%c4, %c0_31, %c0_32] : memref<5x32x84xbf16, #tpu.memory_space<vmem>>, vector<1x32x84xbf16>
    %41 = vector.shape_cast %40 : vector<1x32x84xbf16> to vector<32x84xbf16>
    %cst_33 = arith.constant dense<0.000000e+00> : vector<60x84xf32>
    %42 = tpu.matmul %39, %41, %cst_33 {dimension_numbers = #tpu.dot_dimension_numbers<[1], [0], [0], [1], [0, 0, 1, 1], [], []>} : vector<60x32xbf16>, vector<32x84xbf16>, vector<60x84xf32> -> vector<60x84xf32>
    %43 = arith.addf %34, %42 : vector<60x84xf32>
    %c4_34 = arith.constant 4 : index
    %c0_35 = arith.constant 0 : index
    %c0_36 = arith.constant 0 : index
    %44 = vector.load %arg2[%c4_34, %c0_35, %c0_36] : memref<5x32x84xbf16, #tpu.memory_space<vmem>>, vector<1x32x84xbf16>
    %45 = vector.shape_cast %44 : vector<1x32x84xbf16> to vector<32x84xbf16>
    %cst_37 = arith.constant dense<0.000000e+00> : vector<60x84xf32>
    %46 = tpu.matmul %39, %45, %cst_37 {dimension_numbers = #tpu.dot_dimension_numbers<[1], [0], [0], [1], [0, 0, 1, 1], [], []>} : vector<60x32xbf16>, vector<32x84xbf16>, vector<60x84xf32> -> vector<60x84xf32>
    %47 = arith.addf %38, %46 : vector<60x84xf32>
    %48 = arith.maximumf %43, %47 : vector<60x84xf32>
    %49 = arith.truncf %48 : vector<60x84xf32> to vector<60x84xbf16>
    %c0_38 = arith.constant 0 : index
    %c0_39 = arith.constant 0 : index
    %50 = vector.load %arg5[%c0_38, %c0_39] : memref<28x60xbf16, #tpu.memory_space<vmem>>, vector<28x60xbf16>
    %cst_40 = arith.constant dense<0.000000e+00> : vector<28x84xf32>
    %51 = tpu.matmul %50, %49, %cst_40 {dimension_numbers = #tpu.dot_dimension_numbers<[1], [0], [0], [1], [0, 0, 1, 1], [], []>} : vector<28x60xbf16>, vector<60x84xbf16>, vector<28x84xf32> -> vector<28x84xf32>
    %c0_41 = arith.constant 0 : index
    %c0_42 = arith.constant 0 : index
    %52 = vector.load %arg6[%c0_41, %c0_42] : memref<28x60xbf16, #tpu.memory_space<vmem>>, vector<28x60xbf16>
    %cst_43 = arith.constant dense<0.000000e+00> : vector<28x84xf32>
    %53 = tpu.matmul %52, %49, %cst_43 {dimension_numbers = #tpu.dot_dimension_numbers<[1], [0], [0], [1], [0, 0, 1, 1], [], []>} : vector<28x60xbf16>, vector<60x84xbf16>, vector<28x84xf32> -> vector<28x84xf32>
    %54 = arith.maximumf %51, %53 : vector<28x84xf32>
    %c0_44 = arith.constant 0 : index
    %c0_45 = arith.constant 0 : index
    %55 = vector.load %arg9[%c0_44, %c0_45] : memref<1x84xf32, #tpu.memory_space<vmem>>, vector<1x84xf32>
    %56 = vector.broadcast %55 : vector<1x84xf32> to vector<28x84xf32>
    %57 = arith.addf %54, %56 : vector<28x84xf32>
    %cst_46 = arith.constant 0.000000e+00 : f32
    %58 = vector.broadcast %cst_46 : f32 to vector<28x84xf32>
    %59 = arith.maximumf %57, %58 : vector<28x84xf32>
    %60 = arith.truncf %59 : vector<28x84xf32> to vector<28x84xbf16>
    %cst_47 = arith.constant 0.000000e+00 : f32
    %61 = vector.broadcast %cst_47 : f32 to vector<24x80xf32>
    %cst_48 = arith.constant 0.000000e+00 : f32
    %62 = vector.broadcast %cst_48 : f32 to vector<24x80xf32>
    %63 = vector.extract_strided_slice %60 {offsets = [0, 0], sizes = [24, 84], strides = [1, 1]} : vector<28x84xbf16> to vector<24x84xbf16>
    %c0_49 = arith.constant 0 : index
    %c0_50 = arith.constant 0 : index
    %c0_51 = arith.constant 0 : index
    %64 = vector.load %arg3[%c0_49, %c0_50, %c0_51] : memref<5x84x80xbf16, #tpu.memory_space<vmem>>, vector<1x84x80xbf16>
    %65 = vector.shape_cast %64 : vector<1x84x80xbf16> to vector<84x80xbf16>
    %cst_52 = arith.constant dense<0.000000e+00> : vector<24x80xf32>
    %66 = tpu.matmul %63, %65, %cst_52 {dimension_numbers = #tpu.dot_dimension_numbers<[1], [0], [0], [1], [0, 0, 1, 1], [], []>} : vector<24x84xbf16>, vector<84x80xbf16>, vector<24x80xf32> -> vector<24x80xf32>
    %67 = arith.addf %61, %66 : vector<24x80xf32>
    %c0_53 = arith.constant 0 : index
    %c0_54 = arith.constant 0 : index
    %c0_55 = arith.constant 0 : index
    %68 = vector.load %arg4[%c0_53, %c0_54, %c0_55] : memref<5x84x80xbf16, #tpu.memory_space<vmem>>, vector<1x84x80xbf16>
    %69 = vector.shape_cast %68 : vector<1x84x80xbf16> to vector<84x80xbf16>
    %cst_56 = arith.constant dense<0.000000e+00> : vector<24x80xf32>
    %70 = tpu.matmul %63, %69, %cst_56 {dimension_numbers = #tpu.dot_dimension_numbers<[1], [0], [0], [1], [0, 0, 1, 1], [], []>} : vector<24x84xbf16>, vector<84x80xbf16>, vector<24x80xf32> -> vector<24x80xf32>
    %71 = arith.addf %62, %70 : vector<24x80xf32>
    %72 = vector.extract_strided_slice %60 {offsets = [1, 0], sizes = [24, 84], strides = [1, 1]} : vector<28x84xbf16> to vector<24x84xbf16>
    %c1_57 = arith.constant 1 : index
    %c0_58 = arith.constant 0 : index
    %c0_59 = arith.constant 0 : index
    %73 = vector.load %arg3[%c1_57, %c0_58, %c0_59] : memref<5x84x80xbf16, #tpu.memory_space<vmem>>, vector<1x84x80xbf16>
    %74 = vector.shape_cast %73 : vector<1x84x80xbf16> to vector<84x80xbf16>
    %cst_60 = arith.constant dense<0.000000e+00> : vector<24x80xf32>
    %75 = tpu.matmul %72, %74, %cst_60 {dimension_numbers = #tpu.dot_dimension_numbers<[1], [0], [0], [1], [0, 0, 1, 1], [], []>} : vector<24x84xbf16>, vector<84x80xbf16>, vector<24x80xf32> -> vector<24x80xf32>
    %76 = arith.addf %67, %75 : vector<24x80xf32>
    %c1_61 = arith.constant 1 : index
    %c0_62 = arith.constant 0 : index
    %c0_63 = arith.constant 0 : index
    %77 = vector.load %arg4[%c1_61, %c0_62, %c0_63] : memref<5x84x80xbf16, #tpu.memory_space<vmem>>, vector<1x84x80xbf16>
    %78 = vector.shape_cast %77 : vector<1x84x80xbf16> to vector<84x80xbf16>
    %cst_64 = arith.constant dense<0.000000e+00> : vector<24x80xf32>
    %79 = tpu.matmul %72, %78, %cst_64 {dimension_numbers = #tpu.dot_dimension_numbers<[1], [0], [0], [1], [0, 0, 1, 1], [], []>} : vector<24x84xbf16>, vector<84x80xbf16>, vector<24x80xf32> -> vector<24x80xf32>
    %80 = arith.addf %71, %79 : vector<24x80xf32>
    %81 = vector.extract_strided_slice %60 {offsets = [2, 0], sizes = [24, 84], strides = [1, 1]} : vector<28x84xbf16> to vector<24x84xbf16>
    %c2_65 = arith.constant 2 : index
    %c0_66 = arith.constant 0 : index
    %c0_67 = arith.constant 0 : index
    %82 = vector.load %arg3[%c2_65, %c0_66, %c0_67] : memref<5x84x80xbf16, #tpu.memory_space<vmem>>, vector<1x84x80xbf16>
    %83 = vector.shape_cast %82 : vector<1x84x80xbf16> to vector<84x80xbf16>
    %cst_68 = arith.constant dense<0.000000e+00> : vector<24x80xf32>
    %84 = tpu.matmul %81, %83, %cst_68 {dimension_numbers = #tpu.dot_dimension_numbers<[1], [0], [0], [1], [0, 0, 1, 1], [], []>} : vector<24x84xbf16>, vector<84x80xbf16>, vector<24x80xf32> -> vector<24x80xf32>
    %85 = arith.addf %76, %84 : vector<24x80xf32>
    %c2_69 = arith.constant 2 : index
    %c0_70 = arith.constant 0 : index
    %c0_71 = arith.constant 0 : index
    %86 = vector.load %arg4[%c2_69, %c0_70, %c0_71] : memref<5x84x80xbf16, #tpu.memory_space<vmem>>, vector<1x84x80xbf16>
    %87 = vector.shape_cast %86 : vector<1x84x80xbf16> to vector<84x80xbf16>
    %cst_72 = arith.constant dense<0.000000e+00> : vector<24x80xf32>
    %88 = tpu.matmul %81, %87, %cst_72 {dimension_numbers = #tpu.dot_dimension_numbers<[1], [0], [0], [1], [0, 0, 1, 1], [], []>} : vector<24x84xbf16>, vector<84x80xbf16>, vector<24x80xf32> -> vector<24x80xf32>
    %89 = arith.addf %80, %88 : vector<24x80xf32>
    %90 = vector.extract_strided_slice %60 {offsets = [3, 0], sizes = [24, 84], strides = [1, 1]} : vector<28x84xbf16> to vector<24x84xbf16>
    %c3_73 = arith.constant 3 : index
    %c0_74 = arith.constant 0 : index
    %c0_75 = arith.constant 0 : index
    %91 = vector.load %arg3[%c3_73, %c0_74, %c0_75] : memref<5x84x80xbf16, #tpu.memory_space<vmem>>, vector<1x84x80xbf16>
    %92 = vector.shape_cast %91 : vector<1x84x80xbf16> to vector<84x80xbf16>
    %cst_76 = arith.constant dense<0.000000e+00> : vector<24x80xf32>
    %93 = tpu.matmul %90, %92, %cst_76 {dimension_numbers = #tpu.dot_dimension_numbers<[1], [0], [0], [1], [0, 0, 1, 1], [], []>} : vector<24x84xbf16>, vector<84x80xbf16>, vector<24x80xf32> -> vector<24x80xf32>
    %94 = arith.addf %85, %93 : vector<24x80xf32>
    %c3_77 = arith.constant 3 : index
    %c0_78 = arith.constant 0 : index
    %c0_79 = arith.constant 0 : index
    %95 = vector.load %arg4[%c3_77, %c0_78, %c0_79] : memref<5x84x80xbf16, #tpu.memory_space<vmem>>, vector<1x84x80xbf16>
    %96 = vector.shape_cast %95 : vector<1x84x80xbf16> to vector<84x80xbf16>
    %cst_80 = arith.constant dense<0.000000e+00> : vector<24x80xf32>
    %97 = tpu.matmul %90, %96, %cst_80 {dimension_numbers = #tpu.dot_dimension_numbers<[1], [0], [0], [1], [0, 0, 1, 1], [], []>} : vector<24x84xbf16>, vector<84x80xbf16>, vector<24x80xf32> -> vector<24x80xf32>
    %98 = arith.addf %89, %97 : vector<24x80xf32>
    %99 = vector.extract_strided_slice %60 {offsets = [4, 0], sizes = [24, 84], strides = [1, 1]} : vector<28x84xbf16> to vector<24x84xbf16>
    %c4_81 = arith.constant 4 : index
    %c0_82 = arith.constant 0 : index
    %c0_83 = arith.constant 0 : index
    %100 = vector.load %arg3[%c4_81, %c0_82, %c0_83] : memref<5x84x80xbf16, #tpu.memory_space<vmem>>, vector<1x84x80xbf16>
    %101 = vector.shape_cast %100 : vector<1x84x80xbf16> to vector<84x80xbf16>
    %cst_84 = arith.constant dense<0.000000e+00> : vector<24x80xf32>
    %102 = tpu.matmul %99, %101, %cst_84 {dimension_numbers = #tpu.dot_dimension_numbers<[1], [0], [0], [1], [0, 0, 1, 1], [], []>} : vector<24x84xbf16>, vector<84x80xbf16>, vector<24x80xf32> -> vector<24x80xf32>
    %103 = arith.addf %94, %102 : vector<24x80xf32>
    %c4_85 = arith.constant 4 : index
    %c0_86 = arith.constant 0 : index
    %c0_87 = arith.constant 0 : index
    %104 = vector.load %arg4[%c4_85, %c0_86, %c0_87] : memref<5x84x80xbf16, #tpu.memory_space<vmem>>, vector<1x84x80xbf16>
    %105 = vector.shape_cast %104 : vector<1x84x80xbf16> to vector<84x80xbf16>
    %cst_88 = arith.constant dense<0.000000e+00> : vector<24x80xf32>
    %106 = tpu.matmul %99, %105, %cst_88 {dimension_numbers = #tpu.dot_dimension_numbers<[1], [0], [0], [1], [0, 0, 1, 1], [], []>} : vector<24x84xbf16>, vector<84x80xbf16>, vector<24x80xf32> -> vector<24x80xf32>
    %107 = arith.addf %98, %106 : vector<24x80xf32>
    %108 = arith.maximumf %103, %107 : vector<24x80xf32>
    %109 = arith.truncf %108 : vector<24x80xf32> to vector<24x80xbf16>
    %c0_89 = arith.constant 0 : index
    %c0_90 = arith.constant 0 : index
    %110 = vector.load %arg7[%c0_89, %c0_90] : memref<10x24xbf16, #tpu.memory_space<vmem>>, vector<10x24xbf16>
    %cst_91 = arith.constant dense<0.000000e+00> : vector<10x80xf32>
    %111 = tpu.matmul %110, %109, %cst_91 {dimension_numbers = #tpu.dot_dimension_numbers<[1], [0], [0], [1], [0, 0, 1, 1], [], []>} : vector<10x24xbf16>, vector<24x80xbf16>, vector<10x80xf32> -> vector<10x80xf32>
    %c0_92 = arith.constant 0 : index
    %c0_93 = arith.constant 0 : index
    %112 = vector.load %arg8[%c0_92, %c0_93] : memref<10x24xbf16, #tpu.memory_space<vmem>>, vector<10x24xbf16>
    %cst_94 = arith.constant dense<0.000000e+00> : vector<10x80xf32>
    %113 = tpu.matmul %112, %109, %cst_94 {dimension_numbers = #tpu.dot_dimension_numbers<[1], [0], [0], [1], [0, 0, 1, 1], [], []>} : vector<10x24xbf16>, vector<24x80xbf16>, vector<10x80xf32> -> vector<10x80xf32>
    %114 = arith.maximumf %111, %113 : vector<10x80xf32>
    %c0_95 = arith.constant 0 : index
    %c0_96 = arith.constant 0 : index
    %115 = vector.load %arg10[%c0_95, %c0_96] : memref<1x80xf32, #tpu.memory_space<vmem>>, vector<1x80xf32>
    %116 = vector.broadcast %115 : vector<1x80xf32> to vector<10x80xf32>
    %117 = arith.addf %114, %116 : vector<10x80xf32>
    %cst_97 = arith.constant 0.000000e+00 : f32
    %118 = vector.broadcast %cst_97 : f32 to vector<10x80xf32>
    %119 = arith.maximumf %117, %118 : vector<10x80xf32>
    %120 = arith.truncf %119 : vector<10x80xf32> to vector<10x80xbf16>
    %cst_98 = arith.constant 0.000000e+00 : f32
    %121 = vector.broadcast %cst_98 : f32 to vector<2x120xf32>
    %122 = vector.extract_strided_slice %120 {offsets = [0, 0], sizes = [2, 80], strides = [1, 1]} : vector<10x80xbf16> to vector<2x80xbf16>
    %c0_99 = arith.constant 0 : index
    %c0_100 = arith.constant 0 : index
    %c0_101 = arith.constant 0 : index
    %123 = vector.load %arg11[%c0_99, %c0_100, %c0_101] : memref<5x80x120xbf16, #tpu.memory_space<vmem>>, vector<1x80x120xbf16>
    %124 = vector.shape_cast %123 : vector<1x80x120xbf16> to vector<80x120xbf16>
    %cst_102 = arith.constant dense<0.000000e+00> : vector<2x120xf32>
    %125 = tpu.matmul %122, %124, %cst_102 {dimension_numbers = #tpu.dot_dimension_numbers<[1], [0], [0], [1], [0, 0, 1, 1], [], []>} : vector<2x80xbf16>, vector<80x120xbf16>, vector<2x120xf32> -> vector<2x120xf32>
    %126 = arith.addf %121, %125 : vector<2x120xf32>
    %127 = vector.extract_strided_slice %120 {offsets = [2, 0], sizes = [2, 80], strides = [1, 1]} : vector<10x80xbf16> to vector<2x80xbf16>
    %c1_103 = arith.constant 1 : index
    %c0_104 = arith.constant 0 : index
    %c0_105 = arith.constant 0 : index
    %128 = vector.load %arg11[%c1_103, %c0_104, %c0_105] : memref<5x80x120xbf16, #tpu.memory_space<vmem>>, vector<1x80x120xbf16>
    %129 = vector.shape_cast %128 : vector<1x80x120xbf16> to vector<80x120xbf16>
    %cst_106 = arith.constant dense<0.000000e+00> : vector<2x120xf32>
    %130 = tpu.matmul %127, %129, %cst_106 {dimension_numbers = #tpu.dot_dimension_numbers<[1], [0], [0], [1], [0, 0, 1, 1], [], []>} : vector<2x80xbf16>, vector<80x120xbf16>, vector<2x120xf32> -> vector<2x120xf32>
    %131 = arith.addf %126, %130 : vector<2x120xf32>
    %132 = vector.extract_strided_slice %120 {offsets = [4, 0], sizes = [2, 80], strides = [1, 1]} : vector<10x80xbf16> to vector<2x80xbf16>
    %c2_107 = arith.constant 2 : index
    %c0_108 = arith.constant 0 : index
    %c0_109 = arith.constant 0 : index
    %133 = vector.load %arg11[%c2_107, %c0_108, %c0_109] : memref<5x80x120xbf16, #tpu.memory_space<vmem>>, vector<1x80x120xbf16>
    %134 = vector.shape_cast %133 : vector<1x80x120xbf16> to vector<80x120xbf16>
    %cst_110 = arith.constant dense<0.000000e+00> : vector<2x120xf32>
    %135 = tpu.matmul %132, %134, %cst_110 {dimension_numbers = #tpu.dot_dimension_numbers<[1], [0], [0], [1], [0, 0, 1, 1], [], []>} : vector<2x80xbf16>, vector<80x120xbf16>, vector<2x120xf32> -> vector<2x120xf32>
    %136 = arith.addf %131, %135 : vector<2x120xf32>
    %137 = vector.extract_strided_slice %120 {offsets = [6, 0], sizes = [2, 80], strides = [1, 1]} : vector<10x80xbf16> to vector<2x80xbf16>
    %c3_111 = arith.constant 3 : index
    %c0_112 = arith.constant 0 : index
    %c0_113 = arith.constant 0 : index
    %138 = vector.load %arg11[%c3_111, %c0_112, %c0_113] : memref<5x80x120xbf16, #tpu.memory_space<vmem>>, vector<1x80x120xbf16>
    %139 = vector.shape_cast %138 : vector<1x80x120xbf16> to vector<80x120xbf16>
    %cst_114 = arith.constant dense<0.000000e+00> : vector<2x120xf32>
    %140 = tpu.matmul %137, %139, %cst_114 {dimension_numbers = #tpu.dot_dimension_numbers<[1], [0], [0], [1], [0, 0, 1, 1], [], []>} : vector<2x80xbf16>, vector<80x120xbf16>, vector<2x120xf32> -> vector<2x120xf32>
    %141 = arith.addf %136, %140 : vector<2x120xf32>
    %142 = vector.extract_strided_slice %120 {offsets = [8, 0], sizes = [2, 80], strides = [1, 1]} : vector<10x80xbf16> to vector<2x80xbf16>
    %c4_115 = arith.constant 4 : index
    %c0_116 = arith.constant 0 : index
    %c0_117 = arith.constant 0 : index
    %143 = vector.load %arg11[%c4_115, %c0_116, %c0_117] : memref<5x80x120xbf16, #tpu.memory_space<vmem>>, vector<1x80x120xbf16>
    %144 = vector.shape_cast %143 : vector<1x80x120xbf16> to vector<80x120xbf16>
    %cst_118 = arith.constant dense<0.000000e+00> : vector<2x120xf32>
    %145 = tpu.matmul %142, %144, %cst_118 {dimension_numbers = #tpu.dot_dimension_numbers<[1], [0], [0], [1], [0, 0, 1, 1], [], []>} : vector<2x80xbf16>, vector<80x120xbf16>, vector<2x120xf32> -> vector<2x120xf32>
    %146 = arith.addf %141, %145 : vector<2x120xf32>
    %c0_119 = arith.constant 0 : index
    %c0_120 = arith.constant 0 : index
    %147 = vector.load %arg12[%c0_119, %c0_120] : memref<1x120xf32, #tpu.memory_space<vmem>>, vector<1x120xf32>
    %148 = vector.broadcast %147 : vector<1x120xf32> to vector<2x120xf32>
    %149 = arith.addf %146, %148 : vector<2x120xf32>
    %cst_121 = arith.constant 0.000000e+00 : f32
    %150 = vector.broadcast %cst_121 : f32 to vector<2x120xf32>
    %151 = arith.maximumf %149, %150 : vector<2x120xf32>
    %152 = arith.truncf %151 : vector<2x120xf32> to vector<2x120xbf16>
    %c0_122 = arith.constant 0 : index
    %c0_123 = arith.constant 0 : index
    %153 = vector.load %arg13[%c0_122, %c0_123] : memref<120x84xbf16, #tpu.memory_space<vmem>>, vector<120x84xbf16>
    %cst_124 = arith.constant dense<0.000000e+00> : vector<2x84xf32>
    %154 = tpu.matmul %152, %153, %cst_124 {dimension_numbers = #tpu.dot_dimension_numbers<[1], [0], [0], [1], [0, 0, 1, 1], [], []>} : vector<2x120xbf16>, vector<120x84xbf16>, vector<2x84xf32> -> vector<2x84xf32>
    %c0_125 = arith.constant 0 : index
    %c0_126 = arith.constant 0 : index
    %155 = vector.load %arg14[%c0_125, %c0_126] : memref<1x84xf32, #tpu.memory_space<vmem>>, vector<1x84xf32>
    %156 = vector.broadcast %155 : vector<1x84xf32> to vector<2x84xf32>
    %157 = arith.addf %154, %156 : vector<2x84xf32>
    %cst_127 = arith.constant 0.000000e+00 : f32
    %158 = vector.broadcast %cst_127 : f32 to vector<2x84xf32>
    %159 = arith.maximumf %157, %158 : vector<2x84xf32>
    %160 = arith.truncf %159 : vector<2x84xf32> to vector<2x84xbf16>
    %c0_128 = arith.constant 0 : index
    %c0_129 = arith.constant 0 : index
    %161 = vector.load %arg15[%c0_128, %c0_129] : memref<84x10xbf16, #tpu.memory_space<vmem>>, vector<84x10xbf16>
    %cst_130 = arith.constant dense<0.000000e+00> : vector<2x10xf32>
    %162 = tpu.matmul %160, %161, %cst_130 {dimension_numbers = #tpu.dot_dimension_numbers<[1], [0], [0], [1], [0, 0, 1, 1], [], []>} : vector<2x84xbf16>, vector<84x10xbf16>, vector<2x10xf32> -> vector<2x10xf32>
    %c0_131 = arith.constant 0 : index
    %c0_132 = arith.constant 0 : index
    %163 = vector.load %arg16[%c0_131, %c0_132] : memref<1x10xf32, #tpu.memory_space<vmem>>, vector<1x10xf32>
    %164 = vector.broadcast %163 : vector<1x10xf32> to vector<2x10xf32>
    %165 = arith.addf %162, %164 : vector<2x10xf32>
    %c0_133 = arith.constant 0 : index
    %c0_134 = arith.constant 0 : index
    %166 = vector.load %arg17[%c0_133, %c0_134] : memref<2x10xf32, #tpu.memory_space<vmem>>, vector<2x10xf32>
    tpu.vector_store %arg17[%c0_133, %c0_134], %165 {strides = array<i32>} : memref<2x10xf32, #tpu.memory_space<vmem>>, vector<2x10xf32>,
    return
  }
}

</mosaic_0001>

<llo_original>
// kernel: tpu_custom_call.1
$region0: #{tpu_custom_call.1}
  #allocation0 [shape = 'u32[]', space=smem, size = 0x4, offset = 0x4, fixed_abs, tag = 'smem constant byte address 0x4 - core index']
  #allocation1 [shape = 'u32[144,128]{1,0:T(1,128)}', space=vmem, size = 0x12000, scoped, tag = 'internal scratch']
  %s0 = inlined_call_operand.vmem [shape: bf16[64,32], index: 0, kind: input, shape index: {}]
  %s1 = inlined_call_operand.vmem [shape: bf16[5,32,84], index: 1, kind: input, shape index: {}]
  %s2 = inlined_call_operand.vmem [shape: bf16[5,32,84], index: 2, kind: input, shape index: {}]
  %s3 = inlined_call_operand.vmem [shape: bf16[5,84,80], index: 3, kind: input, shape index: {}]
  %s4 = inlined_call_operand.vmem [shape: bf16[5,84,80], index: 4, kind: input, shape index: {}]
  %s5 = inlined_call_operand.vmem [shape: bf16[28,60], index: 5, kind: input, shape index: {}]
  %s6 = inlined_call_operand.vmem [shape: bf16[28,60], index: 6, kind: input, shape index: {}]
  %s7 = inlined_call_operand.vmem [shape: bf16[10,24], index: 7, kind: input, shape index: {}]
  %s8 = inlined_call_operand.vmem [shape: bf16[10,24], index: 8, kind: input, shape index: {}]
  %s9 = inlined_call_operand.vmem [shape: f32[1,84], index: 9, kind: input, shape index: {}]
  %s10 = inlined_call_operand.vmem [shape: f32[1,80], index: 10, kind: input, shape index: {}]
  %s11 = inlined_call_operand.vmem [shape: bf16[5,80,120], index: 11, kind: input, shape index: {}]
  %s12 = inlined_call_operand.vmem [shape: f32[1,120], index: 12, kind: input, shape index: {}]
  %s13 = inlined_call_operand.vmem [shape: bf16[120,84], index: 13, kind: input, shape index: {}]
  %s14 = inlined_call_operand.vmem [shape: f32[1,84], index: 14, kind: input, shape index: {}]
  %s15 = inlined_call_operand.vmem [shape: bf16[84,10], index: 15, kind: input, shape index: {}]
  %s16 = inlined_call_operand.vmem [shape: f32[1,10], index: 16, kind: input, shape index: {}]
  %s17 = inlined_call_operand.hbm [shape: f32[2,10], index: 17, kind: output, shape index: {}]
  %s18 = sld [smem:[#allocation0]]
  $region78: #{tpu_custom_call.1} parent=0
    _
  %s20 = ssub.s32 1, %s18
  %s21 = scalar_select 0, %s20, %s18
  $region1: #{tpu_custom_call.1} parent=0
    #allocation2 [shape = 'u8[1024]{0}', space=vmem, size = 0x400, scoped, tag = 'output window, operand 0, single buffered']
    #allocation3 [shape = 's32[1]{0}', space=sflag, size = 0x4, scoped, tag = 'scoped memory for tpu_custom_call.1']
    %22 = vsyncpa [#allocation3], 0
    // Predicated region
    $region2: #{tpu_custom_call.1} parent=1 // pred_check
      _
    $region3: #{tpu_custom_call.1} parent=1 // pred_check_branch
      %24 = sbr.rel (0) target = $region5
    $region4: #{tpu_custom_call.1} parent=1 // pred_region
      _
    $region5: #{tpu_custom_call.1} parent=1 // pred_fallthru
      _
    // Predicated region
    $region6: #{tpu_custom_call.1} parent=1 // pred_check
      _
    $region7: #{tpu_custom_call.1} parent=1 // pred_check_branch
      %26 = sbr.rel (0) target = $region9
    $region8: #{tpu_custom_call.1} parent=1 // pred_region
      _
    $region9: #{tpu_custom_call.1} parent=1 // pred_fallthru
      _
    // Predicated region
    $region10: #{tpu_custom_call.1} parent=1 // pred_check
      _
    $region11: #{tpu_custom_call.1} parent=1 // pred_check_branch
      %28 = sbr.rel (0) target = $region13
    $region12: #{tpu_custom_call.1} parent=1 // pred_region
      _
    $region13: #{tpu_custom_call.1} parent=1 // pred_fallthru
      _
    // Predicated region
    $region14: #{tpu_custom_call.1} parent=1 // pred_check
      _
    $region15: #{tpu_custom_call.1} parent=1 // pred_check_branch
      %30 = sbr.rel (0) target = $region17
    $region16: #{tpu_custom_call.1} parent=1 // pred_region
      _
    $region17: #{tpu_custom_call.1} parent=1 // pred_fallthru
      _
    // Predicated region
    $region18: #{tpu_custom_call.1} parent=1 // pred_check
      _
    $region19: #{tpu_custom_call.1} parent=1 // pred_check_branch
      %32 = sbr.rel (0) target = $region21
    $region20: #{tpu_custom_call.1} parent=1 // pred_region
      _
    $region21: #{tpu_custom_call.1} parent=1 // pred_fallthru
      _
    // Predicated region
    $region22: #{tpu_custom_call.1} parent=1 // pred_check
      _
    $region23: #{tpu_custom_call.1} parent=1 // pred_check_branch
      %34 = sbr.rel (0) target = $region25
    $region24: #{tpu_custom_call.1} parent=1 // pred_region
      _
    $region25: #{tpu_custom_call.1} parent=1 // pred_fallthru
      _
    // Predicated region
    $region26: #{tpu_custom_call.1} parent=1 // pred_check
      _
    $region27: #{tpu_custom_call.1} parent=1 // pred_check_branch
      %36 = sbr.rel (0) target = $region29
    $region28: #{tpu_custom_call.1} parent=1 // pred_region
      _
    $region29: #{tpu_custom_call.1} parent=1 // pred_fallthru
      _
    // Predicated region
    $region30: #{tpu_custom_call.1} parent=1 // pred_check
      _
    $region31: #{tpu_custom_call.1} parent=1 // pred_check_branch
      %38 = sbr.rel (0) target = $region33
    $region32: #{tpu_custom_call.1} parent=1 // pred_region
      _
    $region33: #{tpu_custom_call.1} parent=1 // pred_fallthru
      _
    // Predicated region
    $region34: #{tpu_custom_call.1} parent=1 // pred_check
      _
    $region35: #{tpu_custom_call.1} parent=1 // pred_check_branch
      %40 = sbr.rel (0) target = $region37
    $region36: #{tpu_custom_call.1} parent=1 // pred_region
      _
    $region37: #{tpu_custom_call.1} parent=1 // pred_fallthru
      _
    // Predicated region
    $region38: #{tpu_custom_call.1} parent=1 // pred_check
      _
    $region39: #{tpu_custom_call.1} parent=1 // pred_check_branch
      %42 = sbr.rel (0) target = $region41
    $region40: #{tpu_custom_call.1} parent=1 // pred_region
      _
    $region41: #{tpu_custom_call.1} parent=1 // pred_fallthru
      _
    // Predicated region
    $region42: #{tpu_custom_call.1} parent=1 // pred_check
      _
    $region43: #{tpu_custom_call.1} parent=1 // pred_check_branch
      %44 = sbr.rel (0) target = $region45
    $region44: #{tpu_custom_call.1} parent=1 // pred_region
      _
    $region45: #{tpu_custom_call.1} parent=1 // pred_fallthru
      _
    // Predicated region
    $region46: #{tpu_custom_call.1} parent=1 // pred_check
      _
    $region47: #{tpu_custom_call.1} parent=1 // pred_check_branch
      %46 = sbr.rel (0) target = $region49
    $region48: #{tpu_custom_call.1} parent=1 // pred_region
      _
    $region49: #{tpu_custom_call.1} parent=1 // pred_fallthru
      _
    // Predicated region
    $region50: #{tpu_custom_call.1} parent=1 // pred_check
      _
    $region51: #{tpu_custom_call.1} parent=1 // pred_check_branch
      %48 = sbr.rel (0) target = $region53
    $region52: #{tpu_custom_call.1} parent=1 // pred_region
      _
    $region53: #{tpu_custom_call.1} parent=1 // pred_fallthru
      _
    // Predicated region
    $region54: #{tpu_custom_call.1} parent=1 // pred_check
      _
    $region55: #{tpu_custom_call.1} parent=1 // pred_check_branch
      %50 = sbr.rel (0) target = $region57
    $region56: #{tpu_custom_call.1} parent=1 // pred_region
      _
    $region57: #{tpu_custom_call.1} parent=1 // pred_fallthru
      _
    // Predicated region
    $region58: #{tpu_custom_call.1} parent=1 // pred_check
      _
    $region59: #{tpu_custom_call.1} parent=1 // pred_check_branch
      %52 = sbr.rel (0) target = $region61
    $region60: #{tpu_custom_call.1} parent=1 // pred_region
      _
    $region61: #{tpu_custom_call.1} parent=1 // pred_fallthru
      _
    // Predicated region
    $region62: #{tpu_custom_call.1} parent=1 // pred_check
      _
    $region63: #{tpu_custom_call.1} parent=1 // pred_check_branch
      %54 = sbr.rel (0) target = $region65
    $region64: #{tpu_custom_call.1} parent=1 // pred_region
      _
    $region65: #{tpu_custom_call.1} parent=1 // pred_fallthru
      _
    // Predicated region
    $region66: #{tpu_custom_call.1} parent=1 // pred_check
      _
    $region67: #{tpu_custom_call.1} parent=1 // pred_check_branch
      %56 = sbr.rel (0) target = $region69
    $region68: #{tpu_custom_call.1} parent=1 // pred_region
      _
    $region69: #{tpu_custom_call.1} parent=1 // pred_fallthru
      _
    %v58 = vld [vmem:[%s0] sm:$0xf]
    %v59 = vld [vmem:[%s0 + $0x4] sm:$0xf]
    %v60 = vld [vmem:[%s0 + $0x8] sm:$0xf]
    %v61 = vld [vmem:[%s0 + $0xc] sm:$0xf]
    %v62 = vld [vmem:[%s0 + $0x10] sm:$0xf]
    %v63 = vld [vmem:[%s0 + $0x14] sm:$0xf]
    %v64 = vld [vmem:[%s0 + $0x18] sm:$0xf]
    %v65 = vld [vmem:[%s0 + $0x1c] sm:$0xf]
    %v66 = vld [vmem:[%s1] sm:$0xf]
    %v67 = vld [vmem:[%s1 + $0x4] sm:$0xf]
    %v68 = vld [vmem:[%s1 + $0x8] sm:$0xf]
    %v69 = vld [vmem:[%s1 + $0xc] sm:$0xf]
    %v70 = vld [vmem:[%s2] sm:$0xf]
    %v71 = vld [vmem:[%s2 + $0x4] sm:$0xf]
    %v72 = vld [vmem:[%s2 + $0x8] sm:$0xf]
    %v73 = vld [vmem:[%s2 + $0xc] sm:$0xf]
    %s74 = scalar_lea.vmem %s1, 16
    %v75 = vld [vmem:[%s74] sm:$0xf]
    %v76 = vld [vmem:[%s74 + $0x4] sm:$0xf]
    %v77 = vld [vmem:[%s74 + $0x8] sm:$0xf]
    %v78 = vld [vmem:[%s74 + $0xc] sm:$0xf]
    %v87 = vunpack.c.l.b16 %v58
    %v88 = vunpack.c.l.b16 %v59
    %v89 = vunpack.c.l.b16 %v60
    %v90 = vunpack.c.l.b16 %v61
    %v91 = vunpack.c.l.b16 %v62
    %v92 = vunpack.c.l.b16 %v63
    %v93 = vunpack.c.l.b16 %v64
    %v94 = vunpack.c.l.b16 %v65
    %v95 = vpack.c.b16 %v88, %v87
    %v96 = vpack.c.b16 %v90, %v89
    %v97 = vpack.c.b16 %v92, %v91
    %v98 = vpack.c.b16 %v94, %v93
    %vm99 = vsmask.f32 7424
    %v101 = vshrl.u32 %v95, 16
    %v103 = vshll.u32 %v95, 16
    %v105 = vrot.slane %v103, 1
    %v106 = vor.u32 %v101, %v105
    %v108 = vshll.u32 %v96, 16
    %v110 = vrot.slane %v108, 1
    %v111 = vsel %vm99, %v106, %v110
    %v112 = vshrl.u32 %v96, 16
    %v114 = vor.u32 %v112, %v110
    %v116 = vshll.u32 %v97, 16
    %v118 = vrot.slane %v116, 1
    %v119 = vsel %vm99, %v114, %v118
    %v120 = vshrl.u32 %v97, 16
    %v122 = vor.u32 %v120, %v118
    %v124 = vshll.u32 %v98, 16
    %v126 = vrot.slane %v124, 1
    %v127 = vsel %vm99, %v122, %v126
    %v128 = vshrl.u32 %v98, 16
    %v130 = vor.u32 %v128, %v126
    %v135 = vunpack.c.l.b16 %v75
    %v136 = vunpack.c.l.b16 %v76
    %v137 = vunpack.c.l.b16 %v77
    %v138 = vunpack.c.l.b16 %v78
    %v139 = vpack.c.b16 %v136, %v135
    %v140 = vpack.c.b16 %v138, %v137
    %vm143 = vcmask 261120
    %v145 = vsel %vm143, %v111, 0
    %v148 = vsel %vm143, %v119, 0
    %v151 = vsel %vm143, %v127, 0
    %v154 = vsel %vm143, %v130, 0
    %156 = vmatprep.subr.bf16.mxu0 0
    %157 = vmatpush1.bf16.msra.mxu0 %v139
    %158 = vmatprep.subr.bf16.mxu0 0
    %159 = vmatpush1.bf16.msra.mxu0 %v140
    %160 = vmatprep.subr.bf16.mxu0 0
    %161 = vmatpush1.bf16.msra.mxu0 0
    %162 = vmatprep.subr.bf16.mxu0 0
    %163 = vmatpush1.bf16.msra.mxu0 0
    %164 = vmatprep.subr.bf16.mxu0 0
    %165 = vmatpush1.bf16.msra.mxu0 0
    %166 = vmatprep.subr.bf16.mxu0 0
    %167 = vmatpush1.bf16.msra.mxu0 0
    %168 = vmatprep.subr.bf16.mxu0 0
    %169 = vmatpush1.bf16.msra.mxu0 0
    %170 = vmatprep.subr.bf16.mxu0 0
    %171 = vmatpush1.bf16.msra.mxu0 0
    %172 = vmatprep.subr.bf16.mxu0 0
    %173 = vmatpush1.bf16.msra.mxu0 0
    %174 = vmatprep.subr.bf16.mxu0 0
    %175 = vmatpush1.bf16.msra.mxu0 0
    %176 = vmatprep.subr.bf16.mxu0 0
    %177 = vmatpush1.bf16.msra.mxu0 0
    %178 = vmatprep.subr.bf16.mxu0 0
    %179 = vmatpush1.bf16.msra.mxu0 0
    %180 = vmatprep.subr.bf16.mxu0 0
    %181 = vmatpush1.bf16.msra.mxu0 0
    %182 = vmatprep.subr.bf16.mxu0 0
    %183 = vmatpush1.bf16.msra.mxu0 0
    %184 = vmatprep.subr.bf16.mxu0 0
    %185 = vmatpush1.bf16.msra.mxu0 0
    %186 = vmatprep.subr.bf16.mxu0 0
    %187 = vmatpush1.bf16.msra.mxu0 0
    %188 = vmatprep.mubr.bf16.mxu0 0
    %189 = vmatmul.mubr.bf16.gmra.mrb[0].mxu0 %v145
    %v190 = vpop.f32.mrb[0].mxu0
    %v191 = vadd.f32 0.0, %v190
    %v192 = vpop.f32.mrb[0].mxu0
    %v193 = vpop.f32.mrb[0].mxu0
    %v194 = vadd.f32 0.0, %v193
    %v195 = vpop.f32.mrb[0].mxu0
    %196 = vmatprep.mubr.bf16.mxu0 0
    %197 = vmatmul.mubr.bf16.gmra.mrb[0].mxu0 %v148
    %v198 = vpop.f32.mrb[0].mxu0
    %v199 = vadd.f32 0.0, %v198
    %v200 = vpop.f32.mrb[0].mxu0
    %v201 = vpop.f32.mrb[0].mxu0
    %v202 = vadd.f32 0.0, %v201
    %v203 = vpop.f32.mrb[0].mxu0
    %204 = vmatprep.mubr.bf16.mxu0 0
    %205 = vmatmul.mubr.bf16.gmra.mrb[0].mxu0 %v151
    %v206 = vpop.f32.mrb[0].mxu0
    %v207 = vadd.f32 0.0, %v206
    %v208 = vpop.f32.mrb[0].mxu0
    %v209 = vpop.f32.mrb[0].mxu0
    %v210 = vadd.f32 0.0, %v209
    %v211 = vpop.f32.mrb[0].mxu0
    %212 = vmatprep.mubr.bf16.mxu0 0
    %213 = vmatmul.mubr.bf16.gmra.mrb[0].mxu0 %v154
    %v214 = vpop.f32.mrb[0].mxu0
    %v215 = vadd.f32 0.0, %v214
    %v216 = vpop.f32.mrb[0].mxu0
    %v217 = vpop.f32.mrb[0].mxu0
    %v218 = vadd.f32 0.0, %v217
    %v219 = vpop.f32.mrb[0].mxu0
    %220 = vdwg.mxu0
    %v225 = vunpack.c.l.b16 %v66
    %v226 = vunpack.c.l.b16 %v67
    %v227 = vunpack.c.l.b16 %v68
    %v228 = vunpack.c.l.b16 %v69
    %v229 = vpack.c.b16 %v226, %v225
    %v230 = vpack.c.b16 %v228, %v227
    %v233 = vsel %vm143, %v95, 0
    %v235 = vsel %vm143, %v96, 0
    %v237 = vsel %vm143, %v97, 0
    %v239 = vsel %vm143, %v98, 0
    %241 = vmatprep.subr.bf16.mxu0 0
    %242 = vmatpush1.bf16.msra.mxu0 %v229
    %243 = vmatprep.subr.bf16.mxu0 0
    %244 = vmatpush1.bf16.msra.mxu0 %v230
    %245 = vmatprep.subr.bf16.mxu0 0
    %246 = vmatpush1.bf16.msra.mxu0 0
    %247 = vmatprep.subr.bf16.mxu0 0
    %248 = vmatpush1.bf16.msra.mxu0 0
    %249 = vmatprep.subr.bf16.mxu0 0
    %250 = vmatpush1.bf16.msra.mxu0 0
    %251 = vmatprep.subr.bf16.mxu0 0
    %252 = vmatpush1.bf16.msra.mxu0 0
    %253 = vmatprep.subr.bf16.mxu0 0
    %254 = vmatpush1.bf16.msra.mxu0 0
    %255 = vmatprep.subr.bf16.mxu0 0
    %256 = vmatpush1.bf16.msra.mxu0 0
    %257 = vmatprep.subr.bf16.mxu0 0
    %258 = vmatpush1.bf16.msra.mxu0 0
    %259 = vmatprep.subr.bf16.mxu0 0
    %260 = vmatpush1.bf16.msra.mxu0 0
    %261 = vmatprep.subr.bf16.mxu0 0
    %262 = vmatpush1.bf16.msra.mxu0 0
    %263 = vmatprep.subr.bf16.mxu0 0
    %264 = vmatpush1.bf16.msra.mxu0 0
    %265 = vmatprep.subr.bf16.mxu0 0
    %266 = vmatpush1.bf16.msra.mxu0 0
    %267 = vmatprep.subr.bf16.mxu0 0
    %268 = vmatpush1.bf16.msra.mxu0 0
    %269 = vmatprep.subr.bf16.mxu0 0
    %270 = vmatpush1.bf16.msra.mxu0 0
    %271 = vmatprep.subr.bf16.mxu0 0
    %272 = vmatpush1.bf16.msra.mxu0 0
    %273 = vmatprep.mubr.bf16.mxu0 0
    %274 = vmatmul.mubr.bf16.gmra.mrb[0].mxu0 %v233
    %v275 = vpop.f32.mrb[0].mxu0
    %v276 = vadd.f32 %v191, %v275
    %v277 = vpop.f32.mrb[0].mxu0
    %v278 = vpop.f32.mrb[0].mxu0
    %v279 = vadd.f32 %v194, %v278
    %v280 = vpop.f32.mrb[0].mxu0
    %281 = vmatprep.mubr.bf16.mxu0 0
    %282 = vmatmul.mubr.bf16.gmra.mrb[0].mxu0 %v235
    %v283 = vpop.f32.mrb[0].mxu0
    %v284 = vadd.f32 %v199, %v283
    %v285 = vpop.f32.mrb[0].mxu0
    %v286 = vpop.f32.mrb[0].mxu0
    %v287 = vadd.f32 %v202, %v286
    %v288 = vpop.f32.mrb[0].mxu0
    %289 = vmatprep.mubr.bf16.mxu0 0
    %290 = vmatmul.mubr.bf16.gmra.mrb[0].mxu0 %v237
    %v291 = vpop.f32.mrb[0].mxu0
    %v292 = vadd.f32 %v207, %v291
    %v293 = vpop.f32.mrb[0].mxu0
    %v294 = vpop.f32.mrb[0].mxu0
    %v295 = vadd.f32 %v210, %v294
    %v296 = vpop.f32.mrb[0].mxu0
    %297 = vmatprep.mubr.bf16.mxu0 0
    %298 = vmatmul.mubr.bf16.gmra.mrb[0].mxu0 %v239
    %v299 = vpop.f32.mrb[0].mxu0
    %v300 = vadd.f32 %v215, %v299
    %v301 = vpop.f32.mrb[0].mxu0
    %v302 = vpop.f32.mrb[0].mxu0
    %v303 = vadd.f32 %v218, %v302
    %v304 = vpop.f32.mrb[0].mxu0
    %305 = vdwg.mxu0
    %s306 = scalar_lea.vmem %s2, 16
    %v307 = vld [vmem:[%s306] sm:$0xf]
    %v308 = vld [vmem:[%s306 + $0x4] sm:$0xf]
    %v309 = vld [vmem:[%s306 + $0x8] sm:$0xf]
    %v310 = vld [vmem:[%s306 + $0xc] sm:$0xf]
    %v315 = vunpack.c.l.b16 %v307
    %v316 = vunpack.c.l.b16 %v308
    %v317 = vunpack.c.l.b16 %v309
    %v318 = vunpack.c.l.b16 %v310
    %v319 = vpack.c.b16 %v316, %v315
    %v320 = vpack.c.b16 %v318, %v317
    %323 = vmatprep.subr.bf16.mxu0 0
    %324 = vmatpush1.bf16.msra.mxu0 %v319
    %325 = vmatprep.subr.bf16.mxu0 0
    %326 = vmatpush1.bf16.msra.mxu0 %v320
    %327 = vmatprep.subr.bf16.mxu0 0
    %328 = vmatpush1.bf16.msra.mxu0 0
    %329 = vmatprep.subr.bf16.mxu0 0
    %330 = vmatpush1.bf16.msra.mxu0 0
    %331 = vmatprep.subr.bf16.mxu0 0
    %332 = vmatpush1.bf16.msra.mxu0 0
    %333 = vmatprep.subr.bf16.mxu0 0
    %334 = vmatpush1.bf16.msra.mxu0 0
    %335 = vmatprep.subr.bf16.mxu0 0
    %336 = vmatpush1.bf16.msra.mxu0 0
    %337 = vmatprep.subr.bf16.mxu0 0
    %338 = vmatpush1.bf16.msra.mxu0 0
    %339 = vmatprep.subr.bf16.mxu0 0
    %340 = vmatpush1.bf16.msra.mxu0 0
    %341 = vmatprep.subr.bf16.mxu0 0
    %342 = vmatpush1.bf16.msra.mxu0 0
    %343 = vmatprep.subr.bf16.mxu0 0
    %344 = vmatpush1.bf16.msra.mxu0 0
    %345 = vmatprep.subr.bf16.mxu0 0
    %346 = vmatpush1.bf16.msra.mxu0 0
    %347 = vmatprep.subr.bf16.mxu0 0
    %348 = vmatpush1.bf16.msra.mxu0 0
    %349 = vmatprep.subr.bf16.mxu0 0
    %350 = vmatpush1.bf16.msra.mxu0 0
    %351 = vmatprep.subr.bf16.mxu0 0
    %352 = vmatpush1.bf16.msra.mxu0 0
    %353 = vmatprep.subr.bf16.mxu0 0
    %354 = vmatpush1.bf16.msra.mxu0 0
    %355 = vmatprep.mubr.bf16.mxu0 0
    %356 = vmatmul.mubr.bf16.gmra.mrb[0].mxu0 %v145
    %v357 = vpop.f32.mrb[0].mxu0
    %v358 = vadd.f32 0.0, %v357
    %v359 = vpop.f32.mrb[0].mxu0
    %v360 = vpop.f32.mrb[0].mxu0
    %v361 = vadd.f32 0.0, %v360
    %v362 = vpop.f32.mrb[0].mxu0
    %363 = vmatprep.mubr.bf16.mxu0 0
    %364 = vmatmul.mubr.bf16.gmra.mrb[0].mxu0 %v148
    %v365 = vpop.f32.mrb[0].mxu0
    %v366 = vadd.f32 0.0, %v365
    %v367 = vpop.f32.mrb[0].mxu0
    %v368 = vpop.f32.mrb[0].mxu0
    %v369 = vadd.f32 0.0, %v368
    %v370 = vpop.f32.mrb[0].mxu0
    %371 = vmatprep.mubr.bf16.mxu0 0
    %372 = vmatmul.mubr.bf16.gmra.mrb[0].mxu0 %v151
    %v373 = vpop.f32.mrb[0].mxu0
    %v374 = vadd.f32 0.0, %v373
    %v375 = vpop.f32.mrb[0].mxu0
    %v376 = vpop.f32.mrb[0].mxu0
    %v377 = vadd.f32 0.0, %v376
    %v378 = vpop.f32.mrb[0].mxu0
    %379 = vmatprep.mubr.bf16.mxu0 0
    %380 = vmatmul.mubr.bf16.gmra.mrb[0].mxu0 %v154
    %v381 = vpop.f32.mrb[0].mxu0
    %v382 = vadd.f32 0.0, %v381
    %v383 = vpop.f32.mrb[0].mxu0
    %v384 = vpop.f32.mrb[0].mxu0
    %v385 = vadd.f32 0.0, %v384
    %v386 = vpop.f32.mrb[0].mxu0
    %387 = vdwg.mxu0
    %v392 = vunpack.c.l.b16 %v70
    %v393 = vunpack.c.l.b16 %v71
    %v394 = vunpack.c.l.b16 %v72
    %v395 = vunpack.c.l.b16 %v73
    %v396 = vpack.c.b16 %v393, %v392
    %v397 = vpack.c.b16 %v395, %v394
    %400 = vmatprep.subr.bf16.mxu0 0
    %401 = vmatpush1.bf16.msra.mxu0 %v396
    %402 = vmatprep.subr.bf16.mxu0 0
    %403 = vmatpush1.bf16.msra.mxu0 %v397
    %404 = vmatprep.subr.bf16.mxu0 0
    %405 = vmatpush1.bf16.msra.mxu0 0
    %406 = vmatprep.subr.bf16.mxu0 0
    %407 = vmatpush1.bf16.msra.mxu0 0
    %408 = vmatprep.subr.bf16.mxu0 0
    %409 = vmatpush1.bf16.msra.mxu0 0
    %410 = vmatprep.subr.bf16.mxu0 0
    %411 = vmatpush1.bf16.msra.mxu0 0
    %412 = vmatprep.subr.bf16.mxu0 0
    %413 = vmatpush1.bf16.msra.mxu0 0
    %414 = vmatprep.subr.bf16.mxu0 0
    %415 = vmatpush1.bf16.msra.mxu0 0
    %416 = vmatprep.subr.bf16.mxu0 0
    %417 = vmatpush1.bf16.msra.mxu0 0
    %418 = vmatprep.subr.bf16.mxu0 0
    %419 = vmatpush1.bf16.msra.mxu0 0
    %420 = vmatprep.subr.bf16.mxu0 0
    %421 = vmatpush1.bf16.msra.mxu0 0
    %422 = vmatprep.subr.bf16.mxu0 0
    %423 = vmatpush1.bf16.msra.mxu0 0
    %424 = vmatprep.subr.bf16.mxu0 0
    %425 = vmatpush1.bf16.msra.mxu0 0
    %426 = vmatprep.subr.bf16.mxu0 0
    %427 = vmatpush1.bf16.msra.mxu0 0
    %428 = vmatprep.subr.bf16.mxu0 0
    %429 = vmatpush1.bf16.msra.mxu0 0
    %430 = vmatprep.subr.bf16.mxu0 0
    %431 = vmatpush1.bf16.msra.mxu0 0
    %432 = vmatprep.mubr.bf16.mxu0 0
    %433 = vmatmul.mubr.bf16.gmra.mrb[0].mxu0 %v233
    %v434 = vpop.f32.mrb[0].mxu0
    %v435 = vadd.f32 %v358, %v434
    %v436 = vpop.f32.mrb[0].mxu0
    %v437 = vpop.f32.mrb[0].mxu0
    %v438 = vadd.f32 %v361, %v437
    %v439 = vpop.f32.mrb[0].mxu0
    %440 = vmatprep.mubr.bf16.mxu0 0
    %441 = vmatmul.mubr.bf16.gmra.mrb[0].mxu0 %v235
    %v442 = vpop.f32.mrb[0].mxu0
    %v443 = vadd.f32 %v366, %v442
    %v444 = vpop.f32.mrb[0].mxu0
    %v445 = vpop.f32.mrb[0].mxu0
    %v446 = vadd.f32 %v369, %v445
    %v447 = vpop.f32.mrb[0].mxu0
    %448 = vmatprep.mubr.bf16.mxu0 0
    %449 = vmatmul.mubr.bf16.gmra.mrb[0].mxu0 %v237
    %v450 = vpop.f32.mrb[0].mxu0
    %v451 = vadd.f32 %v374, %v450
    %v452 = vpop.f32.mrb[0].mxu0
    %v453 = vpop.f32.mrb[0].mxu0
    %v454 = vadd.f32 %v377, %v453
    %v455 = vpop.f32.mrb[0].mxu0
    %456 = vmatprep.mubr.bf16.mxu0 0
    %457 = vmatmul.mubr.bf16.gmra.mrb[0].mxu0 %v239
    %v458 = vpop.f32.mrb[0].mxu0
    %v459 = vadd.f32 %v382, %v458
    %v460 = vpop.f32.mrb[0].mxu0
    %v461 = vpop.f32.mrb[0].mxu0
    %v462 = vadd.f32 %v385, %v461
    %v463 = vpop.f32.mrb[0].mxu0
    %464 = vdwg.mxu0
    %s465 = scalar_lea.vmem %s1, 32
    %v466 = vld [vmem:[%s465] sm:$0xf]
    %v467 = vld [vmem:[%s465 + $0x4] sm:$0xf]
    %v468 = vld [vmem:[%s465 + $0x8] sm:$0xf]
    %v469 = vld [vmem:[%s465 + $0xc] sm:$0xf]
    %vm470 = vcmask 1046528
    %v471 = vrot.slane %v95, 1
    %v472 = vrot.slane %v96, 1
    %v473 = vsel %vm470, %v471, %v472
    %v474 = vrot.slane %v97, 1
    %v475 = vsel %vm470, %v472, %v474
    %v476 = vrot.slane %v98, 1
    %v477 = vsel %vm470, %v474, %v476
    %v482 = vunpack.c.l.b16 %v466
    %v483 = vunpack.c.l.b16 %v467
    %v484 = vunpack.c.l.b16 %v468
    %v485 = vunpack.c.l.b16 %v469
    %v486 = vpack.c.b16 %v483, %v482
    %v487 = vpack.c.b16 %v485, %v484
    %v491 = vsel %vm143, %v473, 0
    %v494 = vsel %vm143, %v475, 0
    %v497 = vsel %vm143, %v477, 0
    %v500 = vsel %vm143, %v476, 0
    %502 = vmatprep.subr.bf16.mxu0 0
    %503 = vmatpush1.bf16.msra.mxu0 %v486
    %504 = vmatprep.subr.bf16.mxu0 0
    %505 = vmatpush1.bf16.msra.mxu0 %v487
    %506 = vmatprep.subr.bf16.mxu0 0
    %507 = vmatpush1.bf16.msra.mxu0 0
    %508 = vmatprep.subr.bf16.mxu0 0
    %509 = vmatpush1.bf16.msra.mxu0 0
    %510 = vmatprep.subr.bf16.mxu0 0
    %511 = vmatpush1.bf16.msra.mxu0 0
    %512 = vmatprep.subr.bf16.mxu0 0
    %513 = vmatpush1.bf16.msra.mxu0 0
    %514 = vmatprep.subr.bf16.mxu0 0
    %515 = vmatpush1.bf16.msra.mxu0 0
    %516 = vmatprep.subr.bf16.mxu0 0
    %517 = vmatpush1.bf16.msra.mxu0 0
    %518 = vmatprep.subr.bf16.mxu0 0
    %519 = vmatpush1.bf16.msra.mxu0 0
    %520 = vmatprep.subr.bf16.mxu0 0
    %521 = vmatpush1.bf16.msra.mxu0 0
    %522 = vmatprep.subr.bf16.mxu0 0
    %523 = vmatpush1.bf16.msra.mxu0 0
    %524 = vmatprep.subr.bf16.mxu0 0
    %525 = vmatpush1.bf16.msra.mxu0 0
    %526 = vmatprep.subr.bf16.mxu0 0
    %527 = vmatpush1.bf16.msra.mxu0 0
    %528 = vmatprep.subr.bf16.mxu0 0
    %529 = vmatpush1.bf16.msra.mxu0 0
    %530 = vmatprep.subr.bf16.mxu0 0
    %531 = vmatpush1.bf16.msra.mxu0 0
    %532 = vmatprep.subr.bf16.mxu0 0
    %533 = vmatpush1.bf16.msra.mxu0 0
    %534 = vmatprep.mubr.bf16.mxu0 0
    %535 = vmatmul.mubr.bf16.gmra.mrb[0].mxu0 %v491
    %v536 = vpop.f32.mrb[0].mxu0
    %v537 = vadd.f32 0.0, %v536
    %v538 = vpop.f32.mrb[0].mxu0
    %v539 = vpop.f32.mrb[0].mxu0
    %v540 = vadd.f32 0.0, %v539
    %v541 = vpop.f32.mrb[0].mxu0
    %542 = vmatprep.mubr.bf16.mxu0 0
    %543 = vmatmul.mubr.bf16.gmra.mrb[0].mxu0 %v494
    %v544 = vpop.f32.mrb[0].mxu0
    %v545 = vadd.f32 0.0, %v544
    %v546 = vpop.f32.mrb[0].mxu0
    %v547 = vpop.f32.mrb[0].mxu0
    %v548 = vadd.f32 0.0, %v547
    %v549 = vpop.f32.mrb[0].mxu0
    %550 = vmatprep.mubr.bf16.mxu0 0
    %551 = vmatmul.mubr.bf16.gmra.mrb[0].mxu0 %v497
    %v552 = vpop.f32.mrb[0].mxu0
    %v553 = vadd.f32 0.0, %v552
    %v554 = vpop.f32.mrb[0].mxu0
    %v555 = vpop.f32.mrb[0].mxu0
    %v556 = vadd.f32 0.0, %v555
    %v557 = vpop.f32.mrb[0].mxu0
    %558 = vmatprep.mubr.bf16.mxu0 0
    %559 = vmatmul.mubr.bf16.gmra.mrb[0].mxu0 %v500
    %v560 = vpop.f32.mrb[0].mxu0
    %v561 = vadd.f32 0.0, %v560
    %v562 = vpop.f32.mrb[0].mxu0
    %v563 = vpop.f32.mrb[0].mxu0
    %v564 = vadd.f32 0.0, %v563
    %v565 = vpop.f32.mrb[0].mxu0
    %566 = vdwg.mxu0
    %v567 = vadd.f32 %v276, %v537
    %v568 = vadd.f32 %v279, %v540
    %v569 = vadd.f32 %v284, %v545
    %v570 = vadd.f32 %v287, %v548
    %v571 = vadd.f32 %v292, %v553
    %v572 = vadd.f32 %v295, %v556
    %v573 = vadd.f32 %v300, %v561
    %v574 = vadd.f32 %v303, %v564
    %s575 = scalar_lea.vmem %s2, 32
    %v576 = vld [vmem:[%s575] sm:$0xf]
    %v577 = vld [vmem:[%s575 + $0x4] sm:$0xf]
    %v578 = vld [vmem:[%s575 + $0x8] sm:$0xf]
    %v579 = vld [vmem:[%s575 + $0xc] sm:$0xf]
    %v584 = vunpack.c.l.b16 %v576
    %v585 = vunpack.c.l.b16 %v577
    %v586 = vunpack.c.l.b16 %v578
    %v587 = vunpack.c.l.b16 %v579
    %v588 = vpack.c.b16 %v585, %v584
    %v589 = vpack.c.b16 %v587, %v586
    %592 = vmatprep.subr.bf16.mxu0 0
    %593 = vmatpush1.bf16.msra.mxu0 %v588
    %594 = vmatprep.subr.bf16.mxu0 0
    %595 = vmatpush1.bf16.msra.mxu0 %v589
    %596 = vmatprep.subr.bf16.mxu0 0
    %597 = vmatpush1.bf16.msra.mxu0 0
    %598 = vmatprep.subr.bf16.mxu0 0
    %599 = vmatpush1.bf16.msra.mxu0 0
    %600 = vmatprep.subr.bf16.mxu0 0
    %601 = vmatpush1.bf16.msra.mxu0 0
    %602 = vmatprep.subr.bf16.mxu0 0
    %603 = vmatpush1.bf16.msra.mxu0 0
    %604 = vmatprep.subr.bf16.mxu0 0
    %605 = vmatpush1.bf16.msra.mxu0 0
    %606 = vmatprep.subr.bf16.mxu0 0
    %607 = vmatpush1.bf16.msra.mxu0 0
    %608 = vmatprep.subr.bf16.mxu0 0
    %609 = vmatpush1.bf16.msra.mxu0 0
    %610 = vmatprep.subr.bf16.mxu0 0
    %611 = vmatpush1.bf16.msra.mxu0 0
    %612 = vmatprep.subr.bf16.mxu0 0
    %613 = vmatpush1.bf16.msra.mxu0 0
    %614 = vmatprep.subr.bf16.mxu0 0
    %615 = vmatpush1.bf16.msra.mxu0 0
    %616 = vmatprep.subr.bf16.mxu0 0
    %617 = vmatpush1.bf16.msra.mxu0 0
    %618 = vmatprep.subr.bf16.mxu0 0
    %619 = vmatpush1.bf16.msra.mxu0 0
    %620 = vmatprep.subr.bf16.mxu0 0
    %621 = vmatpush1.bf16.msra.mxu0 0
    %622 = vmatprep.subr.bf16.mxu0 0
    %623 = vmatpush1.bf16.msra.mxu0 0
    %624 = vmatprep.mubr.bf16.mxu0 0
    %625 = vmatmul.mubr.bf16.gmra.mrb[0].mxu0 %v491
    %v626 = vpop.f32.mrb[0].mxu0
    %v627 = vadd.f32 0.0, %v626
    %v628 = vpop.f32.mrb[0].mxu0
    %v629 = vpop.f32.mrb[0].mxu0
    %v630 = vadd.f32 0.0, %v629
    %v631 = vpop.f32.mrb[0].mxu0
    %632 = vmatprep.mubr.bf16.mxu0 0
    %633 = vmatmul.mubr.bf16.gmra.mrb[0].mxu0 %v494
    %v634 = vpop.f32.mrb[0].mxu0
    %v635 = vadd.f32 0.0, %v634
    %v636 = vpop.f32.mrb[0].mxu0
    %v637 = vpop.f32.mrb[0].mxu0
    %v638 = vadd.f32 0.0, %v637
    %v639 = vpop.f32.mrb[0].mxu0
    %640 = vmatprep.mubr.bf16.mxu0 0
    %641 = vmatmul.mubr.bf16.gmra.mrb[0].mxu0 %v497
    %v642 = vpop.f32.mrb[0].mxu0
    %v643 = vadd.f32 0.0, %v642
    %v644 = vpop.f32.mrb[0].mxu0
    %v645 = vpop.f32.mrb[0].mxu0
    %v646 = vadd.f32 0.0, %v645
    %v647 = vpop.f32.mrb[0].mxu0
    %648 = vmatprep.mubr.bf16.mxu0 0
    %649 = vmatmul.mubr.bf16.gmra.mrb[0].mxu0 %v500
    %v650 = vpop.f32.mrb[0].mxu0
    %v651 = vadd.f32 0.0, %v650
    %v652 = vpop.f32.mrb[0].mxu0
    %v653 = vpop.f32.mrb[0].mxu0
    %v654 = vadd.f32 0.0, %v653
    %v655 = vpop.f32.mrb[0].mxu0
    %656 = vdwg.mxu0
    %v657 = vadd.f32 %v435, %v627
    %v658 = vadd.f32 %v438, %v630
    %v659 = vadd.f32 %v443, %v635
    %v660 = vadd.f32 %v446, %v638
    %v661 = vadd.f32 %v451, %v643
    %v662 = vadd.f32 %v454, %v646
    %v663 = vadd.f32 %v459, %v651
    %v664 = vadd.f32 %v462, %v654
    %s665 = scalar_lea.vmem %s1, 48
    %v666 = vld [vmem:[%s665] sm:$0xf]
    %v667 = vld [vmem:[%s665 + $0x4] sm:$0xf]
    %v668 = vld [vmem:[%s665 + $0x8] sm:$0xf]
    %v669 = vld [vmem:[%s665 + $0xc] sm:$0xf]
    %vm670 = vsmask.f32 6400
    %v671 = vrot.slane %v101, 1
    %v672 = vrot.slane %v103, 2
    %v673 = vor.u32 %v671, %v672
    %v674 = vrot.slane %v112, 1
    %v675 = vrot.slane %v108, 2
    %v676 = vor.u32 %v674, %v675
    %v677 = vsel %vm670, %v673, %v676
    %v678 = vrot.slane %v120, 1
    %v679 = vrot.slane %v116, 2
    %v680 = vor.u32 %v678, %v679
    %v681 = vsel %vm670, %v676, %v680
    %v682 = vrot.slane %v128, 1
    %v683 = vrot.slane %v124, 2
    %v684 = vor.u32 %v682, %v683
    %v685 = vsel %vm670, %v680, %v684
    %v690 = vunpack.c.l.b16 %v666
    %v691 = vunpack.c.l.b16 %v667
    %v692 = vunpack.c.l.b16 %v668
    %v693 = vunpack.c.l.b16 %v669
    %v694 = vpack.c.b16 %v691, %v690
    %v695 = vpack.c.b16 %v693, %v692
    %v699 = vsel %vm143, %v677, 0
    %v702 = vsel %vm143, %v681, 0
    %v705 = vsel %vm143, %v685, 0
    %v708 = vsel %vm143, %v684, 0
    %710 = vmatprep.subr.bf16.mxu0 0
    %711 = vmatpush1.bf16.msra.mxu0 %v694
    %712 = vmatprep.subr.bf16.mxu0 0
    %713 = vmatpush1.bf16.msra.mxu0 %v695
    %714 = vmatprep.subr.bf16.mxu0 0
    %715 = vmatpush1.bf16.msra.mxu0 0
    %716 = vmatprep.subr.bf16.mxu0 0
    %717 = vmatpush1.bf16.msra.mxu0 0
    %718 = vmatprep.subr.bf16.mxu0 0
    %719 = vmatpush1.bf16.msra.mxu0 0
    %720 = vmatprep.subr.bf16.mxu0 0
    %721 = vmatpush1.bf16.msra.mxu0 0
    %722 = vmatprep.subr.bf16.mxu0 0
    %723 = vmatpush1.bf16.msra.mxu0 0
    %724 = vmatprep.subr.bf16.mxu0 0
    %725 = vmatpush1.bf16.msra.mxu0 0
    %726 = vmatprep.subr.bf16.mxu0 0
    %727 = vmatpush1.bf16.msra.mxu0 0
    %728 = vmatprep.subr.bf16.mxu0 0
    %729 = vmatpush1.bf16.msra.mxu0 0
    %730 = vmatprep.subr.bf16.mxu0 0
    %731 = vmatpush1.bf16.msra.mxu0 0
    %732 = vmatprep.subr.bf16.mxu0 0
    %733 = vmatpush1.bf16.msra.mxu0 0
    %734 = vmatprep.subr.bf16.mxu0 0
    %735 = vmatpush1.bf16.msra.mxu0 0
    %736 = vmatprep.subr.bf16.mxu0 0
    %737 = vmatpush1.bf16.msra.mxu0 0
    %738 = vmatprep.subr.bf16.mxu0 0
    %739 = vmatpush1.bf16.msra.mxu0 0
    %740 = vmatprep.subr.bf16.mxu0 0
    %741 = vmatpush1.bf16.msra.mxu0 0
    %742 = vmatprep.mubr.bf16.mxu0 0
    %743 = vmatmul.mubr.bf16.gmra.mrb[0].mxu0 %v699
    %v744 = vpop.f32.mrb[0].mxu0
    %v745 = vadd.f32 0.0, %v744
    %v746 = vpop.f32.mrb[0].mxu0
    %v747 = vpop.f32.mrb[0].mxu0
    %v748 = vadd.f32 0.0, %v747
    %v749 = vpop.f32.mrb[0].mxu0
    %750 = vmatprep.mubr.bf16.mxu0 0
    %751 = vmatmul.mubr.bf16.gmra.mrb[0].mxu0 %v702
    %v752 = vpop.f32.mrb[0].mxu0
    %v753 = vadd.f32 0.0, %v752
    %v754 = vpop.f32.mrb[0].mxu0
    %v755 = vpop.f32.mrb[0].mxu0
    %v756 = vadd.f32 0.0, %v755
    %v757 = vpop.f32.mrb[0].mxu0
    %758 = vmatprep.mubr.bf16.mxu0 0
    %759 = vmatmul.mubr.bf16.gmra.mrb[0].mxu0 %v705
    %v760 = vpop.f32.mrb[0].mxu0
    %v761 = vadd.f32 0.0, %v760
    %v762 = vpop.f32.mrb[0].mxu0
    %v763 = vpop.f32.mrb[0].mxu0
    %v764 = vadd.f32 0.0, %v763
    %v765 = vpop.f32.mrb[0].mxu0
    %766 = vmatprep.mubr.bf16.mxu0 0
    %767 = vmatmul.mubr.bf16.gmra.mrb[0].mxu0 %v708
    %v768 = vpop.f32.mrb[0].mxu0
    %v769 = vadd.f32 0.0, %v768
    %v770 = vpop.f32.mrb[0].mxu0
    %v771 = vpop.f32.mrb[0].mxu0
    %v772 = vadd.f32 0.0, %v771
    %v773 = vpop.f32.mrb[0].mxu0
    %774 = vdwg.mxu0
    %v775 = vadd.f32 %v567, %v745
    %v776 = vadd.f32 %v568, %v748
    %v777 = vadd.f32 %v569, %v753
    %v778 = vadd.f32 %v570, %v756
    %v779 = vadd.f32 %v571, %v761
    %v780 = vadd.f32 %v572, %v764
    %v781 = vadd.f32 %v573, %v769
    %v782 = vadd.f32 %v574, %v772
    %s783 = scalar_lea.vmem %s2, 48
    %v784 = vld [vmem:[%s783] sm:$0xf]
    %v785 = vld [vmem:[%s783 + $0x4] sm:$0xf]
    %v786 = vld [vmem:[%s783 + $0x8] sm:$0xf]
    %v787 = vld [vmem:[%s783 + $0xc] sm:$0xf]
    %v792 = vunpack.c.l.b16 %v784
    %v793 = vunpack.c.l.b16 %v785
    %v794 = vunpack.c.l.b16 %v786
    %v795 = vunpack.c.l.b16 %v787
    %v796 = vpack.c.b16 %v793, %v792
    %v797 = vpack.c.b16 %v795, %v794
    %800 = vmatprep.subr.bf16.mxu0 0
    %801 = vmatpush1.bf16.msra.mxu0 %v796
    %802 = vmatprep.subr.bf16.mxu0 0
    %803 = vmatpush1.bf16.msra.mxu0 %v797
    %804 = vmatprep.subr.bf16.mxu0 0
    %805 = vmatpush1.bf16.msra.mxu0 0
    %806 = vmatprep.subr.bf16.mxu0 0
    %807 = vmatpush1.bf16.msra.mxu0 0
    %808 = vmatprep.subr.bf16.mxu0 0
    %809 = vmatpush1.bf16.msra.mxu0 0
    %810 = vmatprep.subr.bf16.mxu0 0
    %811 = vmatpush1.bf16.msra.mxu0 0
    %812 = vmatprep.subr.bf16.mxu0 0
    %813 = vmatpush1.bf16.msra.mxu0 0
    %814 = vmatprep.subr.bf16.mxu0 0
    %815 = vmatpush1.bf16.msra.mxu0 0
    %816 = vmatprep.subr.bf16.mxu0 0
    %817 = vmatpush1.bf16.msra.mxu0 0
    %818 = vmatprep.subr.bf16.mxu0 0
    %819 = vmatpush1.bf16.msra.mxu0 0
    %820 = vmatprep.subr.bf16.mxu0 0
    %821 = vmatpush1.bf16.msra.mxu0 0
    %822 = vmatprep.subr.bf16.mxu0 0
    %823 = vmatpush1.bf16.msra.mxu0 0
    %824 = vmatprep.subr.bf16.mxu0 0
    %825 = vmatpush1.bf16.msra.mxu0 0
    %826 = vmatprep.subr.bf16.mxu0 0
    %827 = vmatpush1.bf16.msra.mxu0 0
    %828 = vmatprep.subr.bf16.mxu0 0
    %829 = vmatpush1.bf16.msra.mxu0 0
    %830 = vmatprep.subr.bf16.mxu0 0
    %831 = vmatpush1.bf16.msra.mxu0 0
    %832 = vmatprep.mubr.bf16.mxu0 0
    %833 = vmatmul.mubr.bf16.gmra.mrb[0].mxu0 %v699
    %v834 = vpop.f32.mrb[0].mxu0
    %v835 = vadd.f32 0.0, %v834
    %v836 = vpop.f32.mrb[0].mxu0
    %v837 = vpop.f32.mrb[0].mxu0
    %v838 = vadd.f32 0.0, %v837
    %v839 = vpop.f32.mrb[0].mxu0
    %840 = vmatprep.mubr.bf16.mxu0 0
    %841 = vmatmul.mubr.bf16.gmra.mrb[0].mxu0 %v702
    %v842 = vpop.f32.mrb[0].mxu0
    %v843 = vadd.f32 0.0, %v842
    %v844 = vpop.f32.mrb[0].mxu0
    %v845 = vpop.f32.mrb[0].mxu0
    %v846 = vadd.f32 0.0, %v845
    %v847 = vpop.f32.mrb[0].mxu0
    %848 = vmatprep.mubr.bf16.mxu0 0
    %849 = vmatmul.mubr.bf16.gmra.mrb[0].mxu0 %v705
    %v850 = vpop.f32.mrb[0].mxu0
    %v851 = vadd.f32 0.0, %v850
    %v852 = vpop.f32.mrb[0].mxu0
    %v853 = vpop.f32.mrb[0].mxu0
    %v854 = vadd.f32 0.0, %v853
    %v855 = vpop.f32.mrb[0].mxu0
    %856 = vmatprep.mubr.bf16.mxu0 0
    %857 = vmatmul.mubr.bf16.gmra.mrb[0].mxu0 %v708
    %v858 = vpop.f32.mrb[0].mxu0
    %v859 = vadd.f32 0.0, %v858
    %v860 = vpop.f32.mrb[0].mxu0
    %v861 = vpop.f32.mrb[0].mxu0
    %v862 = vadd.f32 0.0, %v861
    %v863 = vpop.f32.mrb[0].mxu0
    %864 = vdwg.mxu0
    %v865 = vadd.f32 %v657, %v835
    %v866 = vadd.f32 %v658, %v838
    %v867 = vadd.f32 %v659, %v843
    %v868 = vadd.f32 %v660, %v846
    %v869 = vadd.f32 %v661, %v851
    %v870 = vadd.f32 %v662, %v854
    %v871 = vadd.f32 %v663, %v859
    %v872 = vadd.f32 %v664, %v862
    %s873 = scalar_lea.vmem %s1, 64
    %v874 = vld [vmem:[%s873] sm:$0xf]
    %v875 = vld [vmem:[%s873 + $0x4] sm:$0xf]
    %v876 = vld [vmem:[%s873 + $0x8] sm:$0xf]
    %v877 = vld [vmem:[%s873 + $0xc] sm:$0xf]
    %vm878 = vcmask 1045504
    %v879 = vrot.slane %v95, 2
    %v880 = vrot.slane %v96, 2
    %v881 = vsel %vm878, %v879, %v880
    %v882 = vrot.slane %v97, 2
    %v883 = vsel %vm878, %v880, %v882
    %v884 = vrot.slane %v98, 2
    %v885 = vsel %vm878, %v882, %v884
    %v890 = vunpack.c.l.b16 %v874
    %v891 = vunpack.c.l.b16 %v875
    %v892 = vunpack.c.l.b16 %v876
    %v893 = vunpack.c.l.b16 %v877
    %v894 = vpack.c.b16 %v891, %v890
    %v895 = vpack.c.b16 %v893, %v892
    %v899 = vsel %vm143, %v881, 0
    %v902 = vsel %vm143, %v883, 0
    %v905 = vsel %vm143, %v885, 0
    %v908 = vsel %vm143, %v884, 0
    %910 = vmatprep.subr.bf16.mxu0 0
    %911 = vmatpush1.bf16.msra.mxu0 %v894
    %912 = vmatprep.subr.bf16.mxu0 0
    %913 = vmatpush1.bf16.msra.mxu0 %v895
    %914 = vmatprep.subr.bf16.mxu0 0
    %915 = vmatpush1.bf16.msra.mxu0 0
    %916 = vmatprep.subr.bf16.mxu0 0
    %917 = vmatpush1.bf16.msra.mxu0 0
    %918 = vmatprep.subr.bf16.mxu0 0
    %919 = vmatpush1.bf16.msra.mxu0 0
    %920 = vmatprep.subr.bf16.mxu0 0
    %921 = vmatpush1.bf16.msra.mxu0 0
    %922 = vmatprep.subr.bf16.mxu0 0
    %923 = vmatpush1.bf16.msra.mxu0 0
    %924 = vmatprep.subr.bf16.mxu0 0
    %925 = vmatpush1.bf16.msra.mxu0 0
    %926 = vmatprep.subr.bf16.mxu0 0
    %927 = vmatpush1.bf16.msra.mxu0 0
    %928 = vmatprep.subr.bf16.mxu0 0
    %929 = vmatpush1.bf16.msra.mxu0 0
    %930 = vmatprep.subr.bf16.mxu0 0
    %931 = vmatpush1.bf16.msra.mxu0 0
    %932 = vmatprep.subr.bf16.mxu0 0
    %933 = vmatpush1.bf16.msra.mxu0 0
    %934 = vmatprep.subr.bf16.mxu0 0
    %935 = vmatpush1.bf16.msra.mxu0 0
    %936 = vmatprep.subr.bf16.mxu0 0
    %937 = vmatpush1.bf16.msra.mxu0 0
    %938 = vmatprep.subr.bf16.mxu0 0
    %939 = vmatpush1.bf16.msra.mxu0 0
    %940 = vmatprep.subr.bf16.mxu0 0
    %941 = vmatpush1.bf16.msra.mxu0 0
    %942 = vmatprep.mubr.bf16.mxu0 0
    %943 = vmatmul.mubr.bf16.gmra.mrb[0].mxu0 %v899
    %v944 = vpop.f32.mrb[0].mxu0
    %v945 = vadd.f32 0.0, %v944
    %v946 = vpop.f32.mrb[0].mxu0
    %v947 = vpop.f32.mrb[0].mxu0
    %v948 = vadd.f32 0.0, %v947
    %v949 = vpop.f32.mrb[0].mxu0
    %950 = vmatprep.mubr.bf16.mxu0 0
    %951 = vmatmul.mubr.bf16.gmra.mrb[0].mxu0 %v902
    %v952 = vpop.f32.mrb[0].mxu0
    %v953 = vadd.f32 0.0, %v952
    %v954 = vpop.f32.mrb[0].mxu0
    %v955 = vpop.f32.mrb[0].mxu0
    %v956 = vadd.f32 0.0, %v955
    %v957 = vpop.f32.mrb[0].mxu0
    %958 = vmatprep.mubr.bf16.mxu0 0
    %959 = vmatmul.mubr.bf16.gmra.mrb[0].mxu0 %v905
    %v960 = vpop.f32.mrb[0].mxu0
    %v961 = vadd.f32 0.0, %v960
    %v962 = vpop.f32.mrb[0].mxu0
    %v963 = vpop.f32.mrb[0].mxu0
    %v964 = vadd.f32 0.0, %v963
    %v965 = vpop.f32.mrb[0].mxu0
    %966 = vmatprep.mubr.bf16.mxu0 0
    %967 = vmatmul.mubr.bf16.gmra.mrb[0].mxu0 %v908
    %v968 = vpop.f32.mrb[0].mxu0
    %v969 = vadd.f32 0.0, %v968
    %v970 = vpop.f32.mrb[0].mxu0
    %v971 = vpop.f32.mrb[0].mxu0
    %v972 = vadd.f32 0.0, %v971
    %v973 = vpop.f32.mrb[0].mxu0
    %974 = vdwg.mxu0
    %v975 = vadd.f32 %v775, %v945
    %v976 = vadd.f32 %v776, %v948
    %v977 = vadd.f32 %v777, %v953
    %v978 = vadd.f32 %v778, %v956
    %v979 = vadd.f32 %v779, %v961
    %v980 = vadd.f32 %v780, %v964
    %v981 = vadd.f32 %v781, %v969
    %v982 = vadd.f32 %v782, %v972
    %s983 = scalar_lea.vmem %s2, 64
    %v984 = vld [vmem:[%s983] sm:$0xf]
    %v985 = vld [vmem:[%s983 + $0x4] sm:$0xf]
    %v986 = vld [vmem:[%s983 + $0x8] sm:$0xf]
    %v987 = vld [vmem:[%s983 + $0xc] sm:$0xf]
    %v992 = vunpack.c.l.b16 %v984
    %v993 = vunpack.c.l.b16 %v985
    %v994 = vunpack.c.l.b16 %v986
    %v995 = vunpack.c.l.b16 %v987
    %v996 = vpack.c.b16 %v993, %v992
    %v997 = vpack.c.b16 %v995, %v994
    %1000 = vmatprep.subr.bf16.mxu0 0
    %1001 = vmatpush1.bf16.msra.mxu0 %v996
    %1002 = vmatprep.subr.bf16.mxu0 0
    %1003 = vmatpush1.bf16.msra.mxu0 %v997
    %1004 = vmatprep.subr.bf16.mxu0 0
    %1005 = vmatpush1.bf16.msra.mxu0 0
    %1006 = vmatprep.subr.bf16.mxu0 0
    %1007 = vmatpush1.bf16.msra.mxu0 0
    %1008 = vmatprep.subr.bf16.mxu0 0
    %1009 = vmatpush1.bf16.msra.mxu0 0
    %1010 = vmatprep.subr.bf16.mxu0 0
    %1011 = vmatpush1.bf16.msra.mxu0 0
    %1012 = vmatprep.subr.bf16.mxu0 0
    %1013 = vmatpush1.bf16.msra.mxu0 0
    %1014 = vmatprep.subr.bf16.mxu0 0
    %1015 = vmatpush1.bf16.msra.mxu0 0
    %1016 = vmatprep.subr.bf16.mxu0 0
    %1017 = vmatpush1.bf16.msra.mxu0 0
    %1018 = vmatprep.subr.bf16.mxu0 0
    %1019 = vmatpush1.bf16.msra.mxu0 0
    %1020 = vmatprep.subr.bf16.mxu0 0
    %1021 = vmatpush1.bf16.msra.mxu0 0
    %1022 = vmatprep.subr.bf16.mxu0 0
    %1023 = vmatpush1.bf16.msra.mxu0 0
    %1024 = vmatprep.subr.bf16.mxu0 0
    %1025 = vmatpush1.bf16.msra.mxu0 0
    %1026 = vmatprep.subr.bf16.mxu0 0
    %1027 = vmatpush1.bf16.msra.mxu0 0
    %1028 = vmatprep.subr.bf16.mxu0 0
    %1029 = vmatpush1.bf16.msra.mxu0 0
    %1030 = vmatprep.subr.bf16.mxu0 0
    %1031 = vmatpush1.bf16.msra.mxu0 0
    %1032 = vmatprep.mubr.bf16.mxu0 0
    %1033 = vmatmul.mubr.bf16.gmra.mrb[0].mxu0 %v899
    %v1034 = vpop.f32.mrb[0].mxu0
    %v1035 = vadd.f32 0.0, %v1034
    %v1036 = vpop.f32.mrb[0].mxu0
    %v1037 = vpop.f32.mrb[0].mxu0
    %v1038 = vadd.f32 0.0, %v1037
    %v1039 = vpop.f32.mrb[0].mxu0
    %1040 = vmatprep.mubr.bf16.mxu0 0
    %1041 = vmatmul.mubr.bf16.gmra.mrb[0].mxu0 %v902
    %v1042 = vpop.f32.mrb[0].mxu0
    %v1043 = vadd.f32 0.0, %v1042
    %v1044 = vpop.f32.mrb[0].mxu0
    %v1045 = vpop.f32.mrb[0].mxu0
    %v1046 = vadd.f32 0.0, %v1045
    %v1047 = vpop.f32.mrb[0].mxu0
    %1048 = vmatprep.mubr.bf16.mxu0 0
    %1049 = vmatmul.mubr.bf16.gmra.mrb[0].mxu0 %v905
    %v1050 = vpop.f32.mrb[0].mxu0
    %v1051 = vadd.f32 0.0, %v1050
    %v1052 = vpop.f32.mrb[0].mxu0
    %v1053 = vpop.f32.mrb[0].mxu0
    %v1054 = vadd.f32 0.0, %v1053
    %v1055 = vpop.f32.mrb[0].mxu0
    %1056 = vmatprep.mubr.bf16.mxu0 0
    %1057 = vmatmul.mubr.bf16.gmra.mrb[0].mxu0 %v908
    %v1058 = vpop.f32.mrb[0].mxu0
    %v1059 = vadd.f32 0.0, %v1058
    %v1060 = vpop.f32.mrb[0].mxu0
    %v1061 = vpop.f32.mrb[0].mxu0
    %v1062 = vadd.f32 0.0, %v1061
    %v1063 = vpop.f32.mrb[0].mxu0
    %1064 = vdwg.mxu0
    %v1065 = vadd.f32 %v865, %v1035
    %v1066 = vadd.f32 %v866, %v1038
    %v1067 = vadd.f32 %v867, %v1043
    %v1068 = vadd.f32 %v868, %v1046
    %v1069 = vadd.f32 %v869, %v1051
    %v1070 = vadd.f32 %v870, %v1054
    %v1071 = vadd.f32 %v871, %v1059
    %v1072 = vadd.f32 %v872, %v1062
    %v1073 = vmax.f32 %v975, %v1065
    %v1074 = vmax.f32 %v976, %v1066
    %v1075 = vmax.f32 %v977, %v1067
    %v1076 = vmax.f32 %v978, %v1068
    %v1077 = vmax.f32 %v979, %v1069
    %v1078 = vmax.f32 %v980, %v1070
    %v1079 = vmax.f32 %v981, %v1071
    %v1080 = vmax.f32 %v982, %v1072
    %v1081 = vpack.c.bf16 %v1074, %v1073
    %v1082 = vpack.c.bf16 %v1076, %v1075
    %v1083 = vpack.c.bf16 %v1078, %v1077
    %v1084 = vpack.c.bf16 %v1080, %v1079
    %v1085 = vld [vmem:[%s5] sm:$0xf]
    %v1086 = vld [vmem:[%s5 + $0x4] sm:$0xf]
    %v1087 = vld [vmem:[%s5 + $0x8] sm:$0xf]
    %v1088 = vld [vmem:[%s5 + $0xc] sm:$0x3]
    %v1093 = vunpack.c.l.b16 %v1085
    %v1094 = vunpack.c.l.b16 %v1086
    %v1095 = vunpack.c.l.b16 %v1087
    %v1096 = vunpack.c.l.b16 %v1088
    %v1097 = vpack.c.b16 %v1094, %v1093
    %v1098 = vpack.c.b16 %v1096, %v1095
    %vm1099 = vcmask 490496
    %v1101 = vsel %vm1099, %v1097, 0
    %v1104 = vsel %vm1099, %v1098, 0
    %vm1106 = vcmask 1045504
    %v1108 = vsel %vm1106, %v1084, 0
    %1110 = vmatprep.subr.bf16.mxu0 0
    %1111 = vmatpush1.bf16.msra.mxu0 %v1081
    %1112 = vmatprep.subr.bf16.mxu0 0
    %1113 = vmatpush1.bf16.msra.mxu0 %v1082
    %1114 = vmatprep.subr.bf16.mxu0 0
    %1115 = vmatpush1.bf16.msra.mxu0 %v1083
    %1116 = vmatprep.subr.bf16.mxu0 0
    %1117 = vmatpush1.bf16.msra.mxu0 %v1108
    %1118 = vmatprep.subr.bf16.mxu0 0
    %1119 = vmatpush1.bf16.msra.mxu0 0
    %1120 = vmatprep.subr.bf16.mxu0 0
    %1121 = vmatpush1.bf16.msra.mxu0 0
    %1122 = vmatprep.subr.bf16.mxu0 0
    %1123 = vmatpush1.bf16.msra.mxu0 0
    %1124 = vmatprep.subr.bf16.mxu0 0
    %1125 = vmatpush1.bf16.msra.mxu0 0
    %1126 = vmatprep.subr.bf16.mxu0 0
    %1127 = vmatpush1.bf16.msra.mxu0 0
    %1128 = vmatprep.subr.bf16.mxu0 0
    %1129 = vmatpush1.bf16.msra.mxu0 0
    %1130 = vmatprep.subr.bf16.mxu0 0
    %1131 = vmatpush1.bf16.msra.mxu0 0
    %1132 = vmatprep.subr.bf16.mxu0 0
    %1133 = vmatpush1.bf16.msra.mxu0 0
    %1134 = vmatprep.subr.bf16.mxu0 0
    %1135 = vmatpush1.bf16.msra.mxu0 0
    %1136 = vmatprep.subr.bf16.mxu0 0
    %1137 = vmatpush1.bf16.msra.mxu0 0
    %1138 = vmatprep.subr.bf16.mxu0 0
    %1139 = vmatpush1.bf16.msra.mxu0 0
    %1140 = vmatprep.subr.bf16.mxu0 0
    %1141 = vmatpush1.bf16.msra.mxu0 0
    %1142 = vmatprep.mubr.bf16.mxu0 0
    %1143 = vmatmul.mubr.bf16.gmra.mrb[0].mxu0 %v1101
    %v1144 = vpop.f32.mrb[0].mxu0
    %v1145 = vadd.f32 0.0, %v1144
    %v1146 = vpop.f32.mrb[0].mxu0
    %v1147 = vpop.f32.mrb[0].mxu0
    %v1148 = vadd.f32 0.0, %v1147
    %v1149 = vpop.f32.mrb[0].mxu0
    %1150 = vmatprep.mubr.bf16.mxu0 0
    %1151 = vmatmul.mubr.bf16.gmra.mrb[0].mxu0 %v1104
    %v1152 = vpop.f32.mrb[0].mxu0
    %v1153 = vadd.f32 0.0, %v1152
    %v1154 = vpop.f32.mrb[0].mxu0
    %v1155 = vpop.f32.mrb[0].mxu0
    %v1156 = vadd.f32 0.0, %v1155
    %v1157 = vpop.f32.mrb[0].mxu0
    %1158 = vdwg.mxu0
    %v1159 = vld [vmem:[%s6] sm:$0xf]
    %v1160 = vld [vmem:[%s6 + $0x4] sm:$0xf]
    %v1161 = vld [vmem:[%s6 + $0x8] sm:$0xf]
    %v1162 = vld [vmem:[%s6 + $0xc] sm:$0x3]
    %v1167 = vunpack.c.l.b16 %v1159
    %v1168 = vunpack.c.l.b16 %v1160
    %v1169 = vunpack.c.l.b16 %v1161
    %v1170 = vunpack.c.l.b16 %v1162
    %v1171 = vpack.c.b16 %v1168, %v1167
    %v1172 = vpack.c.b16 %v1170, %v1169
    %v1174 = vsel %vm1099, %v1171, 0
    %v1177 = vsel %vm1099, %v1172, 0
    %1179 = vmatprep.subr.bf16.mxu0 0
    %1180 = vmatpush1.bf16.msra.mxu0 %v1081
    %1181 = vmatprep.subr.bf16.mxu0 0
    %1182 = vmatpush1.bf16.msra.mxu0 %v1082
    %1183 = vmatprep.subr.bf16.mxu0 0
    %1184 = vmatpush1.bf16.msra.mxu0 %v1083
    %1185 = vmatprep.subr.bf16.mxu0 0
    %1186 = vmatpush1.bf16.msra.mxu0 %v1108
    %1187 = vmatprep.subr.bf16.mxu0 0
    %1188 = vmatpush1.bf16.msra.mxu0 0
    %1189 = vmatprep.subr.bf16.mxu0 0
    %1190 = vmatpush1.bf16.msra.mxu0 0
    %1191 = vmatprep.subr.bf16.mxu0 0
    %1192 = vmatpush1.bf16.msra.mxu0 0
    %1193 = vmatprep.subr.bf16.mxu0 0
    %1194 = vmatpush1.bf16.msra.mxu0 0
    %1195 = vmatprep.subr.bf16.mxu0 0
    %1196 = vmatpush1.bf16.msra.mxu0 0
    %1197 = vmatprep.subr.bf16.mxu0 0
    %1198 = vmatpush1.bf16.msra.mxu0 0
    %1199 = vmatprep.subr.bf16.mxu0 0
    %1200 = vmatpush1.bf16.msra.mxu0 0
    %1201 = vmatprep.subr.bf16.mxu0 0
    %1202 = vmatpush1.bf16.msra.mxu0 0
    %1203 = vmatprep.subr.bf16.mxu0 0
    %1204 = vmatpush1.bf16.msra.mxu0 0
    %1205 = vmatprep.subr.bf16.mxu0 0
    %1206 = vmatpush1.bf16.msra.mxu0 0
    %1207 = vmatprep.subr.bf16.mxu0 0
    %1208 = vmatpush1.bf16.msra.mxu0 0
    %1209 = vmatprep.subr.bf16.mxu0 0
    %1210 = vmatpush1.bf16.msra.mxu0 0
    %1211 = vmatprep.mubr.bf16.mxu0 0
    %1212 = vmatmul.mubr.bf16.gmra.mrb[0].mxu0 %v1174
    %v1213 = vpop.f32.mrb[0].mxu0
    %v1214 = vadd.f32 0.0, %v1213
    %v1215 = vpop.f32.mrb[0].mxu0
    %v1216 = vpop.f32.mrb[0].mxu0
    %v1217 = vadd.f32 0.0, %v1216
    %v1218 = vpop.f32.mrb[0].mxu0
    %1219 = vmatprep.mubr.bf16.mxu0 0
    %1220 = vmatmul.mubr.bf16.gmra.mrb[0].mxu0 %v1177
    %v1221 = vpop.f32.mrb[0].mxu0
    %v1222 = vadd.f32 0.0, %v1221
    %v1223 = vpop.f32.mrb[0].mxu0
    %v1224 = vpop.f32.mrb[0].mxu0
    %v1225 = vadd.f32 0.0, %v1224
    %v1226 = vpop.f32.mrb[0].mxu0
    %1227 = vdwg.mxu0
    %v1228 = vmax.f32 %v1145, %v1214
    %v1229 = vmax.f32 %v1148, %v1217
    %v1230 = vmax.f32 %v1153, %v1222
    %v1231 = vmax.f32 %v1156, %v1225
    %v1232 = vld [vmem:[%s9] sm:$0x1]
    %v1234 = vlaneseq
    %v1235 = vshrl.u32 %v1234, 7
    %v1236 = vsub.s32 0, %v1235
    %v1237 = vrot.slane %v1232, %v1236
    %v1239 = vadd.f32 %v1228, %v1237
    %v1240 = vadd.f32 %v1229, %v1237
    %v1241 = vadd.f32 %v1230, %v1237
    %v1242 = vadd.f32 %v1231, %v1237
    %v1243 = vmax.f32 %v1239, 0.0
    %v1244 = vmax.f32 %v1240, 0.0
    %v1245 = vmax.f32 %v1241, 0.0
    %v1246 = vmax.f32 %v1242, 0.0
    %v1247 = vpack.c.bf16 %v1244, %v1243
    %v1248 = vpack.c.bf16 %v1246, %v1245
    %v1249 = vld [vmem:[%s3] sm:$0xf]
    %v1250 = vld [vmem:[%s3 + $0x4] sm:$0xf]
    %v1251 = vld [vmem:[%s3 + $0x8] sm:$0xf]
    %v1252 = vld [vmem:[%s3 + $0xc] sm:$0xf]
    %v1253 = vld [vmem:[%s3 + $0x10] sm:$0xf]
    %v1254 = vld [vmem:[%s3 + $0x14] sm:$0xf]
    %v1255 = vld [vmem:[%s3 + $0x18] sm:$0xf]
    %v1256 = vld [vmem:[%s3 + $0x1c] sm:$0xf]
    %v1257 = vld [vmem:[%s3 + $0x20] sm:$0xf]
    %v1258 = vld [vmem:[%s3 + $0x24] sm:$0xf]
    %v1259 = vld [vmem:[%s3 + $0x28] sm:$0x3]
    %v1260 = vld [vmem:[%s4] sm:$0xf]
    %v1261 = vld [vmem:[%s4 + $0x4] sm:$0xf]
    %v1262 = vld [vmem:[%s4 + $0x8] sm:$0xf]
    %v1263 = vld [vmem:[%s4 + $0xc] sm:$0xf]
    %v1264 = vld [vmem:[%s4 + $0x10] sm:$0xf]
    %v1265 = vld [vmem:[%s4 + $0x14] sm:$0xf]
    %v1266 = vld [vmem:[%s4 + $0x18] sm:$0xf]
    %v1267 = vld [vmem:[%s4 + $0x1c] sm:$0xf]
    %v1268 = vld [vmem:[%s4 + $0x20] sm:$0xf]
    %v1269 = vld [vmem:[%s4 + $0x24] sm:$0xf]
    %v1270 = vld [vmem:[%s4 + $0x28] sm:$0x3]
    %s1271 = scalar_lea.vmem %s3, 44
    %v1272 = vld [vmem:[%s1271] sm:$0xf]
    %v1273 = vld [vmem:[%s1271 + $0x4] sm:$0xf]
    %v1274 = vld [vmem:[%s1271 + $0x8] sm:$0xf]
    %v1275 = vld [vmem:[%s1271 + $0xc] sm:$0xf]
    %v1276 = vld [vmem:[%s1271 + $0x10] sm:$0xf]
    %v1277 = vld [vmem:[%s1271 + $0x14] sm:$0xf]
    %v1278 = vld [vmem:[%s1271 + $0x18] sm:$0xf]
    %v1279 = vld [vmem:[%s1271 + $0x1c] sm:$0xf]
    %v1280 = vld [vmem:[%s1271 + $0x20] sm:$0xf]
    %v1281 = vld [vmem:[%s1271 + $0x24] sm:$0xf]
    %v1282 = vld [vmem:[%s1271 + $0x28] sm:$0x3]
    %v1284 = vshrl.u32 %v1247, 16
    %v1286 = vshll.u32 %v1247, 16
    %v1288 = vrot.slane %v1286, 1
    %v1289 = vor.u32 %v1284, %v1288
    %v1291 = vshll.u32 %v1248, 16
    %v1293 = vrot.slane %v1291, 1
    %v1294 = vsel %vm99, %v1289, %v1293
    %v1295 = vshrl.u32 %v1248, 16
    %v1297 = vor.u32 %v1295, %v1293
    %v1309 = vunpack.c.l.b16 %v1272
    %v1310 = vunpack.c.l.b16 %v1273
    %v1311 = vunpack.c.l.b16 %v1274
    %v1312 = vunpack.c.l.b16 %v1275
    %v1313 = vunpack.c.l.b16 %v1276
    %v1314 = vunpack.c.l.b16 %v1277
    %v1315 = vunpack.c.l.b16 %v1278
    %v1316 = vunpack.c.l.b16 %v1279
    %v1317 = vunpack.c.l.b16 %v1280
    %v1318 = vunpack.c.l.b16 %v1281
    %v1319 = vunpack.c.l.b16 %v1282
    %v1320 = vpack.c.b16 %v1310, %v1309
    %v1321 = vpack.c.b16 %v1312, %v1311
    %v1322 = vpack.c.b16 %v1314, %v1313
    %v1323 = vpack.c.b16 %v1316, %v1315
    %v1324 = vpack.c.b16 %v1318, %v1317
    %v1325 = vpack.c.b16 %v1319, %v1319
    %vm1331 = vcmask 687104
    %v1333 = vsel %vm1331, %v1294, 0
    %v1336 = vsel %vm1331, %v1297, 0
    %vm1338 = vcmask 1041408
    %v1340 = vsel %vm1338, %v1325, 0
    %1342 = vmatprep.subr.bf16.mxu0 0
    %1343 = vmatpush1.bf16.msra.mxu0 %v1320
    %1344 = vmatprep.subr.bf16.mxu0 0
    %1345 = vmatpush1.bf16.msra.mxu0 %v1321
    %1346 = vmatprep.subr.bf16.mxu0 0
    %1347 = vmatpush1.bf16.msra.mxu0 %v1322
    %1348 = vmatprep.subr.bf16.mxu0 0
    %1349 = vmatpush1.bf16.msra.mxu0 %v1323
    %1350 = vmatprep.subr.bf16.mxu0 0
    %1351 = vmatpush1.bf16.msra.mxu0 %v1324
    %1352 = vmatprep.subr.bf16.mxu0 0
    %1353 = vmatpush1.bf16.msra.mxu0 %v1340
    %1354 = vmatprep.subr.bf16.mxu0 0
    %1355 = vmatpush1.bf16.msra.mxu0 0
    %1356 = vmatprep.subr.bf16.mxu0 0
    %1357 = vmatpush1.bf16.msra.mxu0 0
    %1358 = vmatprep.subr.bf16.mxu0 0
    %1359 = vmatpush1.bf16.msra.mxu0 0
    %1360 = vmatprep.subr.bf16.mxu0 0
    %1361 = vmatpush1.bf16.msra.mxu0 0
    %1362 = vmatprep.subr.bf16.mxu0 0
    %1363 = vmatpush1.bf16.msra.mxu0 0
    %1364 = vmatprep.subr.bf16.mxu0 0
    %1365 = vmatpush1.bf16.msra.mxu0 0
    %1366 = vmatprep.subr.bf16.mxu0 0
    %1367 = vmatpush1.bf16.msra.mxu0 0
    %1368 = vmatprep.subr.bf16.mxu0 0
    %1369 = vmatpush1.bf16.msra.mxu0 0
    %1370 = vmatprep.subr.bf16.mxu0 0
    %1371 = vmatpush1.bf16.msra.mxu0 0
    %1372 = vmatprep.subr.bf16.mxu0 0
    %1373 = vmatpush1.bf16.msra.mxu0 0
    %1374 = vmatprep.mubr.bf16.mxu0 0
    %1375 = vmatmul.mubr.bf16.gmra.mrb[0].mxu0 %v1333
    %v1376 = vpop.f32.mrb[0].mxu0
    %v1377 = vadd.f32 0.0, %v1376
    %v1378 = vpop.f32.mrb[0].mxu0
    %v1379 = vpop.f32.mrb[0].mxu0
    %v1380 = vadd.f32 0.0, %v1379
    %v1381 = vpop.f32.mrb[0].mxu0
    %1382 = vmatprep.mubr.bf16.mxu0 0
    %1383 = vmatmul.mubr.bf16.gmra.mrb[0].mxu0 %v1336
    %v1384 = vpop.f32.mrb[0].mxu0
    %v1385 = vadd.f32 0.0, %v1384
    %v1386 = vpop.f32.mrb[0].mxu0
    %v1387 = vpop.f32.mrb[0].mxu0
    %v1388 = vpop.f32.mrb[0].mxu0
    %1389 = vdwg.mxu0
    %v1401 = vunpack.c.l.b16 %v1249
    %v1402 = vunpack.c.l.b16 %v1250
    %v1403 = vunpack.c.l.b16 %v1251
    %v1404 = vunpack.c.l.b16 %v1252
    %v1405 = vunpack.c.l.b16 %v1253
    %v1406 = vunpack.c.l.b16 %v1254
    %v1407 = vunpack.c.l.b16 %v1255
    %v1408 = vunpack.c.l.b16 %v1256
    %v1409 = vunpack.c.l.b16 %v1257
    %v1410 = vunpack.c.l.b16 %v1258
    %v1411 = vunpack.c.l.b16 %v1259
    %v1412 = vpack.c.b16 %v1402, %v1401
    %v1413 = vpack.c.b16 %v1404, %v1403
    %v1414 = vpack.c.b16 %v1406, %v1405
    %v1415 = vpack.c.b16 %v1408, %v1407
    %v1416 = vpack.c.b16 %v1410, %v1409
    %v1417 = vpack.c.b16 %v1411, %v1411
    %v1423 = vsel %vm1331, %v1247, 0
    %v1425 = vsel %vm1331, %v1248, 0
    %v1428 = vsel %vm1338, %v1417, 0
    %1430 = vmatprep.subr.bf16.mxu0 0
    %1431 = vmatpush1.bf16.msra.mxu0 %v1412
    %1432 = vmatprep.subr.bf16.mxu0 0
    %1433 = vmatpush1.bf16.msra.mxu0 %v1413
    %1434 = vmatprep.subr.bf16.mxu0 0
    %1435 = vmatpush1.bf16.msra.mxu0 %v1414
    %1436 = vmatprep.subr.bf16.mxu0 0
    %1437 = vmatpush1.bf16.msra.mxu0 %v1415
    %1438 = vmatprep.subr.bf16.mxu0 0
    %1439 = vmatpush1.bf16.msra.mxu0 %v1416
    %1440 = vmatprep.subr.bf16.mxu0 0
    %1441 = vmatpush1.bf16.msra.mxu0 %v1428
    %1442 = vmatprep.subr.bf16.mxu0 0
    %1443 = vmatpush1.bf16.msra.mxu0 0
    %1444 = vmatprep.subr.bf16.mxu0 0
    %1445 = vmatpush1.bf16.msra.mxu0 0
    %1446 = vmatprep.subr.bf16.mxu0 0
    %1447 = vmatpush1.bf16.msra.mxu0 0
    %1448 = vmatprep.subr.bf16.mxu0 0
    %1449 = vmatpush1.bf16.msra.mxu0 0
    %1450 = vmatprep.subr.bf16.mxu0 0
    %1451 = vmatpush1.bf16.msra.mxu0 0
    %1452 = vmatprep.subr.bf16.mxu0 0
    %1453 = vmatpush1.bf16.msra.mxu0 0
    %1454 = vmatprep.subr.bf16.mxu0 0
    %1455 = vmatpush1.bf16.msra.mxu0 0
    %1456 = vmatprep.subr.bf16.mxu0 0
    %1457 = vmatpush1.bf16.msra.mxu0 0
    %1458 = vmatprep.subr.bf16.mxu0 0
    %1459 = vmatpush1.bf16.msra.mxu0 0
    %1460 = vmatprep.subr.bf16.mxu0 0
    %1461 = vmatpush1.bf16.msra.mxu0 0
    %1462 = vmatprep.mubr.bf16.mxu0 0
    %1463 = vmatmul.mubr.bf16.gmra.mrb[0].mxu0 %v1423
    %v1464 = vpop.f32.mrb[0].mxu0
    %v1465 = vadd.f32 %v1377, %v1464
    %v1466 = vpop.f32.mrb[0].mxu0
    %v1467 = vpop.f32.mrb[0].mxu0
    %v1468 = vadd.f32 %v1380, %v1467
    %v1469 = vpop.f32.mrb[0].mxu0
    %1470 = vmatprep.mubr.bf16.mxu0 0
    %1471 = vmatmul.mubr.bf16.gmra.mrb[0].mxu0 %v1425
    %v1472 = vpop.f32.mrb[0].mxu0
    %v1473 = vadd.f32 %v1385, %v1472
    %v1474 = vpop.f32.mrb[0].mxu0
    %v1475 = vpop.f32.mrb[0].mxu0
    %v1476 = vpop.f32.mrb[0].mxu0
    %1477 = vdwg.mxu0
    %s1478 = scalar_lea.vmem %s4, 44
    %v1479 = vld [vmem:[%s1478] sm:$0xf]
    %v1480 = vld [vmem:[%s1478 + $0x4] sm:$0xf]
    %v1481 = vld [vmem:[%s1478 + $0x8] sm:$0xf]
    %v1482 = vld [vmem:[%s1478 + $0xc] sm:$0xf]
    %v1483 = vld [vmem:[%s1478 + $0x10] sm:$0xf]
    %v1484 = vld [vmem:[%s1478 + $0x14] sm:$0xf]
    %v1485 = vld [vmem:[%s1478 + $0x18] sm:$0xf]
    %v1486 = vld [vmem:[%s1478 + $0x1c] sm:$0xf]
    %v1487 = vld [vmem:[%s1478 + $0x20] sm:$0xf]
    %v1488 = vld [vmem:[%s1478 + $0x24] sm:$0xf]
    %v1489 = vld [vmem:[%s1478 + $0x28] sm:$0x3]
    %v1501 = vunpack.c.l.b16 %v1479
    %v1502 = vunpack.c.l.b16 %v1480
    %v1503 = vunpack.c.l.b16 %v1481
    %v1504 = vunpack.c.l.b16 %v1482
    %v1505 = vunpack.c.l.b16 %v1483
    %v1506 = vunpack.c.l.b16 %v1484
    %v1507 = vunpack.c.l.b16 %v1485
    %v1508 = vunpack.c.l.b16 %v1486
    %v1509 = vunpack.c.l.b16 %v1487
    %v1510 = vunpack.c.l.b16 %v1488
    %v1511 = vunpack.c.l.b16 %v1489
    %v1512 = vpack.c.b16 %v1502, %v1501
    %v1513 = vpack.c.b16 %v1504, %v1503
    %v1514 = vpack.c.b16 %v1506, %v1505
    %v1515 = vpack.c.b16 %v1508, %v1507
    %v1516 = vpack.c.b16 %v1510, %v1509
    %v1517 = vpack.c.b16 %v1511, %v1511
    %v1524 = vsel %vm1338, %v1517, 0
    %1526 = vmatprep.subr.bf16.mxu0 0
    %1527 = vmatpush1.bf16.msra.mxu0 %v1512
    %1528 = vmatprep.subr.bf16.mxu0 0
    %1529 = vmatpush1.bf16.msra.mxu0 %v1513
    %1530 = vmatprep.subr.bf16.mxu0 0
    %1531 = vmatpush1.bf16.msra.mxu0 %v1514
    %1532 = vmatprep.subr.bf16.mxu0 0
    %1533 = vmatpush1.bf16.msra.mxu0 %v1515
    %1534 = vmatprep.subr.bf16.mxu0 0
    %1535 = vmatpush1.bf16.msra.mxu0 %v1516
    %1536 = vmatprep.subr.bf16.mxu0 0
    %1537 = vmatpush1.bf16.msra.mxu0 %v1524
    %1538 = vmatprep.subr.bf16.mxu0 0
    %1539 = vmatpush1.bf16.msra.mxu0 0
    %1540 = vmatprep.subr.bf16.mxu0 0
    %1541 = vmatpush1.bf16.msra.mxu0 0
    %1542 = vmatprep.subr.bf16.mxu0 0
    %1543 = vmatpush1.bf16.msra.mxu0 0
    %1544 = vmatprep.subr.bf16.mxu0 0
    %1545 = vmatpush1.bf16.msra.mxu0 0
    %1546 = vmatprep.subr.bf16.mxu0 0
    %1547 = vmatpush1.bf16.msra.mxu0 0
    %1548 = vmatprep.subr.bf16.mxu0 0
    %1549 = vmatpush1.bf16.msra.mxu0 0
    %1550 = vmatprep.subr.bf16.mxu0 0
    %1551 = vmatpush1.bf16.msra.mxu0 0
    %1552 = vmatprep.subr.bf16.mxu0 0
    %1553 = vmatpush1.bf16.msra.mxu0 0
    %1554 = vmatprep.subr.bf16.mxu0 0
    %1555 = vmatpush1.bf16.msra.mxu0 0
    %1556 = vmatprep.subr.bf16.mxu0 0
    %1557 = vmatpush1.bf16.msra.mxu0 0
    %1558 = vmatprep.mubr.bf16.mxu0 0
    %1559 = vmatmul.mubr.bf16.gmra.mrb[0].mxu0 %v1333
    %v1560 = vpop.f32.mrb[0].mxu0
    %v1561 = vadd.f32 0.0, %v1560
    %v1562 = vpop.f32.mrb[0].mxu0
    %v1563 = vpop.f32.mrb[0].mxu0
    %v1564 = vadd.f32 0.0, %v1563
    %v1565 = vpop.f32.mrb[0].mxu0
    %1566 = vmatprep.mubr.bf16.mxu0 0
    %1567 = vmatmul.mubr.bf16.gmra.mrb[0].mxu0 %v1336
    %v1568 = vpop.f32.mrb[0].mxu0
    %v1569 = vadd.f32 0.0, %v1568
    %v1570 = vpop.f32.mrb[0].mxu0
    %v1571 = vpop.f32.mrb[0].mxu0
    %v1572 = vpop.f32.mrb[0].mxu0
    %1573 = vdwg.mxu0
    %v1585 = vunpack.c.l.b16 %v1260
    %v1586 = vunpack.c.l.b16 %v1261
    %v1587 = vunpack.c.l.b16 %v1262
    %v1588 = vunpack.c.l.b16 %v1263
    %v1589 = vunpack.c.l.b16 %v1264
    %v1590 = vunpack.c.l.b16 %v1265
    %v1591 = vunpack.c.l.b16 %v1266
    %v1592 = vunpack.c.l.b16 %v1267
    %v1593 = vunpack.c.l.b16 %v1268
    %v1594 = vunpack.c.l.b16 %v1269
    %v1595 = vunpack.c.l.b16 %v1270
    %v1596 = vpack.c.b16 %v1586, %v1585
    %v1597 = vpack.c.b16 %v1588, %v1587
    %v1598 = vpack.c.b16 %v1590, %v1589
    %v1599 = vpack.c.b16 %v1592, %v1591
    %v1600 = vpack.c.b16 %v1594, %v1593
    %v1601 = vpack.c.b16 %v1595, %v1595
    %v1608 = vsel %vm1338, %v1601, 0
    %1610 = vmatprep.subr.bf16.mxu0 0
    %1611 = vmatpush1.bf16.msra.mxu0 %v1596
    %1612 = vmatprep.subr.bf16.mxu0 0
    %1613 = vmatpush1.bf16.msra.mxu0 %v1597
    %1614 = vmatprep.subr.bf16.mxu0 0
    %1615 = vmatpush1.bf16.msra.mxu0 %v1598
    %1616 = vmatprep.subr.bf16.mxu0 0
    %1617 = vmatpush1.bf16.msra.mxu0 %v1599
    %1618 = vmatprep.subr.bf16.mxu0 0
    %1619 = vmatpush1.bf16.msra.mxu0 %v1600
    %1620 = vmatprep.subr.bf16.mxu0 0
    %1621 = vmatpush1.bf16.msra.mxu0 %v1608
    %1622 = vmatprep.subr.bf16.mxu0 0
    %1623 = vmatpush1.bf16.msra.mxu0 0
    %1624 = vmatprep.subr.bf16.mxu0 0
    %1625 = vmatpush1.bf16.msra.mxu0 0
    %1626 = vmatprep.subr.bf16.mxu0 0
    %1627 = vmatpush1.bf16.msra.mxu0 0
    %1628 = vmatprep.subr.bf16.mxu0 0
    %1629 = vmatpush1.bf16.msra.mxu0 0
    %1630 = vmatprep.subr.bf16.mxu0 0
    %1631 = vmatpush1.bf16.msra.mxu0 0
    %1632 = vmatprep.subr.bf16.mxu0 0
    %1633 = vmatpush1.bf16.msra.mxu0 0
    %1634 = vmatprep.subr.bf16.mxu0 0
    %1635 = vmatpush1.bf16.msra.mxu0 0
    %1636 = vmatprep.subr.bf16.mxu0 0
    %1637 = vmatpush1.bf16.msra.mxu0 0
    %1638 = vmatprep.subr.bf16.mxu0 0
    %1639 = vmatpush1.bf16.msra.mxu0 0
    %1640 = vmatprep.subr.bf16.mxu0 0
    %1641 = vmatpush1.bf16.msra.mxu0 0
    %1642 = vmatprep.mubr.bf16.mxu0 0
    %1643 = vmatmul.mubr.bf16.gmra.mrb[0].mxu0 %v1423
    %v1644 = vpop.f32.mrb[0].mxu0
    %v1645 = vadd.f32 %v1561, %v1644
    %v1646 = vpop.f32.mrb[0].mxu0
    %v1647 = vpop.f32.mrb[0].mxu0
    %v1648 = vadd.f32 %v1564, %v1647
    %v1649 = vpop.f32.mrb[0].mxu0
    %1650 = vmatprep.mubr.bf16.mxu0 0
    %1651 = vmatmul.mubr.bf16.gmra.mrb[0].mxu0 %v1425
    %v1652 = vpop.f32.mrb[0].mxu0
    %v1653 = vadd.f32 %v1569, %v1652
    %v1654 = vpop.f32.mrb[0].mxu0
    %v1655 = vpop.f32.mrb[0].mxu0
    %v1656 = vpop.f32.mrb[0].mxu0
    %1657 = vdwg.mxu0
    %s1658 = scalar_lea.vmem %s3, 88
    %v1659 = vld [vmem:[%s1658] sm:$0xf]
    %v1660 = vld [vmem:[%s1658 + $0x4] sm:$0xf]
    %v1661 = vld [vmem:[%s1658 + $0x8] sm:$0xf]
    %v1662 = vld [vmem:[%s1658 + $0xc] sm:$0xf]
    %v1663 = vld [vmem:[%s1658 + $0x10] sm:$0xf]
    %v1664 = vld [vmem:[%s1658 + $0x14] sm:$0xf]
    %v1665 = vld [vmem:[%s1658 + $0x18] sm:$0xf]
    %v1666 = vld [vmem:[%s1658 + $0x1c] sm:$0xf]
    %v1667 = vld [vmem:[%s1658 + $0x20] sm:$0xf]
    %v1668 = vld [vmem:[%s1658 + $0x24] sm:$0xf]
    %v1669 = vld [vmem:[%s1658 + $0x28] sm:$0x3]
    %v1672 = vrot.slane %v1247, 1
    %v1673 = vrot.slane %v1248, 1
    %v1674 = vsel %vm470, %v1672, %v1673
    %v1686 = vunpack.c.l.b16 %v1659
    %v1687 = vunpack.c.l.b16 %v1660
    %v1688 = vunpack.c.l.b16 %v1661
    %v1689 = vunpack.c.l.b16 %v1662
    %v1690 = vunpack.c.l.b16 %v1663
    %v1691 = vunpack.c.l.b16 %v1664
    %v1692 = vunpack.c.l.b16 %v1665
    %v1693 = vunpack.c.l.b16 %v1666
    %v1694 = vunpack.c.l.b16 %v1667
    %v1695 = vunpack.c.l.b16 %v1668
    %v1696 = vunpack.c.l.b16 %v1669
    %v1697 = vpack.c.b16 %v1687, %v1686
    %v1698 = vpack.c.b16 %v1689, %v1688
    %v1699 = vpack.c.b16 %v1691, %v1690
    %v1700 = vpack.c.b16 %v1693, %v1692
    %v1701 = vpack.c.b16 %v1695, %v1694
    %v1702 = vpack.c.b16 %v1696, %v1696
    %v1709 = vsel %vm1331, %v1674, 0
    %v1712 = vsel %vm1331, %v1673, 0
    %v1715 = vsel %vm1338, %v1702, 0
    %1717 = vmatprep.subr.bf16.mxu0 0
    %1718 = vmatpush1.bf16.msra.mxu0 %v1697
    %1719 = vmatprep.subr.bf16.mxu0 0
    %1720 = vmatpush1.bf16.msra.mxu0 %v1698
    %1721 = vmatprep.subr.bf16.mxu0 0
    %1722 = vmatpush1.bf16.msra.mxu0 %v1699
    %1723 = vmatprep.subr.bf16.mxu0 0
    %1724 = vmatpush1.bf16.msra.mxu0 %v1700
    %1725 = vmatprep.subr.bf16.mxu0 0
    %1726 = vmatpush1.bf16.msra.mxu0 %v1701
    %1727 = vmatprep.subr.bf16.mxu0 0
    %1728 = vmatpush1.bf16.msra.mxu0 %v1715
    %1729 = vmatprep.subr.bf16.mxu0 0
    %1730 = vmatpush1.bf16.msra.mxu0 0
    %1731 = vmatprep.subr.bf16.mxu0 0
    %1732 = vmatpush1.bf16.msra.mxu0 0
    %1733 = vmatprep.subr.bf16.mxu0 0
    %1734 = vmatpush1.bf16.msra.mxu0 0
    %1735 = vmatprep.subr.bf16.mxu0 0
    %1736 = vmatpush1.bf16.msra.mxu0 0
    %1737 = vmatprep.subr.bf16.mxu0 0
    %1738 = vmatpush1.bf16.msra.mxu0 0
    %1739 = vmatprep.subr.bf16.mxu0 0
    %1740 = vmatpush1.bf16.msra.mxu0 0
    %1741 = vmatprep.subr.bf16.mxu0 0
    %1742 = vmatpush1.bf16.msra.mxu0 0
    %1743 = vmatprep.subr.bf16.mxu0 0
    %1744 = vmatpush1.bf16.msra.mxu0 0
    %1745 = vmatprep.subr.bf16.mxu0 0
    %1746 = vmatpush1.bf16.msra.mxu0 0
    %1747 = vmatprep.subr.bf16.mxu0 0
    %1748 = vmatpush1.bf16.msra.mxu0 0
    %1749 = vmatprep.mubr.bf16.mxu0 0
    %1750 = vmatmul.mubr.bf16.gmra.mrb[0].mxu0 %v1709
    %v1751 = vpop.f32.mrb[0].mxu0
    %v1752 = vadd.f32 0.0, %v1751
    %v1753 = vpop.f32.mrb[0].mxu0
    %v1754 = vpop.f32.mrb[0].mxu0
    %v1755 = vadd.f32 0.0, %v1754
    %v1756 = vpop.f32.mrb[0].mxu0
    %1757 = vmatprep.mubr.bf16.mxu0 0
    %1758 = vmatmul.mubr.bf16.gmra.mrb[0].mxu0 %v1712
    %v1759 = vpop.f32.mrb[0].mxu0
    %v1760 = vadd.f32 0.0, %v1759
    %v1761 = vpop.f32.mrb[0].mxu0
    %v1762 = vpop.f32.mrb[0].mxu0
    %v1763 = vpop.f32.mrb[0].mxu0
    %1764 = vdwg.mxu0
    %v1765 = vadd.f32 %v1465, %v1752
    %v1766 = vadd.f32 %v1468, %v1755
    %v1767 = vadd.f32 %v1473, %v1760
    %s1768 = scalar_lea.vmem %s4, 88
    %v1769 = vld [vmem:[%s1768] sm:$0xf]
    %v1770 = vld [vmem:[%s1768 + $0x4] sm:$0xf]
    %v1771 = vld [vmem:[%s1768 + $0x8] sm:$0xf]
    %v1772 = vld [vmem:[%s1768 + $0xc] sm:$0xf]
    %v1773 = vld [vmem:[%s1768 + $0x10] sm:$0xf]
    %v1774 = vld [vmem:[%s1768 + $0x14] sm:$0xf]
    %v1775 = vld [vmem:[%s1768 + $0x18] sm:$0xf]
    %v1776 = vld [vmem:[%s1768 + $0x1c] sm:$0xf]
    %v1777 = vld [vmem:[%s1768 + $0x20] sm:$0xf]
    %v1778 = vld [vmem:[%s1768 + $0x24] sm:$0xf]
    %v1779 = vld [vmem:[%s1768 + $0x28] sm:$0x3]
    %v1791 = vunpack.c.l.b16 %v1769
    %v1792 = vunpack.c.l.b16 %v1770
    %v1793 = vunpack.c.l.b16 %v1771
    %v1794 = vunpack.c.l.b16 %v1772
    %v1795 = vunpack.c.l.b16 %v1773
    %v1796 = vunpack.c.l.b16 %v1774
    %v1797 = vunpack.c.l.b16 %v1775
    %v1798 = vunpack.c.l.b16 %v1776
    %v1799 = vunpack.c.l.b16 %v1777
    %v1800 = vunpack.c.l.b16 %v1778
    %v1801 = vunpack.c.l.b16 %v1779
    %v1802 = vpack.c.b16 %v1792, %v1791
    %v1803 = vpack.c.b16 %v1794, %v1793
    %v1804 = vpack.c.b16 %v1796, %v1795
    %v1805 = vpack.c.b16 %v1798, %v1797
    %v1806 = vpack.c.b16 %v1800, %v1799
    %v1807 = vpack.c.b16 %v1801, %v1801
    %v1814 = vsel %vm1338, %v1807, 0
    %1816 = vmatprep.subr.bf16.mxu0 0
    %1817 = vmatpush1.bf16.msra.mxu0 %v1802
    %1818 = vmatprep.subr.bf16.mxu0 0
    %1819 = vmatpush1.bf16.msra.mxu0 %v1803
    %1820 = vmatprep.subr.bf16.mxu0 0
    %1821 = vmatpush1.bf16.msra.mxu0 %v1804
    %1822 = vmatprep.subr.bf16.mxu0 0
    %1823 = vmatpush1.bf16.msra.mxu0 %v1805
    %1824 = vmatprep.subr.bf16.mxu0 0
    %1825 = vmatpush1.bf16.msra.mxu0 %v1806
    %1826 = vmatprep.subr.bf16.mxu0 0
    %1827 = vmatpush1.bf16.msra.mxu0 %v1814
    %1828 = vmatprep.subr.bf16.mxu0 0
    %1829 = vmatpush1.bf16.msra.mxu0 0
    %1830 = vmatprep.subr.bf16.mxu0 0
    %1831 = vmatpush1.bf16.msra.mxu0 0
    %1832 = vmatprep.subr.bf16.mxu0 0
    %1833 = vmatpush1.bf16.msra.mxu0 0
    %1834 = vmatprep.subr.bf16.mxu0 0
    %1835 = vmatpush1.bf16.msra.mxu0 0
    %1836 = vmatprep.subr.bf16.mxu0 0
    %1837 = vmatpush1.bf16.msra.mxu0 0
    %1838 = vmatprep.subr.bf16.mxu0 0
    %1839 = vmatpush1.bf16.msra.mxu0 0
    %1840 = vmatprep.subr.bf16.mxu0 0
    %1841 = vmatpush1.bf16.msra.mxu0 0
    %1842 = vmatprep.subr.bf16.mxu0 0
    %1843 = vmatpush1.bf16.msra.mxu0 0
    %1844 = vmatprep.subr.bf16.mxu0 0
    %1845 = vmatpush1.bf16.msra.mxu0 0
    %1846 = vmatprep.subr.bf16.mxu0 0
    %1847 = vmatpush1.bf16.msra.mxu0 0
    %1848 = vmatprep.mubr.bf16.mxu0 0
    %1849 = vmatmul.mubr.bf16.gmra.mrb[0].mxu0 %v1709
    %v1850 = vpop.f32.mrb[0].mxu0
    %v1851 = vadd.f32 0.0, %v1850
    %v1852 = vpop.f32.mrb[0].mxu0
    %v1853 = vpop.f32.mrb[0].mxu0
    %v1854 = vadd.f32 0.0, %v1853
    %v1855 = vpop.f32.mrb[0].mxu0
    %1856 = vmatprep.mubr.bf16.mxu0 0
    %1857 = vmatmul.mubr.bf16.gmra.mrb[0].mxu0 %v1712
    %v1858 = vpop.f32.mrb[0].mxu0
    %v1859 = vadd.f32 0.0, %v1858
    %v1860 = vpop.f32.mrb[0].mxu0
    %v1861 = vpop.f32.mrb[0].mxu0
    %v1862 = vpop.f32.mrb[0].mxu0
    %1863 = vdwg.mxu0
    %v1864 = vadd.f32 %v1645, %v1851
    %v1865 = vadd.f32 %v1648, %v1854
    %v1866 = vadd.f32 %v1653, %v1859
    %s1867 = scalar_lea.vmem %s3, 132
    %v1868 = vld [vmem:[%s1867] sm:$0xf]
    %v1869 = vld [vmem:[%s1867 + $0x4] sm:$0xf]
    %v1870 = vld [vmem:[%s1867 + $0x8] sm:$0xf]
    %v1871 = vld [vmem:[%s1867 + $0xc] sm:$0xf]
    %v1872 = vld [vmem:[%s1867 + $0x10] sm:$0xf]
    %v1873 = vld [vmem:[%s1867 + $0x14] sm:$0xf]
    %v1874 = vld [vmem:[%s1867 + $0x18] sm:$0xf]
    %v1875 = vld [vmem:[%s1867 + $0x1c] sm:$0xf]
    %v1876 = vld [vmem:[%s1867 + $0x20] sm:$0xf]
    %v1877 = vld [vmem:[%s1867 + $0x24] sm:$0xf]
    %v1878 = vld [vmem:[%s1867 + $0x28] sm:$0x3]
    %v1879 = vrot.slane %v1284, 1
    %v1880 = vrot.slane %v1286, 2
    %v1881 = vor.u32 %v1879, %v1880
    %v1882 = vrot.slane %v1295, 1
    %v1883 = vrot.slane %v1291, 2
    %v1884 = vor.u32 %v1882, %v1883
    %v1885 = vsel %vm670, %v1881, %v1884
    %v1897 = vunpack.c.l.b16 %v1868
    %v1898 = vunpack.c.l.b16 %v1869
    %v1899 = vunpack.c.l.b16 %v1870
    %v1900 = vunpack.c.l.b16 %v1871
    %v1901 = vunpack.c.l.b16 %v1872
    %v1902 = vunpack.c.l.b16 %v1873
    %v1903 = vunpack.c.l.b16 %v1874
    %v1904 = vunpack.c.l.b16 %v1875
    %v1905 = vunpack.c.l.b16 %v1876
    %v1906 = vunpack.c.l.b16 %v1877
    %v1907 = vunpack.c.l.b16 %v1878
    %v1908 = vpack.c.b16 %v1898, %v1897
    %v1909 = vpack.c.b16 %v1900, %v1899
    %v1910 = vpack.c.b16 %v1902, %v1901
    %v1911 = vpack.c.b16 %v1904, %v1903
    %v1912 = vpack.c.b16 %v1906, %v1905
    %v1913 = vpack.c.b16 %v1907, %v1907
    %v1920 = vsel %vm1331, %v1885, 0
    %v1923 = vsel %vm1331, %v1884, 0
    %v1926 = vsel %vm1338, %v1913, 0
    %1928 = vmatprep.subr.bf16.mxu0 0
    %1929 = vmatpush1.bf16.msra.mxu0 %v1908
    %1930 = vmatprep.subr.bf16.mxu0 0
    %1931 = vmatpush1.bf16.msra.mxu0 %v1909
    %1932 = vmatprep.subr.bf16.mxu0 0
    %1933 = vmatpush1.bf16.msra.mxu0 %v1910
    %1934 = vmatprep.subr.bf16.mxu0 0
    %1935 = vmatpush1.bf16.msra.mxu0 %v1911
    %1936 = vmatprep.subr.bf16.mxu0 0
    %1937 = vmatpush1.bf16.msra.mxu0 %v1912
    %1938 = vmatprep.subr.bf16.mxu0 0
    %1939 = vmatpush1.bf16.msra.mxu0 %v1926
    %1940 = vmatprep.subr.bf16.mxu0 0
    %1941 = vmatpush1.bf16.msra.mxu0 0
    %1942 = vmatprep.subr.bf16.mxu0 0
    %1943 = vmatpush1.bf16.msra.mxu0 0
    %1944 = vmatprep.subr.bf16.mxu0 0
    %1945 = vmatpush1.bf16.msra.mxu0 0
    %1946 = vmatprep.subr.bf16.mxu0 0
    %1947 = vmatpush1.bf16.msra.mxu0 0
    %1948 = vmatprep.subr.bf16.mxu0 0
    %1949 = vmatpush1.bf16.msra.mxu0 0
    %1950 = vmatprep.subr.bf16.mxu0 0
    %1951 = vmatpush1.bf16.msra.mxu0 0
    %1952 = vmatprep.subr.bf16.mxu0 0
    %1953 = vmatpush1.bf16.msra.mxu0 0
    %1954 = vmatprep.subr.bf16.mxu0 0
    %1955 = vmatpush1.bf16.msra.mxu0 0
    %1956 = vmatprep.subr.bf16.mxu0 0
    %1957 = vmatpush1.bf16.msra.mxu0 0
    %1958 = vmatprep.subr.bf16.mxu0 0
    %1959 = vmatpush1.bf16.msra.mxu0 0
    %1960 = vmatprep.mubr.bf16.mxu0 0
    %1961 = vmatmul.mubr.bf16.gmra.mrb[0].mxu0 %v1920
    %v1962 = vpop.f32.mrb[0].mxu0
    %v1963 = vadd.f32 0.0, %v1962
    %v1964 = vpop.f32.mrb[0].mxu0
    %v1965 = vpop.f32.mrb[0].mxu0
    %v1966 = vadd.f32 0.0, %v1965
    %v1967 = vpop.f32.mrb[0].mxu0
    %1968 = vmatprep.mubr.bf16.mxu0 0
    %1969 = vmatmul.mubr.bf16.gmra.mrb[0].mxu0 %v1923
    %v1970 = vpop.f32.mrb[0].mxu0
    %v1971 = vadd.f32 0.0, %v1970
    %v1972 = vpop.f32.mrb[0].mxu0
    %v1973 = vpop.f32.mrb[0].mxu0
    %v1974 = vpop.f32.mrb[0].mxu0
    %1975 = vdwg.mxu0
    %v1976 = vadd.f32 %v1765, %v1963
    %v1977 = vadd.f32 %v1766, %v1966
    %v1978 = vadd.f32 %v1767, %v1971
    %s1979 = scalar_lea.vmem %s4, 132
    %v1980 = vld [vmem:[%s1979] sm:$0xf]
    %v1981 = vld [vmem:[%s1979 + $0x4] sm:$0xf]
    %v1982 = vld [vmem:[%s1979 + $0x8] sm:$0xf]
    %v1983 = vld [vmem:[%s1979 + $0xc] sm:$0xf]
    %v1984 = vld [vmem:[%s1979 + $0x10] sm:$0xf]
    %v1985 = vld [vmem:[%s1979 + $0x14] sm:$0xf]
    %v1986 = vld [vmem:[%s1979 + $0x18] sm:$0xf]
    %v1987 = vld [vmem:[%s1979 + $0x1c] sm:$0xf]
    %v1988 = vld [vmem:[%s1979 + $0x20] sm:$0xf]
    %v1989 = vld [vmem:[%s1979 + $0x24] sm:$0xf]
    %v1990 = vld [vmem:[%s1979 + $0x28] sm:$0x3]
    %v2002 = vunpack.c.l.b16 %v1980
    %v2003 = vunpack.c.l.b16 %v1981
    %v2004 = vunpack.c.l.b16 %v1982
    %v2005 = vunpack.c.l.b16 %v1983
    %v2006 = vunpack.c.l.b16 %v1984
    %v2007 = vunpack.c.l.b16 %v1985
    %v2008 = vunpack.c.l.b16 %v1986
    %v2009 = vunpack.c.l.b16 %v1987
    %v2010 = vunpack.c.l.b16 %v1988
    %v2011 = vunpack.c.l.b16 %v1989
    %v2012 = vunpack.c.l.b16 %v1990
    %v2013 = vpack.c.b16 %v2003, %v2002
    %v2014 = vpack.c.b16 %v2005, %v2004
    %v2015 = vpack.c.b16 %v2007, %v2006
    %v2016 = vpack.c.b16 %v2009, %v2008
    %v2017 = vpack.c.b16 %v2011, %v2010
    %v2018 = vpack.c.b16 %v2012, %v2012
    %v2025 = vsel %vm1338, %v2018, 0
    %2027 = vmatprep.subr.bf16.mxu0 0
    %2028 = vmatpush1.bf16.msra.mxu0 %v2013
    %2029 = vmatprep.subr.bf16.mxu0 0
    %2030 = vmatpush1.bf16.msra.mxu0 %v2014
    %2031 = vmatprep.subr.bf16.mxu0 0
    %2032 = vmatpush1.bf16.msra.mxu0 %v2015
    %2033 = vmatprep.subr.bf16.mxu0 0
    %2034 = vmatpush1.bf16.msra.mxu0 %v2016
    %2035 = vmatprep.subr.bf16.mxu0 0
    %2036 = vmatpush1.bf16.msra.mxu0 %v2017
    %2037 = vmatprep.subr.bf16.mxu0 0
    %2038 = vmatpush1.bf16.msra.mxu0 %v2025
    %2039 = vmatprep.subr.bf16.mxu0 0
    %2040 = vmatpush1.bf16.msra.mxu0 0
    %2041 = vmatprep.subr.bf16.mxu0 0
    %2042 = vmatpush1.bf16.msra.mxu0 0
    %2043 = vmatprep.subr.bf16.mxu0 0
    %2044 = vmatpush1.bf16.msra.mxu0 0
    %2045 = vmatprep.subr.bf16.mxu0 0
    %2046 = vmatpush1.bf16.msra.mxu0 0
    %2047 = vmatprep.subr.bf16.mxu0 0
    %2048 = vmatpush1.bf16.msra.mxu0 0
    %2049 = vmatprep.subr.bf16.mxu0 0
    %2050 = vmatpush1.bf16.msra.mxu0 0
    %2051 = vmatprep.subr.bf16.mxu0 0
    %2052 = vmatpush1.bf16.msra.mxu0 0
    %2053 = vmatprep.subr.bf16.mxu0 0
    %2054 = vmatpush1.bf16.msra.mxu0 0
    %2055 = vmatprep.subr.bf16.mxu0 0
    %2056 = vmatpush1.bf16.msra.mxu0 0
    %2057 = vmatprep.subr.bf16.mxu0 0
    %2058 = vmatpush1.bf16.msra.mxu0 0
    %2059 = vmatprep.mubr.bf16.mxu0 0
    %2060 = vmatmul.mubr.bf16.gmra.mrb[0].mxu0 %v1920
    %v2061 = vpop.f32.mrb[0].mxu0
    %v2062 = vadd.f32 0.0, %v2061
    %v2063 = vpop.f32.mrb[0].mxu0
    %v2064 = vpop.f32.mrb[0].mxu0
    %v2065 = vadd.f32 0.0, %v2064
    %v2066 = vpop.f32.mrb[0].mxu0
    %2067 = vmatprep.mubr.bf16.mxu0 0
    %2068 = vmatmul.mubr.bf16.gmra.mrb[0].mxu0 %v1923
    %v2069 = vpop.f32.mrb[0].mxu0
    %v2070 = vadd.f32 0.0, %v2069
    %v2071 = vpop.f32.mrb[0].mxu0
    %v2072 = vpop.f32.mrb[0].mxu0
    %v2073 = vpop.f32.mrb[0].mxu0
    %2074 = vdwg.mxu0
    %v2075 = vadd.f32 %v1864, %v2062
    %v2076 = vadd.f32 %v1865, %v2065
    %v2077 = vadd.f32 %v1866, %v2070
    %s2078 = scalar_lea.vmem %s3, 176
    %v2079 = vld [vmem:[%s2078] sm:$0xf]
    %v2080 = vld [vmem:[%s2078 + $0x4] sm:$0xf]
    %v2081 = vld [vmem:[%s2078 + $0x8] sm:$0xf]
    %v2082 = vld [vmem:[%s2078 + $0xc] sm:$0xf]
    %v2083 = vld [vmem:[%s2078 + $0x10] sm:$0xf]
    %v2084 = vld [vmem:[%s2078 + $0x14] sm:$0xf]
    %v2085 = vld [vmem:[%s2078 + $0x18] sm:$0xf]
    %v2086 = vld [vmem:[%s2078 + $0x1c] sm:$0xf]
    %v2087 = vld [vmem:[%s2078 + $0x20] sm:$0xf]
    %v2088 = vld [vmem:[%s2078 + $0x24] sm:$0xf]
    %v2089 = vld [vmem:[%s2078 + $0x28] sm:$0x3]
    %v2090 = vrot.slane %v1247, 2
    %v2091 = vrot.slane %v1248, 2
    %v2092 = vsel %vm878, %v2090, %v2091
    %v2104 = vunpack.c.l.b16 %v2079
    %v2105 = vunpack.c.l.b16 %v2080
    %v2106 = vunpack.c.l.b16 %v2081
    %v2107 = vunpack.c.l.b16 %v2082
    %v2108 = vunpack.c.l.b16 %v2083
    %v2109 = vunpack.c.l.b16 %v2084
    %v2110 = vunpack.c.l.b16 %v2085
    %v2111 = vunpack.c.l.b16 %v2086
    %v2112 = vunpack.c.l.b16 %v2087
    %v2113 = vunpack.c.l.b16 %v2088
    %v2114 = vunpack.c.l.b16 %v2089
    %v2115 = vpack.c.b16 %v2105, %v2104
    %v2116 = vpack.c.b16 %v2107, %v2106
    %v2117 = vpack.c.b16 %v2109, %v2108
    %v2118 = vpack.c.b16 %v2111, %v2110
    %v2119 = vpack.c.b16 %v2113, %v2112
    %v2120 = vpack.c.b16 %v2114, %v2114
    %v2127 = vsel %vm1331, %v2092, 0
    %v2130 = vsel %vm1331, %v2091, 0
    %v2133 = vsel %vm1338, %v2120, 0
    %2135 = vmatprep.subr.bf16.mxu0 0
    %2136 = vmatpush1.bf16.msra.mxu0 %v2115
    %2137 = vmatprep.subr.bf16.mxu0 0
    %2138 = vmatpush1.bf16.msra.mxu0 %v2116
    %2139 = vmatprep.subr.bf16.mxu0 0
    %2140 = vmatpush1.bf16.msra.mxu0 %v2117
    %2141 = vmatprep.subr.bf16.mxu0 0
    %2142 = vmatpush1.bf16.msra.mxu0 %v2118
    %2143 = vmatprep.subr.bf16.mxu0 0
    %2144 = vmatpush1.bf16.msra.mxu0 %v2119
    %2145 = vmatprep.subr.bf16.mxu0 0
    %2146 = vmatpush1.bf16.msra.mxu0 %v2133
    %2147 = vmatprep.subr.bf16.mxu0 0
    %2148 = vmatpush1.bf16.msra.mxu0 0
    %2149 = vmatprep.subr.bf16.mxu0 0
    %2150 = vmatpush1.bf16.msra.mxu0 0
    %2151 = vmatprep.subr.bf16.mxu0 0
    %2152 = vmatpush1.bf16.msra.mxu0 0
    %2153 = vmatprep.subr.bf16.mxu0 0
    %2154 = vmatpush1.bf16.msra.mxu0 0
    %2155 = vmatprep.subr.bf16.mxu0 0
    %2156 = vmatpush1.bf16.msra.mxu0 0
    %2157 = vmatprep.subr.bf16.mxu0 0
    %2158 = vmatpush1.bf16.msra.mxu0 0
    %2159 = vmatprep.subr.bf16.mxu0 0
    %2160 = vmatpush1.bf16.msra.mxu0 0
    %2161 = vmatprep.subr.bf16.mxu0 0
    %2162 = vmatpush1.bf16.msra.mxu0 0
    %2163 = vmatprep.subr.bf16.mxu0 0
    %2164 = vmatpush1.bf16.msra.mxu0 0
    %2165 = vmatprep.subr.bf16.mxu0 0
    %2166 = vmatpush1.bf16.msra.mxu0 0
    %2167 = vmatprep.mubr.bf16.mxu0 0
    %2168 = vmatmul.mubr.bf16.gmra.mrb[0].mxu0 %v2127
    %v2169 = vpop.f32.mrb[0].mxu0
    %v2170 = vadd.f32 0.0, %v2169
    %v2171 = vpop.f32.mrb[0].mxu0
    %v2172 = vpop.f32.mrb[0].mxu0
    %v2173 = vadd.f32 0.0, %v2172
    %v2174 = vpop.f32.mrb[0].mxu0
    %2175 = vmatprep.mubr.bf16.mxu0 0
    %2176 = vmatmul.mubr.bf16.gmra.mrb[0].mxu0 %v2130
    %v2177 = vpop.f32.mrb[0].mxu0
    %v2178 = vadd.f32 0.0, %v2177
    %v2179 = vpop.f32.mrb[0].mxu0
    %v2180 = vpop.f32.mrb[0].mxu0
    %v2181 = vpop.f32.mrb[0].mxu0
    %2182 = vdwg.mxu0
    %v2183 = vadd.f32 %v1976, %v2170
    %v2184 = vadd.f32 %v1977, %v2173
    %v2185 = vadd.f32 %v1978, %v2178
    %s2186 = scalar_lea.vmem %s4, 176
    %v2187 = vld [vmem:[%s2186] sm:$0xf]
    %v2188 = vld [vmem:[%s2186 + $0x4] sm:$0xf]
    %v2189 = vld [vmem:[%s2186 + $0x8] sm:$0xf]
    %v2190 = vld [vmem:[%s2186 + $0xc] sm:$0xf]
    %v2191 = vld [vmem:[%s2186 + $0x10] sm:$0xf]
    %v2192 = vld [vmem:[%s2186 + $0x14] sm:$0xf]
    %v2193 = vld [vmem:[%s2186 + $0x18] sm:$0xf]
    %v2194 = vld [vmem:[%s2186 + $0x1c] sm:$0xf]
    %v2195 = vld [vmem:[%s2186 + $0x20] sm:$0xf]
    %v2196 = vld [vmem:[%s2186 + $0x24] sm:$0xf]
    %v2197 = vld [vmem:[%s2186 + $0x28] sm:$0x3]
    %v2209 = vunpack.c.l.b16 %v2187
    %v2210 = vunpack.c.l.b16 %v2188
    %v2211 = vunpack.c.l.b16 %v2189
    %v2212 = vunpack.c.l.b16 %v2190
    %v2213 = vunpack.c.l.b16 %v2191
    %v2214 = vunpack.c.l.b16 %v2192
    %v2215 = vunpack.c.l.b16 %v2193
    %v2216 = vunpack.c.l.b16 %v2194
    %v2217 = vunpack.c.l.b16 %v2195
    %v2218 = vunpack.c.l.b16 %v2196
    %v2219 = vunpack.c.l.b16 %v2197
    %v2220 = vpack.c.b16 %v2210, %v2209
    %v2221 = vpack.c.b16 %v2212, %v2211
    %v2222 = vpack.c.b16 %v2214, %v2213
    %v2223 = vpack.c.b16 %v2216, %v2215
    %v2224 = vpack.c.b16 %v2218, %v2217
    %v2225 = vpack.c.b16 %v2219, %v2219
    %v2232 = vsel %vm1338, %v2225, 0
    %2234 = vmatprep.subr.bf16.mxu0 0
    %2235 = vmatpush1.bf16.msra.mxu0 %v2220
    %2236 = vmatprep.subr.bf16.mxu0 0
    %2237 = vmatpush1.bf16.msra.mxu0 %v2221
    %2238 = vmatprep.subr.bf16.mxu0 0
    %2239 = vmatpush1.bf16.msra.mxu0 %v2222
    %2240 = vmatprep.subr.bf16.mxu0 0
    %2241 = vmatpush1.bf16.msra.mxu0 %v2223
    %2242 = vmatprep.subr.bf16.mxu0 0
    %2243 = vmatpush1.bf16.msra.mxu0 %v2224
    %2244 = vmatprep.subr.bf16.mxu0 0
    %2245 = vmatpush1.bf16.msra.mxu0 %v2232
    %2246 = vmatprep.subr.bf16.mxu0 0
    %2247 = vmatpush1.bf16.msra.mxu0 0
    %2248 = vmatprep.subr.bf16.mxu0 0
    %2249 = vmatpush1.bf16.msra.mxu0 0
    %2250 = vmatprep.subr.bf16.mxu0 0
    %2251 = vmatpush1.bf16.msra.mxu0 0
    %2252 = vmatprep.subr.bf16.mxu0 0
    %2253 = vmatpush1.bf16.msra.mxu0 0
    %2254 = vmatprep.subr.bf16.mxu0 0
    %2255 = vmatpush1.bf16.msra.mxu0 0
    %2256 = vmatprep.subr.bf16.mxu0 0
    %2257 = vmatpush1.bf16.msra.mxu0 0
    %2258 = vmatprep.subr.bf16.mxu0 0
    %2259 = vmatpush1.bf16.msra.mxu0 0
    %2260 = vmatprep.subr.bf16.mxu0 0
    %2261 = vmatpush1.bf16.msra.mxu0 0
    %2262 = vmatprep.subr.bf16.mxu0 0
    %2263 = vmatpush1.bf16.msra.mxu0 0
    %2264 = vmatprep.subr.bf16.mxu0 0
    %2265 = vmatpush1.bf16.msra.mxu0 0
    %2266 = vmatprep.mubr.bf16.mxu0 0
    %2267 = vmatmul.mubr.bf16.gmra.mrb[0].mxu0 %v2127
    %v2268 = vpop.f32.mrb[0].mxu0
    %v2269 = vadd.f32 0.0, %v2268
    %v2270 = vpop.f32.mrb[0].mxu0
    %v2271 = vpop.f32.mrb[0].mxu0
    %v2272 = vadd.f32 0.0, %v2271
    %v2273 = vpop.f32.mrb[0].mxu0
    %2274 = vmatprep.mubr.bf16.mxu0 0
    %2275 = vmatmul.mubr.bf16.gmra.mrb[0].mxu0 %v2130
    %v2276 = vpop.f32.mrb[0].mxu0
    %v2277 = vadd.f32 0.0, %v2276
    %v2278 = vpop.f32.mrb[0].mxu0
    %v2279 = vpop.f32.mrb[0].mxu0
    %v2280 = vpop.f32.mrb[0].mxu0
    %2281 = vdwg.mxu0
    %v2282 = vadd.f32 %v2075, %v2269
    %v2283 = vadd.f32 %v2076, %v2272
    %v2284 = vadd.f32 %v2077, %v2277
    %v2285 = vmax.f32 %v2183, %v2282
    %v2286 = vmax.f32 %v2184, %v2283
    %v2287 = vmax.f32 %v2185, %v2284
    %v2288 = vpack.c.bf16 %v2286, %v2285
    %v2289 = vpack.c.bf16 %v2287, %v2287
    %v2290 = vld [vmem:[%s7] sm:$0xf]
    %v2291 = vld [vmem:[%s7 + $0x4] sm:$0x1]
    %v2294 = vunpack.c.l.b16 %v2290
    %v2295 = vunpack.c.l.b16 %v2291
    %v2296 = vpack.c.b16 %v2295, %v2294
    %vm2297 = vcmask 195584
    %v2299 = vsel %vm2297, %v2296, 0
    %vm2301 = vcmask 1043456
    %v2303 = vsel %vm2301, %v2289, 0
    %2305 = vmatprep.subr.bf16.mxu0 0
    %2306 = vmatpush1.bf16.msra.mxu0 %v2288
    %2307 = vmatprep.subr.bf16.mxu0 0
    %2308 = vmatpush1.bf16.msra.mxu0 %v2303
    %2309 = vmatprep.subr.bf16.mxu0 0
    %2310 = vmatpush1.bf16.msra.mxu0 0
    %2311 = vmatprep.subr.bf16.mxu0 0
    %2312 = vmatpush1.bf16.msra.mxu0 0
    %2313 = vmatprep.subr.bf16.mxu0 0
    %2314 = vmatpush1.bf16.msra.mxu0 0
    %2315 = vmatprep.subr.bf16.mxu0 0
    %2316 = vmatpush1.bf16.msra.mxu0 0
    %2317 = vmatprep.subr.bf16.mxu0 0
    %2318 = vmatpush1.bf16.msra.mxu0 0
    %2319 = vmatprep.subr.bf16.mxu0 0
    %2320 = vmatpush1.bf16.msra.mxu0 0
    %2321 = vmatprep.subr.bf16.mxu0 0
    %2322 = vmatpush1.bf16.msra.mxu0 0
    %2323 = vmatprep.subr.bf16.mxu0 0
    %2324 = vmatpush1.bf16.msra.mxu0 0
    %2325 = vmatprep.subr.bf16.mxu0 0
    %2326 = vmatpush1.bf16.msra.mxu0 0
    %2327 = vmatprep.subr.bf16.mxu0 0
    %2328 = vmatpush1.bf16.msra.mxu0 0
    %2329 = vmatprep.subr.bf16.mxu0 0
    %2330 = vmatpush1.bf16.msra.mxu0 0
    %2331 = vmatprep.subr.bf16.mxu0 0
    %2332 = vmatpush1.bf16.msra.mxu0 0
    %2333 = vmatprep.subr.bf16.mxu0 0
    %2334 = vmatpush1.bf16.msra.mxu0 0
    %2335 = vmatprep.subr.bf16.mxu0 0
    %2336 = vmatpush1.bf16.msra.mxu0 0
    %2337 = vmatprep.mubr.bf16.mxu0 0
    %2338 = vmatmul.mubr.bf16.gmra.mrb[0].mxu0 %v2299
    %v2339 = vpop.f32.mrb[0].mxu0
    %v2340 = vadd.f32 0.0, %v2339
    %v2341 = vpop.f32.mrb[0].mxu0
    %v2342 = vpop.f32.mrb[0].mxu0
    %v2343 = vadd.f32 0.0, %v2342
    %v2344 = vpop.f32.mrb[0].mxu0
    %2345 = vdwg.mxu0
    %v2346 = vld [vmem:[%s8] sm:$0xf]
    %v2347 = vld [vmem:[%s8 + $0x4] sm:$0x1]
    %v2350 = vunpack.c.l.b16 %v2346
    %v2351 = vunpack.c.l.b16 %v2347
    %v2352 = vpack.c.b16 %v2351, %v2350
    %v2354 = vsel %vm2297, %v2352, 0
    %2356 = vmatprep.subr.bf16.mxu0 0
    %2357 = vmatpush1.bf16.msra.mxu0 %v2288
    %2358 = vmatprep.subr.bf16.mxu0 0
    %2359 = vmatpush1.bf16.msra.mxu0 %v2303
    %2360 = vmatprep.subr.bf16.mxu0 0
    %2361 = vmatpush1.bf16.msra.mxu0 0
    %2362 = vmatprep.subr.bf16.mxu0 0
    %2363 = vmatpush1.bf16.msra.mxu0 0
    %2364 = vmatprep.subr.bf16.mxu0 0
    %2365 = vmatpush1.bf16.msra.mxu0 0
    %2366 = vmatprep.subr.bf16.mxu0 0
    %2367 = vmatpush1.bf16.msra.mxu0 0
    %2368 = vmatprep.subr.bf16.mxu0 0
    %2369 = vmatpush1.bf16.msra.mxu0 0
    %2370 = vmatprep.subr.bf16.mxu0 0
    %2371 = vmatpush1.bf16.msra.mxu0 0
    %2372 = vmatprep.subr.bf16.mxu0 0
    %2373 = vmatpush1.bf16.msra.mxu0 0
    %2374 = vmatprep.subr.bf16.mxu0 0
    %2375 = vmatpush1.bf16.msra.mxu0 0
    %2376 = vmatprep.subr.bf16.mxu0 0
    %2377 = vmatpush1.bf16.msra.mxu0 0
    %2378 = vmatprep.subr.bf16.mxu0 0
    %2379 = vmatpush1.bf16.msra.mxu0 0
    %2380 = vmatprep.subr.bf16.mxu0 0
    %2381 = vmatpush1.bf16.msra.mxu0 0
    %2382 = vmatprep.subr.bf16.mxu0 0
    %2383 = vmatpush1.bf16.msra.mxu0 0
    %2384 = vmatprep.subr.bf16.mxu0 0
    %2385 = vmatpush1.bf16.msra.mxu0 0
    %2386 = vmatprep.subr.bf16.mxu0 0
    %2387 = vmatpush1.bf16.msra.mxu0 0
    %2388 = vmatprep.mubr.bf16.mxu0 0
    %2389 = vmatmul.mubr.bf16.gmra.mrb[0].mxu0 %v2354
    %v2390 = vpop.f32.mrb[0].mxu0
    %v2391 = vadd.f32 0.0, %v2390
    %v2392 = vpop.f32.mrb[0].mxu0
    %v2393 = vpop.f32.mrb[0].mxu0
    %v2394 = vadd.f32 0.0, %v2393
    %v2395 = vpop.f32.mrb[0].mxu0
    %2396 = vdwg.mxu0
    %v2397 = vmax.f32 %v2340, %v2391
    %v2398 = vmax.f32 %v2343, %v2394
    %v2399 = vld [vmem:[%s10] sm:$0x1]
    %v2401 = vlaneseq
    %v2402 = vshrl.u32 %v2401, 7
    %v2403 = vsub.s32 0, %v2402
    %v2404 = vrot.slane %v2399, %v2403
    %v2406 = vadd.f32 %v2397, %v2404
    %v2407 = vadd.f32 %v2398, %v2404
    %v2408 = vmax.f32 %v2406, 0.0
    %v2409 = vmax.f32 %v2407, 0.0
    %v2410 = vpack.c.bf16 %v2409, %v2408
    %v2411 = vld [vmem:[%s11] sm:$0xf]
    %v2412 = vld [vmem:[%s11 + $0x4] sm:$0xf]
    %v2413 = vld [vmem:[%s11 + $0x8] sm:$0xf]
    %v2414 = vld [vmem:[%s11 + $0xc] sm:$0xf]
    %v2415 = vld [vmem:[%s11 + $0x10] sm:$0xf]
    %v2416 = vld [vmem:[%s11 + $0x14] sm:$0xf]
    %v2417 = vld [vmem:[%s11 + $0x18] sm:$0xf]
    %v2418 = vld [vmem:[%s11 + $0x1c] sm:$0xf]
    %v2419 = vld [vmem:[%s11 + $0x20] sm:$0xf]
    %v2420 = vld [vmem:[%s11 + $0x24] sm:$0xf]
    %s2421 = scalar_lea.vmem %s11, 40
    %v2422 = vld [vmem:[%s2421] sm:$0xf]
    %v2423 = vld [vmem:[%s2421 + $0x4] sm:$0xf]
    %v2424 = vld [vmem:[%s2421 + $0x8] sm:$0xf]
    %v2425 = vld [vmem:[%s2421 + $0xc] sm:$0xf]
    %v2426 = vld [vmem:[%s2421 + $0x10] sm:$0xf]
    %v2427 = vld [vmem:[%s2421 + $0x14] sm:$0xf]
    %v2428 = vld [vmem:[%s2421 + $0x18] sm:$0xf]
    %v2429 = vld [vmem:[%s2421 + $0x1c] sm:$0xf]
    %v2430 = vld [vmem:[%s2421 + $0x20] sm:$0xf]
    %v2431 = vld [vmem:[%s2421 + $0x24] sm:$0xf]
    %v2433 = vrot.slane %v2410, 1
    %v2444 = vunpack.c.l.b16 %v2422
    %v2445 = vunpack.c.l.b16 %v2423
    %v2446 = vunpack.c.l.b16 %v2424
    %v2447 = vunpack.c.l.b16 %v2425
    %v2448 = vunpack.c.l.b16 %v2426
    %v2449 = vunpack.c.l.b16 %v2427
    %v2450 = vunpack.c.l.b16 %v2428
    %v2451 = vunpack.c.l.b16 %v2429
    %v2452 = vunpack.c.l.b16 %v2430
    %v2453 = vunpack.c.l.b16 %v2431
    %v2454 = vpack.c.b16 %v2445, %v2444
    %v2455 = vpack.c.b16 %v2447, %v2446
    %v2456 = vpack.c.b16 %v2449, %v2448
    %v2457 = vpack.c.b16 %v2451, %v2450
    %v2458 = vpack.c.b16 %v2453, %v2452
    %vm2464 = vcmask 654336
    %v2466 = vsel %vm2464, %v2433, 0
    %2468 = vmatprep.subr.bf16.mxu0 0
    %2469 = vmatpush1.bf16.msra.mxu0 %v2454
    %2470 = vmatprep.subr.bf16.mxu0 0
    %2471 = vmatpush1.bf16.msra.mxu0 %v2455
    %2472 = vmatprep.subr.bf16.mxu0 0
    %2473 = vmatpush1.bf16.msra.mxu0 %v2456
    %2474 = vmatprep.subr.bf16.mxu0 0
    %2475 = vmatpush1.bf16.msra.mxu0 %v2457
    %2476 = vmatprep.subr.bf16.mxu0 0
    %2477 = vmatpush1.bf16.msra.mxu0 %v2458
    %2478 = vmatprep.subr.bf16.mxu0 0
    %2479 = vmatpush1.bf16.msra.mxu0 0
    %2480 = vmatprep.subr.bf16.mxu0 0
    %2481 = vmatpush1.bf16.msra.mxu0 0
    %2482 = vmatprep.subr.bf16.mxu0 0
    %2483 = vmatpush1.bf16.msra.mxu0 0
    %2484 = vmatprep.subr.bf16.mxu0 0
    %2485 = vmatpush1.bf16.msra.mxu0 0
    %2486 = vmatprep.subr.bf16.mxu0 0
    %2487 = vmatpush1.bf16.msra.mxu0 0
    %2488 = vmatprep.subr.bf16.mxu0 0
    %2489 = vmatpush1.bf16.msra.mxu0 0
    %2490 = vmatprep.subr.bf16.mxu0 0
    %2491 = vmatpush1.bf16.msra.mxu0 0
    %2492 = vmatprep.subr.bf16.mxu0 0
    %2493 = vmatpush1.bf16.msra.mxu0 0
    %2494 = vmatprep.subr.bf16.mxu0 0
    %2495 = vmatpush1.bf16.msra.mxu0 0
    %2496 = vmatprep.subr.bf16.mxu0 0
    %2497 = vmatpush1.bf16.msra.mxu0 0
    %2498 = vmatprep.subr.bf16.mxu0 0
    %2499 = vmatpush1.bf16.msra.mxu0 0
    %2500 = vmatprep.mubr.bf16.mxu0 0
    %2501 = vmatmul.mubr.bf16.gmra.mrb[0].mxu0 %v2466
    %v2502 = vpop.f32.mrb[0].mxu0
    %v2503 = vadd.f32 0.0, %v2502
    %v2504 = vpop.f32.mrb[0].mxu0
    %v2505 = vpop.f32.mrb[0].mxu0
    %v2506 = vpop.f32.mrb[0].mxu0
    %2507 = vdwg.mxu0
    %v2518 = vunpack.c.l.b16 %v2411
    %v2519 = vunpack.c.l.b16 %v2412
    %v2520 = vunpack.c.l.b16 %v2413
    %v2521 = vunpack.c.l.b16 %v2414
    %v2522 = vunpack.c.l.b16 %v2415
    %v2523 = vunpack.c.l.b16 %v2416
    %v2524 = vunpack.c.l.b16 %v2417
    %v2525 = vunpack.c.l.b16 %v2418
    %v2526 = vunpack.c.l.b16 %v2419
    %v2527 = vunpack.c.l.b16 %v2420
    %v2528 = vpack.c.b16 %v2519, %v2518
    %v2529 = vpack.c.b16 %v2521, %v2520
    %v2530 = vpack.c.b16 %v2523, %v2522
    %v2531 = vpack.c.b16 %v2525, %v2524
    %v2532 = vpack.c.b16 %v2527, %v2526
    %v2539 = vsel %vm2464, %v2410, 0
    %2541 = vmatprep.subr.bf16.mxu0 0
    %2542 = vmatpush1.bf16.msra.mxu0 %v2528
    %2543 = vmatprep.subr.bf16.mxu0 0
    %2544 = vmatpush1.bf16.msra.mxu0 %v2529
    %2545 = vmatprep.subr.bf16.mxu0 0
    %2546 = vmatpush1.bf16.msra.mxu0 %v2530
    %2547 = vmatprep.subr.bf16.mxu0 0
    %2548 = vmatpush1.bf16.msra.mxu0 %v2531
    %2549 = vmatprep.subr.bf16.mxu0 0
    %2550 = vmatpush1.bf16.msra.mxu0 %v2532
    %2551 = vmatprep.subr.bf16.mxu0 0
    %2552 = vmatpush1.bf16.msra.mxu0 0
    %2553 = vmatprep.subr.bf16.mxu0 0
    %2554 = vmatpush1.bf16.msra.mxu0 0
    %2555 = vmatprep.subr.bf16.mxu0 0
    %2556 = vmatpush1.bf16.msra.mxu0 0
    %2557 = vmatprep.subr.bf16.mxu0 0
    %2558 = vmatpush1.bf16.msra.mxu0 0
    %2559 = vmatprep.subr.bf16.mxu0 0
    %2560 = vmatpush1.bf16.msra.mxu0 0
    %2561 = vmatprep.subr.bf16.mxu0 0
    %2562 = vmatpush1.bf16.msra.mxu0 0
    %2563 = vmatprep.subr.bf16.mxu0 0
    %2564 = vmatpush1.bf16.msra.mxu0 0
    %2565 = vmatprep.subr.bf16.mxu0 0
    %2566 = vmatpush1.bf16.msra.mxu0 0
    %2567 = vmatprep.subr.bf16.mxu0 0
    %2568 = vmatpush1.bf16.msra.mxu0 0
    %2569 = vmatprep.subr.bf16.mxu0 0
    %2570 = vmatpush1.bf16.msra.mxu0 0
    %2571 = vmatprep.subr.bf16.mxu0 0
    %2572 = vmatpush1.bf16.msra.mxu0 0
    %2573 = vmatprep.mubr.bf16.mxu0 0
    %2574 = vmatmul.mubr.bf16.gmra.mrb[0].mxu0 %v2539
    %v2575 = vpop.f32.mrb[0].mxu0
    %v2576 = vadd.f32 %v2503, %v2575
    %v2577 = vpop.f32.mrb[0].mxu0
    %v2578 = vpop.f32.mrb[0].mxu0
    %v2579 = vpop.f32.mrb[0].mxu0
    %2580 = vdwg.mxu0
    %s2581 = scalar_lea.vmem %s11, 80
    %v2582 = vld [vmem:[%s2581] sm:$0xf]
    %v2583 = vld [vmem:[%s2581 + $0x4] sm:$0xf]
    %v2584 = vld [vmem:[%s2581 + $0x8] sm:$0xf]
    %v2585 = vld [vmem:[%s2581 + $0xc] sm:$0xf]
    %v2586 = vld [vmem:[%s2581 + $0x10] sm:$0xf]
    %v2587 = vld [vmem:[%s2581 + $0x14] sm:$0xf]
    %v2588 = vld [vmem:[%s2581 + $0x18] sm:$0xf]
    %v2589 = vld [vmem:[%s2581 + $0x1c] sm:$0xf]
    %v2590 = vld [vmem:[%s2581 + $0x20] sm:$0xf]
    %v2591 = vld [vmem:[%s2581 + $0x24] sm:$0xf]
    %v2592 = vrot.slane %v2410, 2
    %v2603 = vunpack.c.l.b16 %v2582
    %v2604 = vunpack.c.l.b16 %v2583
    %v2605 = vunpack.c.l.b16 %v2584
    %v2606 = vunpack.c.l.b16 %v2585
    %v2607 = vunpack.c.l.b16 %v2586
    %v2608 = vunpack.c.l.b16 %v2587
    %v2609 = vunpack.c.l.b16 %v2588
    %v2610 = vunpack.c.l.b16 %v2589
    %v2611 = vunpack.c.l.b16 %v2590
    %v2612 = vunpack.c.l.b16 %v2591
    %v2613 = vpack.c.b16 %v2604, %v2603
    %v2614 = vpack.c.b16 %v2606, %v2605
    %v2615 = vpack.c.b16 %v2608, %v2607
    %v2616 = vpack.c.b16 %v2610, %v2609
    %v2617 = vpack.c.b16 %v2612, %v2611
    %v2624 = vsel %vm2464, %v2592, 0
    %2626 = vmatprep.subr.bf16.mxu0 0
    %2627 = vmatpush1.bf16.msra.mxu0 %v2613
    %2628 = vmatprep.subr.bf16.mxu0 0
    %2629 = vmatpush1.bf16.msra.mxu0 %v2614
    %2630 = vmatprep.subr.bf16.mxu0 0
    %2631 = vmatpush1.bf16.msra.mxu0 %v2615
    %2632 = vmatprep.subr.bf16.mxu0 0
    %2633 = vmatpush1.bf16.msra.mxu0 %v2616
    %2634 = vmatprep.subr.bf16.mxu0 0
    %2635 = vmatpush1.bf16.msra.mxu0 %v2617
    %2636 = vmatprep.subr.bf16.mxu0 0
    %2637 = vmatpush1.bf16.msra.mxu0 0
    %2638 = vmatprep.subr.bf16.mxu0 0
    %2639 = vmatpush1.bf16.msra.mxu0 0
    %2640 = vmatprep.subr.bf16.mxu0 0
    %2641 = vmatpush1.bf16.msra.mxu0 0
    %2642 = vmatprep.subr.bf16.mxu0 0
    %2643 = vmatpush1.bf16.msra.mxu0 0
    %2644 = vmatprep.subr.bf16.mxu0 0
    %2645 = vmatpush1.bf16.msra.mxu0 0
    %2646 = vmatprep.subr.bf16.mxu0 0
    %2647 = vmatpush1.bf16.msra.mxu0 0
    %2648 = vmatprep.subr.bf16.mxu0 0
    %2649 = vmatpush1.bf16.msra.mxu0 0
    %2650 = vmatprep.subr.bf16.mxu0 0
    %2651 = vmatpush1.bf16.msra.mxu0 0
    %2652 = vmatprep.subr.bf16.mxu0 0
    %2653 = vmatpush1.bf16.msra.mxu0 0
    %2654 = vmatprep.subr.bf16.mxu0 0
    %2655 = vmatpush1.bf16.msra.mxu0 0
    %2656 = vmatprep.subr.bf16.mxu0 0
    %2657 = vmatpush1.bf16.msra.mxu0 0
    %2658 = vmatprep.mubr.bf16.mxu0 0
    %2659 = vmatmul.mubr.bf16.gmra.mrb[0].mxu0 %v2624
    %v2660 = vpop.f32.mrb[0].mxu0
    %v2661 = vadd.f32 0.0, %v2660
    %v2662 = vpop.f32.mrb[0].mxu0
    %v2663 = vpop.f32.mrb[0].mxu0
    %v2664 = vpop.f32.mrb[0].mxu0
    %2665 = vdwg.mxu0
    %v2666 = vadd.f32 %v2576, %v2661
    %s2667 = scalar_lea.vmem %s11, 120
    %v2668 = vld [vmem:[%s2667] sm:$0xf]
    %v2669 = vld [vmem:[%s2667 + $0x4] sm:$0xf]
    %v2670 = vld [vmem:[%s2667 + $0x8] sm:$0xf]
    %v2671 = vld [vmem:[%s2667 + $0xc] sm:$0xf]
    %v2672 = vld [vmem:[%s2667 + $0x10] sm:$0xf]
    %v2673 = vld [vmem:[%s2667 + $0x14] sm:$0xf]
    %v2674 = vld [vmem:[%s2667 + $0x18] sm:$0xf]
    %v2675 = vld [vmem:[%s2667 + $0x1c] sm:$0xf]
    %v2676 = vld [vmem:[%s2667 + $0x20] sm:$0xf]
    %v2677 = vld [vmem:[%s2667 + $0x24] sm:$0xf]
    %v2678 = vrot.slane %v2410, 3
    %v2689 = vunpack.c.l.b16 %v2668
    %v2690 = vunpack.c.l.b16 %v2669
    %v2691 = vunpack.c.l.b16 %v2670
    %v2692 = vunpack.c.l.b16 %v2671
    %v2693 = vunpack.c.l.b16 %v2672
    %v2694 = vunpack.c.l.b16 %v2673
    %v2695 = vunpack.c.l.b16 %v2674
    %v2696 = vunpack.c.l.b16 %v2675
    %v2697 = vunpack.c.l.b16 %v2676
    %v2698 = vunpack.c.l.b16 %v2677
    %v2699 = vpack.c.b16 %v2690, %v2689
    %v2700 = vpack.c.b16 %v2692, %v2691
    %v2701 = vpack.c.b16 %v2694, %v2693
    %v2702 = vpack.c.b16 %v2696, %v2695
    %v2703 = vpack.c.b16 %v2698, %v2697
    %v2710 = vsel %vm2464, %v2678, 0
    %2712 = vmatprep.subr.bf16.mxu0 0
    %2713 = vmatpush1.bf16.msra.mxu0 %v2699
    %2714 = vmatprep.subr.bf16.mxu0 0
    %2715 = vmatpush1.bf16.msra.mxu0 %v2700
    %2716 = vmatprep.subr.bf16.mxu0 0
    %2717 = vmatpush1.bf16.msra.mxu0 %v2701
    %2718 = vmatprep.subr.bf16.mxu0 0
    %2719 = vmatpush1.bf16.msra.mxu0 %v2702
    %2720 = vmatprep.subr.bf16.mxu0 0
    %2721 = vmatpush1.bf16.msra.mxu0 %v2703
    %2722 = vmatprep.subr.bf16.mxu0 0
    %2723 = vmatpush1.bf16.msra.mxu0 0
    %2724 = vmatprep.subr.bf16.mxu0 0
    %2725 = vmatpush1.bf16.msra.mxu0 0
    %2726 = vmatprep.subr.bf16.mxu0 0
    %2727 = vmatpush1.bf16.msra.mxu0 0
    %2728 = vmatprep.subr.bf16.mxu0 0
    %2729 = vmatpush1.bf16.msra.mxu0 0
    %2730 = vmatprep.subr.bf16.mxu0 0
    %2731 = vmatpush1.bf16.msra.mxu0 0
    %2732 = vmatprep.subr.bf16.mxu0 0
    %2733 = vmatpush1.bf16.msra.mxu0 0
    %2734 = vmatprep.subr.bf16.mxu0 0
    %2735 = vmatpush1.bf16.msra.mxu0 0
    %2736 = vmatprep.subr.bf16.mxu0 0
    %2737 = vmatpush1.bf16.msra.mxu0 0
    %2738 = vmatprep.subr.bf16.mxu0 0
    %2739 = vmatpush1.bf16.msra.mxu0 0
    %2740 = vmatprep.subr.bf16.mxu0 0
    %2741 = vmatpush1.bf16.msra.mxu0 0
    %2742 = vmatprep.subr.bf16.mxu0 0
    %2743 = vmatpush1.bf16.msra.mxu0 0
    %2744 = vmatprep.mubr.bf16.mxu0 0
    %2745 = vmatmul.mubr.bf16.gmra.mrb[0].mxu0 %v2710
    %v2746 = vpop.f32.mrb[0].mxu0
    %v2747 = vadd.f32 0.0, %v2746
    %v2748 = vpop.f32.mrb[0].mxu0
    %v2749 = vpop.f32.mrb[0].mxu0
    %v2750 = vpop.f32.mrb[0].mxu0
    %2751 = vdwg.mxu0
    %v2752 = vadd.f32 %v2666, %v2747
    %s2753 = scalar_lea.vmem %s11, 160
    %v2754 = vld [vmem:[%s2753] sm:$0xf]
    %v2755 = vld [vmem:[%s2753 + $0x4] sm:$0xf]
    %v2756 = vld [vmem:[%s2753 + $0x8] sm:$0xf]
    %v2757 = vld [vmem:[%s2753 + $0xc] sm:$0xf]
    %v2758 = vld [vmem:[%s2753 + $0x10] sm:$0xf]
    %v2759 = vld [vmem:[%s2753 + $0x14] sm:$0xf]
    %v2760 = vld [vmem:[%s2753 + $0x18] sm:$0xf]
    %v2761 = vld [vmem:[%s2753 + $0x1c] sm:$0xf]
    %v2762 = vld [vmem:[%s2753 + $0x20] sm:$0xf]
    %v2763 = vld [vmem:[%s2753 + $0x24] sm:$0xf]
    %v2764 = vrot.slane %v2410, 4
    %v2775 = vunpack.c.l.b16 %v2754
    %v2776 = vunpack.c.l.b16 %v2755
    %v2777 = vunpack.c.l.b16 %v2756
    %v2778 = vunpack.c.l.b16 %v2757
    %v2779 = vunpack.c.l.b16 %v2758
    %v2780 = vunpack.c.l.b16 %v2759
    %v2781 = vunpack.c.l.b16 %v2760
    %v2782 = vunpack.c.l.b16 %v2761
    %v2783 = vunpack.c.l.b16 %v2762
    %v2784 = vunpack.c.l.b16 %v2763
    %v2785 = vpack.c.b16 %v2776, %v2775
    %v2786 = vpack.c.b16 %v2778, %v2777
    %v2787 = vpack.c.b16 %v2780, %v2779
    %v2788 = vpack.c.b16 %v2782, %v2781
    %v2789 = vpack.c.b16 %v2784, %v2783
    %v2796 = vsel %vm2464, %v2764, 0
    %2798 = vmatprep.subr.bf16.mxu0 0
    %2799 = vmatpush1.bf16.msra.mxu0 %v2785
    %2800 = vmatprep.subr.bf16.mxu0 0
    %2801 = vmatpush1.bf16.msra.mxu0 %v2786
    %2802 = vmatprep.subr.bf16.mxu0 0
    %2803 = vmatpush1.bf16.msra.mxu0 %v2787
    %2804 = vmatprep.subr.bf16.mxu0 0
    %2805 = vmatpush1.bf16.msra.mxu0 %v2788
    %2806 = vmatprep.subr.bf16.mxu0 0
    %2807 = vmatpush1.bf16.msra.mxu0 %v2789
    %2808 = vmatprep.subr.bf16.mxu0 0
    %2809 = vmatpush1.bf16.msra.mxu0 0
    %2810 = vmatprep.subr.bf16.mxu0 0
    %2811 = vmatpush1.bf16.msra.mxu0 0
    %2812 = vmatprep.subr.bf16.mxu0 0
    %2813 = vmatpush1.bf16.msra.mxu0 0
    %2814 = vmatprep.subr.bf16.mxu0 0
    %2815 = vmatpush1.bf16.msra.mxu0 0
    %2816 = vmatprep.subr.bf16.mxu0 0
    %2817 = vmatpush1.bf16.msra.mxu0 0
    %2818 = vmatprep.subr.bf16.mxu0 0
    %2819 = vmatpush1.bf16.msra.mxu0 0
    %2820 = vmatprep.subr.bf16.mxu0 0
    %2821 = vmatpush1.bf16.msra.mxu0 0
    %2822 = vmatprep.subr.bf16.mxu0 0
    %2823 = vmatpush1.bf16.msra.mxu0 0
    %2824 = vmatprep.subr.bf16.mxu0 0
    %2825 = vmatpush1.bf16.msra.mxu0 0
    %2826 = vmatprep.subr.bf16.mxu0 0
    %2827 = vmatpush1.bf16.msra.mxu0 0
    %2828 = vmatprep.subr.bf16.mxu0 0
    %2829 = vmatpush1.bf16.msra.mxu0 0
    %2830 = vmatprep.mubr.bf16.mxu0 0
    %2831 = vmatmul.mubr.bf16.gmra.mrb[0].mxu0 %v2796
    %v2832 = vpop.f32.mrb[0].mxu0
    %v2833 = vadd.f32 0.0, %v2832
    %v2834 = vpop.f32.mrb[0].mxu0
    %v2835 = vpop.f32.mrb[0].mxu0
    %v2836 = vpop.f32.mrb[0].mxu0
    %2837 = vdwg.mxu0
    %v2838 = vadd.f32 %v2752, %v2833
    %v2839 = vld [vmem:[%s12] sm:$0x1]
    %v2841 = vlaneseq
    %v2842 = vshrl.u32 %v2841, 7
    %v2843 = vsub.s32 0, %v2842
    %v2844 = vrot.slane %v2839, %v2843
    %v2846 = vadd.f32 %v2838, %v2844
    %v2847 = vmax.f32 %v2846, 0.0
    %v2848 = vpack.c.bf16 %v2847, %v2847
    %v2849 = vld [vmem:[%s13] sm:$0xf]
    %v2850 = vld [vmem:[%s13 + $0x4] sm:$0xf]
    %v2851 = vld [vmem:[%s13 + $0x8] sm:$0xf]
    %v2852 = vld [vmem:[%s13 + $0xc] sm:$0xf]
    %v2853 = vld [vmem:[%s13 + $0x10] sm:$0xf]
    %v2854 = vld [vmem:[%s13 + $0x14] sm:$0xf]
    %v2855 = vld [vmem:[%s13 + $0x18] sm:$0xf]
    %v2856 = vld [vmem:[%s13 + $0x1c] sm:$0xf]
    %v2857 = vld [vmem:[%s13 + $0x20] sm:$0xf]
    %v2858 = vld [vmem:[%s13 + $0x24] sm:$0xf]
    %v2859 = vld [vmem:[%s13 + $0x28] sm:$0xf]
    %v2860 = vld [vmem:[%s13 + $0x2c] sm:$0xf]
    %v2861 = vld [vmem:[%s13 + $0x30] sm:$0xf]
    %v2862 = vld [vmem:[%s13 + $0x34] sm:$0xf]
    %v2863 = vld [vmem:[%s13 + $0x38] sm:$0xf]
    %v2864 = vld [vmem:[%s14] sm:$0x1]
    %v2866 = vlaneseq
    %v2867 = vshrl.u32 %v2866, 7
    %v2868 = vsub.s32 0, %v2867
    %v2869 = vrot.slane %v2864, %v2868
    %v2886 = vunpack.c.l.b16 %v2849
    %v2887 = vunpack.c.l.b16 %v2850
    %v2888 = vunpack.c.l.b16 %v2851
    %v2889 = vunpack.c.l.b16 %v2852
    %v2890 = vunpack.c.l.b16 %v2853
    %v2891 = vunpack.c.l.b16 %v2854
    %v2892 = vunpack.c.l.b16 %v2855
    %v2893 = vunpack.c.l.b16 %v2856
    %v2894 = vunpack.c.l.b16 %v2857
    %v2895 = vunpack.c.l.b16 %v2858
    %v2896 = vunpack.c.l.b16 %v2859
    %v2897 = vunpack.c.l.b16 %v2860
    %v2898 = vunpack.c.l.b16 %v2861
    %v2899 = vunpack.c.l.b16 %v2862
    %v2900 = vunpack.c.l.b16 %v2863
    %v2901 = vpack.c.b16 %v2887, %v2886
    %v2902 = vpack.c.b16 %v2889, %v2888
    %v2903 = vpack.c.b16 %v2891, %v2890
    %v2904 = vpack.c.b16 %v2893, %v2892
    %v2905 = vpack.c.b16 %v2895, %v2894
    %v2906 = vpack.c.b16 %v2897, %v2896
    %v2907 = vpack.c.b16 %v2899, %v2898
    %v2908 = vpack.c.b16 %v2900, %v2900
    %vm2916 = vcmask 982016
    %v2918 = vsel %vm2916, %v2848, 0
    %v2921 = vsel %vm2301, %v2908, 0
    %2923 = vmatprep.subr.bf16.mxu0 0
    %2924 = vmatpush1.bf16.msra.mxu0 %v2901
    %2925 = vmatprep.subr.bf16.mxu0 0
    %2926 = vmatpush1.bf16.msra.mxu0 %v2902
    %2927 = vmatprep.subr.bf16.mxu0 0
    %2928 = vmatpush1.bf16.msra.mxu0 %v2903
    %2929 = vmatprep.subr.bf16.mxu0 0
    %2930 = vmatpush1.bf16.msra.mxu0 %v2904
    %2931 = vmatprep.subr.bf16.mxu0 0
    %2932 = vmatpush1.bf16.msra.mxu0 %v2905
    %2933 = vmatprep.subr.bf16.mxu0 0
    %2934 = vmatpush1.bf16.msra.mxu0 %v2906
    %2935 = vmatprep.subr.bf16.mxu0 0
    %2936 = vmatpush1.bf16.msra.mxu0 %v2907
    %2937 = vmatprep.subr.bf16.mxu0 0
    %2938 = vmatpush1.bf16.msra.mxu0 %v2921
    %2939 = vmatprep.subr.bf16.mxu0 0
    %2940 = vmatpush1.bf16.msra.mxu0 0
    %2941 = vmatprep.subr.bf16.mxu0 0
    %2942 = vmatpush1.bf16.msra.mxu0 0
    %2943 = vmatprep.subr.bf16.mxu0 0
    %2944 = vmatpush1.bf16.msra.mxu0 0
    %2945 = vmatprep.subr.bf16.mxu0 0
    %2946 = vmatpush1.bf16.msra.mxu0 0
    %2947 = vmatprep.subr.bf16.mxu0 0
    %2948 = vmatpush1.bf16.msra.mxu0 0
    %2949 = vmatprep.subr.bf16.mxu0 0
    %2950 = vmatpush1.bf16.msra.mxu0 0
    %2951 = vmatprep.subr.bf16.mxu0 0
    %2952 = vmatpush1.bf16.msra.mxu0 0
    %2953 = vmatprep.subr.bf16.mxu0 0
    %2954 = vmatpush1.bf16.msra.mxu0 0
    %2955 = vmatprep.mubr.bf16.mxu0 0
    %2956 = vmatmul.mubr.bf16.gmra.mrb[0].mxu0 %v2918
    %v2957 = vpop.f32.mrb[0].mxu0
    %v2958 = vadd.f32 %v2869, %v2957
    %v2959 = vpop.f32.mrb[0].mxu0
    %v2960 = vpop.f32.mrb[0].mxu0
    %v2961 = vpop.f32.mrb[0].mxu0
    %2962 = vdwg.mxu0
    %v2963 = vmax.f32 %v2958, 0.0
    %v2964 = vpack.c.bf16 %v2963, %v2963
    %v2965 = vld [vmem:[%s15] sm:$0xf]
    %v2966 = vld [vmem:[%s15 + $0x4] sm:$0xf]
    %v2967 = vld [vmem:[%s15 + $0x8] sm:$0xf]
    %v2968 = vld [vmem:[%s15 + $0xc] sm:$0xf]
    %v2969 = vld [vmem:[%s15 + $0x10] sm:$0xf]
    %v2970 = vld [vmem:[%s15 + $0x14] sm:$0xf]
    %v2971 = vld [vmem:[%s15 + $0x18] sm:$0xf]
    %v2972 = vld [vmem:[%s15 + $0x1c] sm:$0xf]
    %v2973 = vld [vmem:[%s15 + $0x20] sm:$0xf]
    %v2974 = vld [vmem:[%s15 + $0x24] sm:$0xf]
    %v2975 = vld [vmem:[%s15 + $0x28] sm:$0x3]
    %v2976 = vld [vmem:[%s16] sm:$0x1]
    %v2978 = vlaneseq
    %v2979 = vshrl.u32 %v2978, 7
    %v2980 = vsub.s32 0, %v2979
    %v2981 = vrot.slane %v2976, %v2980
    %v2994 = vunpack.c.l.b16 %v2965
    %v2995 = vunpack.c.l.b16 %v2966
    %v2996 = vunpack.c.l.b16 %v2967
    %v2997 = vunpack.c.l.b16 %v2968
    %v2998 = vunpack.c.l.b16 %v2969
    %v2999 = vunpack.c.l.b16 %v2970
    %v3000 = vunpack.c.l.b16 %v2971
    %v3001 = vunpack.c.l.b16 %v2972
    %v3002 = vunpack.c.l.b16 %v2973
    %v3003 = vunpack.c.l.b16 %v2974
    %v3004 = vunpack.c.l.b16 %v2975
    %v3005 = vpack.c.b16 %v2995, %v2994
    %v3006 = vpack.c.b16 %v2997, %v2996
    %v3007 = vpack.c.b16 %v2999, %v2998
    %v3008 = vpack.c.b16 %v3001, %v3000
    %v3009 = vpack.c.b16 %v3003, %v3002
    %v3010 = vpack.c.b16 %v3004, %v3004
    %v3017 = vsel %vm1331, %v2964, 0
    %v3020 = vsel %vm1338, %v3010, 0
    %3022 = vmatprep.subr.bf16.mxu0 0
    %3023 = vmatpush1.bf16.msra.mxu0 %v3005
    %3024 = vmatprep.subr.bf16.mxu0 0
    %3025 = vmatpush1.bf16.msra.mxu0 %v3006
    %3026 = vmatprep.subr.bf16.mxu0 0
    %3027 = vmatpush1.bf16.msra.mxu0 %v3007
    %3028 = vmatprep.subr.bf16.mxu0 0
    %3029 = vmatpush1.bf16.msra.mxu0 %v3008
    %3030 = vmatprep.subr.bf16.mxu0 0
    %3031 = vmatpush1.bf16.msra.mxu0 %v3009
    %3032 = vmatprep.subr.bf16.mxu0 0
    %3033 = vmatpush1.bf16.msra.mxu0 %v3020
    %3034 = vmatprep.subr.bf16.mxu0 0
    %3035 = vmatpush1.bf16.msra.mxu0 0
    %3036 = vmatprep.subr.bf16.mxu0 0
    %3037 = vmatpush1.bf16.msra.mxu0 0
    %3038 = vmatprep.subr.bf16.mxu0 0
    %3039 = vmatpush1.bf16.msra.mxu0 0
    %3040 = vmatprep.subr.bf16.mxu0 0
    %3041 = vmatpush1.bf16.msra.mxu0 0
    %3042 = vmatprep.subr.bf16.mxu0 0
    %3043 = vmatpush1.bf16.msra.mxu0 0
    %3044 = vmatprep.subr.bf16.mxu0 0
    %3045 = vmatpush1.bf16.msra.mxu0 0
    %3046 = vmatprep.subr.bf16.mxu0 0
    %3047 = vmatpush1.bf16.msra.mxu0 0
    %3048 = vmatprep.subr.bf16.mxu0 0
    %3049 = vmatpush1.bf16.msra.mxu0 0
    %3050 = vmatprep.subr.bf16.mxu0 0
    %3051 = vmatpush1.bf16.msra.mxu0 0
    %3052 = vmatprep.subr.bf16.mxu0 0
    %3053 = vmatpush1.bf16.msra.mxu0 0
    %3054 = vmatprep.mubr.bf16.mxu0 0
    %3055 = vmatmul.mubr.bf16.gmra.mrb[0].mxu0 %v3017
    %v3056 = vpop.f32.mrb[0].mxu0
    %v3057 = vadd.f32 %v2981, %v3056
    %v3058 = vpop.f32.mrb[0].mxu0
    %v3059 = vpop.f32.mrb[0].mxu0
    %v3060 = vpop.f32.mrb[0].mxu0
    %3061 = vdwg.mxu0
    %vm3062 = vcmask 74752
    %3063 = vst.msk [vmem:[#allocation2] sm:$0x3] %vm3062, %v3057
    // Predicated region
    $region70: #{tpu_custom_call.1} parent=1 // pred_check
      _
    $region71: #{tpu_custom_call.1} parent=1 // pred_check_branch
      %3065 = sbr.rel (0) target = $region73
    $region72: #{tpu_custom_call.1} parent=1 // pred_region
      %s3067 = ssub.s32 32, 32
      %3068 = vsyncadd [#allocation3], %s3067
      %s3070 = sshll.u32 [#allocation2], 4
      %s3071 = int_to_ptr.vmem [resolvable:$true] %s3070
      %3073 = dma.vmem_to_hbm [thread:$0]  %s3071, 32, %s17, [#allocation3]
    $region73: #{tpu_custom_call.1} parent=1 // pred_fallthru
      _
    // Predicated region
    $region74: #{tpu_custom_call.1} parent=1 // pred_check
      _
    $region75: #{tpu_custom_call.1} parent=1 // pred_check_branch
      %3075 = sbr.rel (0) target = $region77
    $region76: #{tpu_custom_call.1} parent=1 // pred_region
      %3076 = dma.done [#allocation3], 32
    $region77: #{tpu_custom_call.1} parent=1 // pred_fallthru
      _
    %3077 = vsyncpa [#allocation3], 1

</llo_original>
